<compile_context>
chip_gen: v7x
topology: tpu7x:2x2x1
jax: 0.10.0
libtpu: 0.0.40
codegen_flags: <defaults>
</compile_context>

<pallas_src>
import functools

import jax
import jax.numpy as jnp
from jax.experimental import pallas as pl
from jax.experimental.pallas import tpu as pltpu


def _bf(x):
    return x.astype(jnp.bfloat16)


def _mm(a, b):
    """MXU matmul, bf16 operands, f32 accumulation."""
    return jnp.dot(_bf(a), _bf(b), preferred_element_type=jnp.float32)


def _mm_nt(a, b):
    """a @ b.T without materializing the transpose (contract minor dims)."""
    return jnp.einsum("qd,kd->qk", _bf(a), _bf(b),
                      preferred_element_type=jnp.float32)


def _lstm_step(gx_t, h, c, Whh, H):
    """One LSTM step on a stacked (N, H) carry; PyTorch gate order [i,f,g,o]."""
    g = gx_t + _mm(h, Whh)                       # (N, 4H)
    sg = jax.nn.sigmoid(g)                       # one full-width EUP pass
    i_g = sg[:, 0 * H:1 * H]
    f_g = sg[:, 1 * H:2 * H]
    o_g = sg[:, 3 * H:4 * H]
    g_g = jnp.tanh(g[:, 2 * H:3 * H])
    c = f_g * c + i_g * g_g
    h = o_g * jnp.tanh(c)
    return h, c


def esim_kernel(
    x_ref,                                   # (S*N, E) bf16, time-major rows t*N+n
    h0_ref, c0_ref,                          # (N, H) f32 encoder init states
    lens_ref,                                # (N, 1)  f32 sentence lengths
    Wih_ref, Whh_ref, b_ref,                 # encoder LSTM params
    Wline_ref, bline_ref,                    # projection Linear(4H -> H)
    Wcih_ref, Wchh_ref, bc_ref,              # composition LSTM params
    W1_ref, b1_ref, W2_ref, b2_ref,          # classifier MLP params
    out_ref,                                 # (TB, 2) softmax probs
    enc_ref,                                 # VMEM (S*N, H)   time-major encoder out
    e_ref,                                   # VMEM (N*S, 4H)  enhanced feats (seq-major)
    gc_ref,                                  # VMEM (N*S, 4H)  composition gates (seq-major)
    *, S, H, TB,
):
    N = 2 * TB                               # sequences in the fused scans
    lens = lens_ref[...]                     # (N, 1) f32

    # ---------------- fused sentence-encoder LSTM over N sequences -----------
    # input gates for every (sequence, step) with one matmul, off the chain
    gx = _mm(x_ref[...], Wih_ref[...]) + b_ref[...]          # (S*N, 4H) f32
    Whh = Whh_ref[...]                                        # resident across scan
    h = h0_ref[...]
    c = c0_ref[...]
    for t in range(S):                                        # fully unrolled
        h, c = _lstm_step(gx[t * N:(t + 1) * N, :], h, c, Whh, H)
        # pad_packed zeroing folded into one contiguous per-step store
        valid_t = (lens > t).astype(jnp.float32)              # (N, 1)
        enc_ref[pl.ds(t * N, N), :] = h * valid_t

    # ------------- soft alignment (per example) -> enhanced features ---------
    for i in range(TB):
        s1 = enc_ref[pl.ds(i, S, stride=N), :]                # (S, H), sentence 1
        s2 = enc_ref[pl.ds(TB + i, S, stride=N), :]           # (S, H), sentence 2
        # reference quirk: softmax(sim) @ s1 and softmax(sim.T) @ s2
        sim = _mm_nt(s1, s2)                                  # s1 @ s2.T  (S, S)
        simT = _mm_nt(s2, s1)                                 # == sim.T, no transpose op
        a1 = _mm(jax.nn.softmax(sim, axis=-1), s1)
        a2 = _mm(jax.nn.softmax(simT, axis=-1), s2)
        e1 = jnp.concatenate([s1, a1, s1 - a1, s1 * a1], axis=-1)   # (S, 4H)
        e2 = jnp.concatenate([s2, a2, s2 - a2, s2 * a2], axis=-1)
        e_ref[pl.ds(i * S, S), :] = e1                        # sequence-major rows
        e_ref[pl.ds((TB + i) * S, S), :] = e2

    # --------- batched projection + composition input gates (2 matmuls) ------
    e_all = e_ref[...]                                        # (N*S, 4H)
    p_all = jnp.maximum(_mm(e_all, Wline_ref[...]) + bline_ref[...], 0.0)
    gc_ref[...] = _mm(p_all, Wcih_ref[...]) + bc_ref[...]     # (N*S, 4H)

    # ------------- fused composition LSTM + on-the-fly pooling ---------------
    Wchh = Wchh_ref[...]
    h = jnp.zeros((N, H), jnp.float32)                        # nn.LSTM default h0=c0=0
    c = jnp.zeros((N, H), jnp.float32)
    v_sum = jnp.zeros((N, H), jnp.float32)
    v_max = jnp.full((N, H), -jnp.inf, jnp.float32)
    for t in range(S):                                        # fully unrolled
        gx_t = gc_ref[pl.ds(t, N, stride=S), :]               # strided gather, off-carry
        h, c = _lstm_step(gx_t, h, c, Wchh, H)
        v_sum = v_sum + h * (lens > t).astype(jnp.float32)    # masked-mean numerator
        v_max = jnp.maximum(v_max, h)                         # torch.max over all steps
    v_avg = v_sum / jnp.maximum(lens, 1.0)                    # clamp: zero-length guard

    # -------- classifier: Linear(4H,H) -> ReLU -> Linear(H,2) (no concats) ---
    # v = [v_avg1 | v_max1 | v_avg2 | v_max2]; contract W1 blockwise instead.
    W1 = W1_ref[...]
    hm = (_mm(v_avg[:TB, :], W1[0 * H:1 * H, :]) +
          _mm(v_max[:TB, :], W1[1 * H:2 * H, :]) +
          _mm(v_avg[TB:, :], W1[2 * H:3 * H, :]) +
          _mm(v_max[TB:, :], W1[3 * H:4 * H, :]) + b1_ref[...])
    hm = jnp.maximum(hm, 0.0)                                 # (TB, H)
    logits = _mm(hm, W2_ref[...]) + b2_ref[...]               # (TB, 2)
    out_ref[...] = jax.nn.softmax(logits, axis=-1)


def init_params(key, vocab_size, E, H):
    ks = jax.random.split(key, 12)
    scale = 0.1
    return {
        "emb":    scale * jax.random.normal(ks[0], (vocab_size, E), jnp.float32),
        # encoder LSTM (stored transposed: (in, 4H) so kernel does x @ W)
        "W_ih":   scale * jax.random.normal(ks[1], (E, 4 * H), jnp.float32),
        "W_hh":   scale * jax.random.normal(ks[2], (H, 4 * H), jnp.float32),
        "b":      scale * jax.random.normal(ks[3], (1, 4 * H), jnp.float32),
        # projection Linear(4H, H)
        "W_line": scale * jax.random.normal(ks[4], (4 * H, H), jnp.float32),
        "b_line": scale * jax.random.normal(ks[5], (1, H), jnp.float32),
        # composition LSTM
        "Wc_ih":  scale * jax.random.normal(ks[6], (H, 4 * H), jnp.float32),
        "Wc_hh":  scale * jax.random.normal(ks[7], (H, 4 * H), jnp.float32),
        "bc":     scale * jax.random.normal(ks[8], (1, 4 * H), jnp.float32),
        # classifier MLP
        "W1":     scale * jax.random.normal(ks[9], (4 * H, H), jnp.float32),
        "b1":     scale * jax.random.normal(ks[10], (1, H), jnp.float32),
        "W2":     scale * jax.random.normal(ks[11], (H, 2), jnp.float32),
        "b2":     jnp.zeros((1, 2), jnp.float32),
    }


def esim_forward(params, sent1, len1, sent2, len2, h01, c01, h02, c02, *,
                 block_b=2):
    B, S = sent1.shape
    E = params["emb"].shape[1]
    H = params["W_hh"].shape[0]
    TB = min(block_b, B)
    assert B % TB == 0, "batch must be divisible by the per-step block size"
    G = B // TB            # keep G >= 2 on v7x so both TensorCores get work
    N = 2 * TB

    # embedding lookup (gather kept in plain JAX glue)
    x1 = params["emb"][sent1]          # (B, S, E)
    x2 = params["emb"][sent2]

    # wrapper-side layout plumbing: per block, time-major rows t*N + n with
    # sentence-blocked n = sentence*TB + local_example; bf16 halves DMA.
    x_all = jnp.stack([x1, x2], axis=0).reshape(2, G, TB, S, E)
    x_tm = jnp.transpose(x_all, (1, 3, 0, 2, 4)).reshape(G, S * N, E)
    x_tm = x_tm.astype(jnp.bfloat16)

    h0 = jnp.stack([h01.reshape(G, TB, H), h02.reshape(G, TB, H)],
                   axis=1).reshape(G, N, H).astype(jnp.float32)
    c0 = jnp.stack([c01.reshape(G, TB, H), c02.reshape(G, TB, H)],
                   axis=1).reshape(G, N, H).astype(jnp.float32)
    lens = jnp.stack([len1.reshape(G, TB), len2.reshape(G, TB)],
                     axis=1).reshape(G, N, 1).astype(jnp.float32)

    bf = lambda a: a.astype(jnp.bfloat16)

    def blocked(shape):
        return pl.BlockSpec((None,) + shape,
                            lambda g: (g,) + (0,) * len(shape))

    def replicated(shape):
        return pl.BlockSpec(shape, lambda g: (0,) * len(shape))

    grid_spec = pltpu.PrefetchScalarGridSpec(
        num_scalar_prefetch=0,
        grid=(G,),
        in_specs=[
            blocked((S * N, E)),          # x_tm (bf16)
            blocked((N, H)),              # h0
            blocked((N, H)),              # c0
            blocked((N, 1)),              # lens (f32)
            replicated((E, 4 * H)),       # W_ih (bf16)
            replicated((H, 4 * H)),       # W_hh (bf16)
            replicated((1, 4 * H)),       # b
            replicated((4 * H, H)),       # W_line (bf16)
            replicated((1, H)),           # b_line
            replicated((H, 4 * H)),       # Wc_ih (bf16)
            replicated((H, 4 * H)),       # Wc_hh (bf16)
            replicated((1, 4 * H)),       # bc
            replicated((4 * H, H)),       # W1 (bf16)
            replicated((1, H)),           # b1
            replicated((H, 2)),           # W2 (bf16)
            replicated((1, 2)),           # b2
        ],
        out_specs=pl.BlockSpec((None, TB, 2), lambda g: (g, 0, 0)),
        scratch_shapes=[
            pltpu.VMEM((S * N, H), jnp.float32),      # enc (time-major)
            pltpu.VMEM((N * S, 4 * H), jnp.float32),  # enhanced feats (seq-major)
            pltpu.VMEM((N * S, 4 * H), jnp.float32),  # composition gates (seq-major)
        ],
    )

    out = pl.pallas_call(
        functools.partial(esim_kernel, S=S, H=H, TB=TB),
        out_shape=jax.ShapeDtypeStruct((G, TB, 2), jnp.float32),
        grid_spec=grid_spec,
        compiler_params=pltpu.CompilerParams(
            dimension_semantics=("parallel",)),
    )(
        x_tm, h0, c0, lens,
        bf(params["W_ih"]), bf(params["W_hh"]), params["b"],
        bf(params["W_line"]), params["b_line"],
        bf(params["Wc_ih"]), bf(params["Wc_hh"]), params["bc"],
        bf(params["W1"]), params["b1"], bf(params["W2"]), params["b2"],
    )
    return out.reshape(B, 2)


if __name__ == "__main__":
    VOCAB, E, H = 50, 16, 32
    B, S = 4, 8

    key = jax.random.PRNGKey(0)
    k_param, k_s1, k_s2, k_h = jax.random.split(key, 4)
    params = init_params(k_param, VOCAB, E, H)

    sent1 = jax.random.randint(k_s1, (B, S), 0, VOCAB, dtype=jnp.int32)
    sent2 = jax.random.randint(k_s2, (B, S), 0, VOCAB, dtype=jnp.int32)
    # pack_padded_sequence convention: lengths sorted descending, max == S so
    # both padded max-lengths agree and Utilities.build_mask is the identity
    len1 = jnp.array([S, 6, 5, 3], dtype=jnp.int32)
    len2 = jnp.array([S, 7, 4, 2], dtype=jnp.int32)

    # deterministic stand-ins for init_hidden()'s torch.randn
    kh = jax.random.split(k_h, 4)
    h01 = 0.1 * jax.random.normal(kh[0], (B, H), jnp.float32)
    c01 = 0.1 * jax.random.normal(kh[1], (B, H), jnp.float32)
    h02 = 0.1 * jax.random.normal(kh[2], (B, H), jnp.float32)
    c02 = 0.1 * jax.random.normal(kh[3], (B, H), jnp.float32)

    probs = esim_forward(params, sent1, len1, sent2, len2,
                         h01, c01, h02, c02, block_b=2)
    probs = jax.block_until_ready(probs)

    assert probs.shape == (B, 2)
    assert bool(jnp.all(jnp.isfinite(probs)))
    assert bool(jnp.all(jnp.abs(jnp.sum(probs, axis=-1) - 1.0) < 1e-5))
    print("KERNEL_OK")
</pallas_src>

<mosaic_0001>
module attributes {stable_mosaic.version = 11 : i64} {
  func.func @esim_kernel(%arg0: i32, %arg1: memref<1x32x16xbf16, #tpu.memory_space<vmem>>, %arg2: memref<1x4x32xf32, #tpu.memory_space<vmem>>, %arg3: memref<1x4x32xf32, #tpu.memory_space<vmem>>, %arg4: memref<1x4x1xf32, #tpu.memory_space<vmem>>, %arg5: memref<16x128xbf16, #tpu.memory_space<vmem>>, %arg6: memref<32x128xbf16, #tpu.memory_space<vmem>>, %arg7: memref<1x128xf32, #tpu.memory_space<vmem>>, %arg8: memref<128x32xbf16, #tpu.memory_space<vmem>>, %arg9: memref<1x32xf32, #tpu.memory_space<vmem>>, %arg10: memref<32x128xbf16, #tpu.memory_space<vmem>>, %arg11: memref<32x128xbf16, #tpu.memory_space<vmem>>, %arg12: memref<1x128xf32, #tpu.memory_space<vmem>>, %arg13: memref<128x32xbf16, #tpu.memory_space<vmem>>, %arg14: memref<1x32xf32, #tpu.memory_space<vmem>>, %arg15: memref<32x2xbf16, #tpu.memory_space<vmem>>, %arg16: memref<1x2xf32, #tpu.memory_space<vmem>>, %arg17: memref<1x2x2xf32, #tpu.memory_space<vmem>>, %arg18: memref<32x32xf32, #tpu.memory_space<vmem>>, %arg19: memref<32x128xf32, #tpu.memory_space<vmem>>, %arg20: memref<32x128xf32, #tpu.memory_space<vmem>>) attributes {dimension_semantics = [#tpu.dimension_semantics<parallel>], iteration_bounds = array<i64: 2>, scalar_prefetch = 0 : i64, scratch_operands = 3 : i64, tpu.core_type = #tpu.core_type<tc>, window_params = [{transform_indices = @transform_0, window_bounds = array<i64: 1, 32, 16>}, {transform_indices = @transform_1, window_bounds = array<i64: 1, 4, 32>}, {transform_indices = @transform_2, window_bounds = array<i64: 1, 4, 32>}, {transform_indices = @transform_3, window_bounds = array<i64: 1, 4, 1>}, {pipeline_mode = #tpu.pipeline_mode<synchronous>, transform_indices = @transform_4, window_bounds = array<i64: 16, 128>}, {pipeline_mode = #tpu.pipeline_mode<synchronous>, transform_indices = @transform_5, window_bounds = array<i64: 32, 128>}, {pipeline_mode = #tpu.pipeline_mode<synchronous>, transform_indices = @transform_6, window_bounds = array<i64: 1, 128>}, {pipeline_mode = #tpu.pipeline_mode<synchronous>, transform_indices = @transform_7, window_bounds = array<i64: 128, 32>}, {pipeline_mode = #tpu.pipeline_mode<synchronous>, transform_indices = @transform_8, window_bounds = array<i64: 1, 32>}, {pipeline_mode = #tpu.pipeline_mode<synchronous>, transform_indices = @transform_9, window_bounds = array<i64: 32, 128>}, {pipeline_mode = #tpu.pipeline_mode<synchronous>, transform_indices = @transform_10, window_bounds = array<i64: 32, 128>}, {pipeline_mode = #tpu.pipeline_mode<synchronous>, transform_indices = @transform_11, window_bounds = array<i64: 1, 128>}, {pipeline_mode = #tpu.pipeline_mode<synchronous>, transform_indices = @transform_12, window_bounds = array<i64: 128, 32>}, {pipeline_mode = #tpu.pipeline_mode<synchronous>, transform_indices = @transform_13, window_bounds = array<i64: 1, 32>}, {pipeline_mode = #tpu.pipeline_mode<synchronous>, transform_indices = @transform_14, window_bounds = array<i64: 32, 2>}, {pipeline_mode = #tpu.pipeline_mode<synchronous>, transform_indices = @transform_15, window_bounds = array<i64: 1, 2>}, {transform_indices = @transform_16, window_bounds = array<i64: 1, 2, 2>}]} {
    %c0 = arith.constant 0 : index
    %c0_0 = arith.constant 0 : index
    %c0_1 = arith.constant 0 : index
    %0 = vector.load %arg4[%c0, %c0_0, %c0_1] : memref<1x4x1xf32, #tpu.memory_space<vmem>>, vector<1x4x1xf32>
    %1 = vector.shape_cast %0 : vector<1x4x1xf32> to vector<4x1xf32>
    %c0_2 = arith.constant 0 : index
    %c0_3 = arith.constant 0 : index
    %c0_4 = arith.constant 0 : index
    %2 = vector.load %arg1[%c0_2, %c0_3, %c0_4] : memref<1x32x16xbf16, #tpu.memory_space<vmem>>, vector<1x32x16xbf16>
    %3 = vector.shape_cast %2 : vector<1x32x16xbf16> to vector<32x16xbf16>
    %c0_5 = arith.constant 0 : index
    %c0_6 = arith.constant 0 : index
    %4 = vector.load %arg5[%c0_5, %c0_6] : memref<16x128xbf16, #tpu.memory_space<vmem>>, vector<16x128xbf16>
    %cst = arith.constant dense<0.000000e+00> : vector<32x128xf32>
    %5 = tpu.matmul %3, %4, %cst {dimension_numbers = #tpu.dot_dimension_numbers<[1], [0], [0], [1], [0, 0, 1, 1], [], []>} : vector<32x16xbf16>, vector<16x128xbf16>, vector<32x128xf32> -> vector<32x128xf32>
    %c0_7 = arith.constant 0 : index
    %c0_8 = arith.constant 0 : index
    %6 = vector.load %arg7[%c0_7, %c0_8] : memref<1x128xf32, #tpu.memory_space<vmem>>, vector<1x128xf32>
    %7 = vector.broadcast %6 : vector<1x128xf32> to vector<32x128xf32>
    %8 = arith.addf %5, %7 : vector<32x128xf32>
    %c0_9 = arith.constant 0 : index
    %c0_10 = arith.constant 0 : index
    %9 = vector.load %arg6[%c0_9, %c0_10] : memref<32x128xbf16, #tpu.memory_space<vmem>>, vector<32x128xbf16>
    %c0_11 = arith.constant 0 : index
    %c0_12 = arith.constant 0 : index
    %c0_13 = arith.constant 0 : index
    %10 = vector.load %arg2[%c0_11, %c0_12, %c0_13] : memref<1x4x32xf32, #tpu.memory_space<vmem>>, vector<1x4x32xf32>
    %11 = vector.shape_cast %10 : vector<1x4x32xf32> to vector<4x32xf32>
    %c0_14 = arith.constant 0 : index
    %c0_15 = arith.constant 0 : index
    %c0_16 = arith.constant 0 : index
    %12 = vector.load %arg3[%c0_14, %c0_15, %c0_16] : memref<1x4x32xf32, #tpu.memory_space<vmem>>, vector<1x4x32xf32>
    %13 = vector.shape_cast %12 : vector<1x4x32xf32> to vector<4x32xf32>
    %14 = vector.extract_strided_slice %8 {offsets = [0, 0], sizes = [4, 128], strides = [1, 1]} : vector<32x128xf32> to vector<4x128xf32>
    %15 = arith.truncf %11 : vector<4x32xf32> to vector<4x32xbf16>
    %cst_17 = arith.constant dense<0.000000e+00> : vector<4x128xf32>
    %16 = tpu.matmul %15, %9, %cst_17 {dimension_numbers = #tpu.dot_dimension_numbers<[1], [0], [0], [1], [0, 0, 1, 1], [], []>} : vector<4x32xbf16>, vector<32x128xbf16>, vector<4x128xf32> -> vector<4x128xf32>
    %17 = arith.addf %14, %16 : vector<4x128xf32>
    %18 = arith.negf %17 : vector<4x128xf32>
    %19 = math.exp %18 : vector<4x128xf32>
    %cst_18 = arith.constant 1.000000e+00 : f32
    %20 = vector.broadcast %cst_18 : f32 to vector<4x128xf32>
    %21 = arith.addf %20, %19 : vector<4x128xf32>
    %22 = arith.divf %20, %21 : vector<4x128xf32>
    %23 = vector.extract_strided_slice %22 {offsets = [0, 0], sizes = [4, 32], strides = [1, 1]} : vector<4x128xf32> to vector<4x32xf32>
    %24 = vector.extract_strided_slice %22 {offsets = [0, 32], sizes = [4, 32], strides = [1, 1]} : vector<4x128xf32> to vector<4x32xf32>
    %25 = vector.extract_strided_slice %22 {offsets = [0, 96], sizes = [4, 32], strides = [1, 1]} : vector<4x128xf32> to vector<4x32xf32>
    %26 = vector.extract_strided_slice %17 {offsets = [0, 64], sizes = [4, 32], strides = [1, 1]} : vector<4x128xf32> to vector<4x32xf32>
    %27 = math.tanh %26 : vector<4x32xf32>
    %28 = arith.mulf %24, %13 : vector<4x32xf32>
    %29 = arith.mulf %23, %27 : vector<4x32xf32>
    %30 = arith.addf %28, %29 : vector<4x32xf32>
    %31 = math.tanh %30 : vector<4x32xf32>
    %32 = arith.mulf %25, %31 : vector<4x32xf32>
    %cst_19 = arith.constant 0.000000e+00 : f32
    %33 = vector.broadcast %cst_19 : f32 to vector<4x1xf32>
    %34 = arith.cmpf ogt, %1, %33 : vector<4x1xf32>
    %35 = arith.extui %34 : vector<4x1xi1> to vector<4x1xi32>
    %36 = arith.sitofp %35 : vector<4x1xi32> to vector<4x1xf32>
    %37 = vector.broadcast %36 : vector<4x1xf32> to vector<4x32xf32>
    %38 = arith.mulf %32, %37 : vector<4x32xf32>
    %c0_20 = arith.constant 0 : index
    %c0_21 = arith.constant 0 : index
    %39 = vector.load %arg18[%c0_20, %c0_21] : memref<32x32xf32, #tpu.memory_space<vmem>>, vector<4x32xf32>
    tpu.vector_store %arg18[%c0_20, %c0_21], %38 {strides = array<i32>} : memref<32x32xf32, #tpu.memory_space<vmem>>, vector<4x32xf32>,
    %40 = vector.extract_strided_slice %8 {offsets = [4, 0], sizes = [4, 128], strides = [1, 1]} : vector<32x128xf32> to vector<4x128xf32>
    %41 = arith.truncf %32 : vector<4x32xf32> to vector<4x32xbf16>
    %cst_22 = arith.constant dense<0.000000e+00> : vector<4x128xf32>
    %42 = tpu.matmul %41, %9, %cst_22 {dimension_numbers = #tpu.dot_dimension_numbers<[1], [0], [0], [1], [0, 0, 1, 1], [], []>} : vector<4x32xbf16>, vector<32x128xbf16>, vector<4x128xf32> -> vector<4x128xf32>
    %43 = arith.addf %40, %42 : vector<4x128xf32>
    %44 = arith.negf %43 : vector<4x128xf32>
    %45 = math.exp %44 : vector<4x128xf32>
    %cst_23 = arith.constant 1.000000e+00 : f32
    %46 = vector.broadcast %cst_23 : f32 to vector<4x128xf32>
    %47 = arith.addf %46, %45 : vector<4x128xf32>
    %48 = arith.divf %46, %47 : vector<4x128xf32>
    %49 = vector.extract_strided_slice %48 {offsets = [0, 0], sizes = [4, 32], strides = [1, 1]} : vector<4x128xf32> to vector<4x32xf32>
    %50 = vector.extract_strided_slice %48 {offsets = [0, 32], sizes = [4, 32], strides = [1, 1]} : vector<4x128xf32> to vector<4x32xf32>
    %51 = vector.extract_strided_slice %48 {offsets = [0, 96], sizes = [4, 32], strides = [1, 1]} : vector<4x128xf32> to vector<4x32xf32>
    %52 = vector.extract_strided_slice %43 {offsets = [0, 64], sizes = [4, 32], strides = [1, 1]} : vector<4x128xf32> to vector<4x32xf32>
    %53 = math.tanh %52 : vector<4x32xf32>
    %54 = arith.mulf %50, %30 : vector<4x32xf32>
    %55 = arith.mulf %49, %53 : vector<4x32xf32>
    %56 = arith.addf %54, %55 : vector<4x32xf32>
    %57 = math.tanh %56 : vector<4x32xf32>
    %58 = arith.mulf %51, %57 : vector<4x32xf32>
    %cst_24 = arith.constant 1.000000e+00 : f32
    %59 = vector.broadcast %cst_24 : f32 to vector<4x1xf32>
    %60 = arith.cmpf ogt, %1, %59 : vector<4x1xf32>
    %61 = arith.extui %60 : vector<4x1xi1> to vector<4x1xi32>
    %62 = arith.sitofp %61 : vector<4x1xi32> to vector<4x1xf32>
    %63 = vector.broadcast %62 : vector<4x1xf32> to vector<4x32xf32>
    %64 = arith.mulf %58, %63 : vector<4x32xf32>
    %c4 = arith.constant 4 : index
    %c0_25 = arith.constant 0 : index
    %65 = vector.load %arg18[%c4, %c0_25] : memref<32x32xf32, #tpu.memory_space<vmem>>, vector<4x32xf32>
    tpu.vector_store %arg18[%c4, %c0_25], %64 {strides = array<i32>} : memref<32x32xf32, #tpu.memory_space<vmem>>, vector<4x32xf32>,
    %66 = vector.extract_strided_slice %8 {offsets = [8, 0], sizes = [4, 128], strides = [1, 1]} : vector<32x128xf32> to vector<4x128xf32>
    %67 = arith.truncf %58 : vector<4x32xf32> to vector<4x32xbf16>
    %cst_26 = arith.constant dense<0.000000e+00> : vector<4x128xf32>
    %68 = tpu.matmul %67, %9, %cst_26 {dimension_numbers = #tpu.dot_dimension_numbers<[1], [0], [0], [1], [0, 0, 1, 1], [], []>} : vector<4x32xbf16>, vector<32x128xbf16>, vector<4x128xf32> -> vector<4x128xf32>
    %69 = arith.addf %66, %68 : vector<4x128xf32>
    %70 = arith.negf %69 : vector<4x128xf32>
    %71 = math.exp %70 : vector<4x128xf32>
    %cst_27 = arith.constant 1.000000e+00 : f32
    %72 = vector.broadcast %cst_27 : f32 to vector<4x128xf32>
    %73 = arith.addf %72, %71 : vector<4x128xf32>
    %74 = arith.divf %72, %73 : vector<4x128xf32>
    %75 = vector.extract_strided_slice %74 {offsets = [0, 0], sizes = [4, 32], strides = [1, 1]} : vector<4x128xf32> to vector<4x32xf32>
    %76 = vector.extract_strided_slice %74 {offsets = [0, 32], sizes = [4, 32], strides = [1, 1]} : vector<4x128xf32> to vector<4x32xf32>
    %77 = vector.extract_strided_slice %74 {offsets = [0, 96], sizes = [4, 32], strides = [1, 1]} : vector<4x128xf32> to vector<4x32xf32>
    %78 = vector.extract_strided_slice %69 {offsets = [0, 64], sizes = [4, 32], strides = [1, 1]} : vector<4x128xf32> to vector<4x32xf32>
    %79 = math.tanh %78 : vector<4x32xf32>
    %80 = arith.mulf %76, %56 : vector<4x32xf32>
    %81 = arith.mulf %75, %79 : vector<4x32xf32>
    %82 = arith.addf %80, %81 : vector<4x32xf32>
    %83 = math.tanh %82 : vector<4x32xf32>
    %84 = arith.mulf %77, %83 : vector<4x32xf32>
    %cst_28 = arith.constant 2.000000e+00 : f32
    %85 = vector.broadcast %cst_28 : f32 to vector<4x1xf32>
    %86 = arith.cmpf ogt, %1, %85 : vector<4x1xf32>
    %87 = arith.extui %86 : vector<4x1xi1> to vector<4x1xi32>
    %88 = arith.sitofp %87 : vector<4x1xi32> to vector<4x1xf32>
    %89 = vector.broadcast %88 : vector<4x1xf32> to vector<4x32xf32>
    %90 = arith.mulf %84, %89 : vector<4x32xf32>
    %c8 = arith.constant 8 : index
    %c0_29 = arith.constant 0 : index
    %91 = vector.load %arg18[%c8, %c0_29] : memref<32x32xf32, #tpu.memory_space<vmem>>, vector<4x32xf32>
    tpu.vector_store %arg18[%c8, %c0_29], %90 {strides = array<i32>} : memref<32x32xf32, #tpu.memory_space<vmem>>, vector<4x32xf32>,
    %92 = vector.extract_strided_slice %8 {offsets = [12, 0], sizes = [4, 128], strides = [1, 1]} : vector<32x128xf32> to vector<4x128xf32>
    %93 = arith.truncf %84 : vector<4x32xf32> to vector<4x32xbf16>
    %cst_30 = arith.constant dense<0.000000e+00> : vector<4x128xf32>
    %94 = tpu.matmul %93, %9, %cst_30 {dimension_numbers = #tpu.dot_dimension_numbers<[1], [0], [0], [1], [0, 0, 1, 1], [], []>} : vector<4x32xbf16>, vector<32x128xbf16>, vector<4x128xf32> -> vector<4x128xf32>
    %95 = arith.addf %92, %94 : vector<4x128xf32>
    %96 = arith.negf %95 : vector<4x128xf32>
    %97 = math.exp %96 : vector<4x128xf32>
    %cst_31 = arith.constant 1.000000e+00 : f32
    %98 = vector.broadcast %cst_31 : f32 to vector<4x128xf32>
    %99 = arith.addf %98, %97 : vector<4x128xf32>
    %100 = arith.divf %98, %99 : vector<4x128xf32>
    %101 = vector.extract_strided_slice %100 {offsets = [0, 0], sizes = [4, 32], strides = [1, 1]} : vector<4x128xf32> to vector<4x32xf32>
    %102 = vector.extract_strided_slice %100 {offsets = [0, 32], sizes = [4, 32], strides = [1, 1]} : vector<4x128xf32> to vector<4x32xf32>
    %103 = vector.extract_strided_slice %100 {offsets = [0, 96], sizes = [4, 32], strides = [1, 1]} : vector<4x128xf32> to vector<4x32xf32>
    %104 = vector.extract_strided_slice %95 {offsets = [0, 64], sizes = [4, 32], strides = [1, 1]} : vector<4x128xf32> to vector<4x32xf32>
    %105 = math.tanh %104 : vector<4x32xf32>
    %106 = arith.mulf %102, %82 : vector<4x32xf32>
    %107 = arith.mulf %101, %105 : vector<4x32xf32>
    %108 = arith.addf %106, %107 : vector<4x32xf32>
    %109 = math.tanh %108 : vector<4x32xf32>
    %110 = arith.mulf %103, %109 : vector<4x32xf32>
    %cst_32 = arith.constant 3.000000e+00 : f32
    %111 = vector.broadcast %cst_32 : f32 to vector<4x1xf32>
    %112 = arith.cmpf ogt, %1, %111 : vector<4x1xf32>
    %113 = arith.extui %112 : vector<4x1xi1> to vector<4x1xi32>
    %114 = arith.sitofp %113 : vector<4x1xi32> to vector<4x1xf32>
    %115 = vector.broadcast %114 : vector<4x1xf32> to vector<4x32xf32>
    %116 = arith.mulf %110, %115 : vector<4x32xf32>
    %c12 = arith.constant 12 : index
    %c0_33 = arith.constant 0 : index
    %117 = vector.load %arg18[%c12, %c0_33] : memref<32x32xf32, #tpu.memory_space<vmem>>, vector<4x32xf32>
    tpu.vector_store %arg18[%c12, %c0_33], %116 {strides = array<i32>} : memref<32x32xf32, #tpu.memory_space<vmem>>, vector<4x32xf32>,
    %118 = vector.extract_strided_slice %8 {offsets = [16, 0], sizes = [4, 128], strides = [1, 1]} : vector<32x128xf32> to vector<4x128xf32>
    %119 = arith.truncf %110 : vector<4x32xf32> to vector<4x32xbf16>
    %cst_34 = arith.constant dense<0.000000e+00> : vector<4x128xf32>
    %120 = tpu.matmul %119, %9, %cst_34 {dimension_numbers = #tpu.dot_dimension_numbers<[1], [0], [0], [1], [0, 0, 1, 1], [], []>} : vector<4x32xbf16>, vector<32x128xbf16>, vector<4x128xf32> -> vector<4x128xf32>
    %121 = arith.addf %118, %120 : vector<4x128xf32>
    %122 = arith.negf %121 : vector<4x128xf32>
    %123 = math.exp %122 : vector<4x128xf32>
    %cst_35 = arith.constant 1.000000e+00 : f32
    %124 = vector.broadcast %cst_35 : f32 to vector<4x128xf32>
    %125 = arith.addf %124, %123 : vector<4x128xf32>
    %126 = arith.divf %124, %125 : vector<4x128xf32>
    %127 = vector.extract_strided_slice %126 {offsets = [0, 0], sizes = [4, 32], strides = [1, 1]} : vector<4x128xf32> to vector<4x32xf32>
    %128 = vector.extract_strided_slice %126 {offsets = [0, 32], sizes = [4, 32], strides = [1, 1]} : vector<4x128xf32> to vector<4x32xf32>
    %129 = vector.extract_strided_slice %126 {offsets = [0, 96], sizes = [4, 32], strides = [1, 1]} : vector<4x128xf32> to vector<4x32xf32>
    %130 = vector.extract_strided_slice %121 {offsets = [0, 64], sizes = [4, 32], strides = [1, 1]} : vector<4x128xf32> to vector<4x32xf32>
    %131 = math.tanh %130 : vector<4x32xf32>
    %132 = arith.mulf %128, %108 : vector<4x32xf32>
    %133 = arith.mulf %127, %131 : vector<4x32xf32>
    %134 = arith.addf %132, %133 : vector<4x32xf32>
    %135 = math.tanh %134 : vector<4x32xf32>
    %136 = arith.mulf %129, %135 : vector<4x32xf32>
    %cst_36 = arith.constant 4.000000e+00 : f32
    %137 = vector.broadcast %cst_36 : f32 to vector<4x1xf32>
    %138 = arith.cmpf ogt, %1, %137 : vector<4x1xf32>
    %139 = arith.extui %138 : vector<4x1xi1> to vector<4x1xi32>
    %140 = arith.sitofp %139 : vector<4x1xi32> to vector<4x1xf32>
    %141 = vector.broadcast %140 : vector<4x1xf32> to vector<4x32xf32>
    %142 = arith.mulf %136, %141 : vector<4x32xf32>
    %c16 = arith.constant 16 : index
    %c0_37 = arith.constant 0 : index
    %143 = vector.load %arg18[%c16, %c0_37] : memref<32x32xf32, #tpu.memory_space<vmem>>, vector<4x32xf32>
    tpu.vector_store %arg18[%c16, %c0_37], %142 {strides = array<i32>} : memref<32x32xf32, #tpu.memory_space<vmem>>, vector<4x32xf32>,
    %144 = vector.extract_strided_slice %8 {offsets = [20, 0], sizes = [4, 128], strides = [1, 1]} : vector<32x128xf32> to vector<4x128xf32>
    %145 = arith.truncf %136 : vector<4x32xf32> to vector<4x32xbf16>
    %cst_38 = arith.constant dense<0.000000e+00> : vector<4x128xf32>
    %146 = tpu.matmul %145, %9, %cst_38 {dimension_numbers = #tpu.dot_dimension_numbers<[1], [0], [0], [1], [0, 0, 1, 1], [], []>} : vector<4x32xbf16>, vector<32x128xbf16>, vector<4x128xf32> -> vector<4x128xf32>
    %147 = arith.addf %144, %146 : vector<4x128xf32>
    %148 = arith.negf %147 : vector<4x128xf32>
    %149 = math.exp %148 : vector<4x128xf32>
    %cst_39 = arith.constant 1.000000e+00 : f32
    %150 = vector.broadcast %cst_39 : f32 to vector<4x128xf32>
    %151 = arith.addf %150, %149 : vector<4x128xf32>
    %152 = arith.divf %150, %151 : vector<4x128xf32>
    %153 = vector.extract_strided_slice %152 {offsets = [0, 0], sizes = [4, 32], strides = [1, 1]} : vector<4x128xf32> to vector<4x32xf32>
    %154 = vector.extract_strided_slice %152 {offsets = [0, 32], sizes = [4, 32], strides = [1, 1]} : vector<4x128xf32> to vector<4x32xf32>
    %155 = vector.extract_strided_slice %152 {offsets = [0, 96], sizes = [4, 32], strides = [1, 1]} : vector<4x128xf32> to vector<4x32xf32>
    %156 = vector.extract_strided_slice %147 {offsets = [0, 64], sizes = [4, 32], strides = [1, 1]} : vector<4x128xf32> to vector<4x32xf32>
    %157 = math.tanh %156 : vector<4x32xf32>
    %158 = arith.mulf %154, %134 : vector<4x32xf32>
    %159 = arith.mulf %153, %157 : vector<4x32xf32>
    %160 = arith.addf %158, %159 : vector<4x32xf32>
    %161 = math.tanh %160 : vector<4x32xf32>
    %162 = arith.mulf %155, %161 : vector<4x32xf32>
    %cst_40 = arith.constant 5.000000e+00 : f32
    %163 = vector.broadcast %cst_40 : f32 to vector<4x1xf32>
    %164 = arith.cmpf ogt, %1, %163 : vector<4x1xf32>
    %165 = arith.extui %164 : vector<4x1xi1> to vector<4x1xi32>
    %166 = arith.sitofp %165 : vector<4x1xi32> to vector<4x1xf32>
    %167 = vector.broadcast %166 : vector<4x1xf32> to vector<4x32xf32>
    %168 = arith.mulf %162, %167 : vector<4x32xf32>
    %c20 = arith.constant 20 : index
    %c0_41 = arith.constant 0 : index
    %169 = vector.load %arg18[%c20, %c0_41] : memref<32x32xf32, #tpu.memory_space<vmem>>, vector<4x32xf32>
    tpu.vector_store %arg18[%c20, %c0_41], %168 {strides = array<i32>} : memref<32x32xf32, #tpu.memory_space<vmem>>, vector<4x32xf32>,
    %170 = vector.extract_strided_slice %8 {offsets = [24, 0], sizes = [4, 128], strides = [1, 1]} : vector<32x128xf32> to vector<4x128xf32>
    %171 = arith.truncf %162 : vector<4x32xf32> to vector<4x32xbf16>
    %cst_42 = arith.constant dense<0.000000e+00> : vector<4x128xf32>
    %172 = tpu.matmul %171, %9, %cst_42 {dimension_numbers = #tpu.dot_dimension_numbers<[1], [0], [0], [1], [0, 0, 1, 1], [], []>} : vector<4x32xbf16>, vector<32x128xbf16>, vector<4x128xf32> -> vector<4x128xf32>
    %173 = arith.addf %170, %172 : vector<4x128xf32>
    %174 = arith.negf %173 : vector<4x128xf32>
    %175 = math.exp %174 : vector<4x128xf32>
    %cst_43 = arith.constant 1.000000e+00 : f32
    %176 = vector.broadcast %cst_43 : f32 to vector<4x128xf32>
    %177 = arith.addf %176, %175 : vector<4x128xf32>
    %178 = arith.divf %176, %177 : vector<4x128xf32>
    %179 = vector.extract_strided_slice %178 {offsets = [0, 0], sizes = [4, 32], strides = [1, 1]} : vector<4x128xf32> to vector<4x32xf32>
    %180 = vector.extract_strided_slice %178 {offsets = [0, 32], sizes = [4, 32], strides = [1, 1]} : vector<4x128xf32> to vector<4x32xf32>
    %181 = vector.extract_strided_slice %178 {offsets = [0, 96], sizes = [4, 32], strides = [1, 1]} : vector<4x128xf32> to vector<4x32xf32>
    %182 = vector.extract_strided_slice %173 {offsets = [0, 64], sizes = [4, 32], strides = [1, 1]} : vector<4x128xf32> to vector<4x32xf32>
    %183 = math.tanh %182 : vector<4x32xf32>
    %184 = arith.mulf %180, %160 : vector<4x32xf32>
    %185 = arith.mulf %179, %183 : vector<4x32xf32>
    %186 = arith.addf %184, %185 : vector<4x32xf32>
    %187 = math.tanh %186 : vector<4x32xf32>
    %188 = arith.mulf %181, %187 : vector<4x32xf32>
    %cst_44 = arith.constant 6.000000e+00 : f32
    %189 = vector.broadcast %cst_44 : f32 to vector<4x1xf32>
    %190 = arith.cmpf ogt, %1, %189 : vector<4x1xf32>
    %191 = arith.extui %190 : vector<4x1xi1> to vector<4x1xi32>
    %192 = arith.sitofp %191 : vector<4x1xi32> to vector<4x1xf32>
    %193 = vector.broadcast %192 : vector<4x1xf32> to vector<4x32xf32>
    %194 = arith.mulf %188, %193 : vector<4x32xf32>
    %c24 = arith.constant 24 : index
    %c0_45 = arith.constant 0 : index
    %195 = vector.load %arg18[%c24, %c0_45] : memref<32x32xf32, #tpu.memory_space<vmem>>, vector<4x32xf32>
    tpu.vector_store %arg18[%c24, %c0_45], %194 {strides = array<i32>} : memref<32x32xf32, #tpu.memory_space<vmem>>, vector<4x32xf32>,
    %196 = vector.extract_strided_slice %8 {offsets = [28, 0], sizes = [4, 128], strides = [1, 1]} : vector<32x128xf32> to vector<4x128xf32>
    %197 = arith.truncf %188 : vector<4x32xf32> to vector<4x32xbf16>
    %cst_46 = arith.constant dense<0.000000e+00> : vector<4x128xf32>
    %198 = tpu.matmul %197, %9, %cst_46 {dimension_numbers = #tpu.dot_dimension_numbers<[1], [0], [0], [1], [0, 0, 1, 1], [], []>} : vector<4x32xbf16>, vector<32x128xbf16>, vector<4x128xf32> -> vector<4x128xf32>
    %199 = arith.addf %196, %198 : vector<4x128xf32>
    %200 = arith.negf %199 : vector<4x128xf32>
    %201 = math.exp %200 : vector<4x128xf32>
    %cst_47 = arith.constant 1.000000e+00 : f32
    %202 = vector.broadcast %cst_47 : f32 to vector<4x128xf32>
    %203 = arith.addf %202, %201 : vector<4x128xf32>
    %204 = arith.divf %202, %203 : vector<4x128xf32>
    %205 = vector.extract_strided_slice %204 {offsets = [0, 0], sizes = [4, 32], strides = [1, 1]} : vector<4x128xf32> to vector<4x32xf32>
    %206 = vector.extract_strided_slice %204 {offsets = [0, 32], sizes = [4, 32], strides = [1, 1]} : vector<4x128xf32> to vector<4x32xf32>
    %207 = vector.extract_strided_slice %204 {offsets = [0, 96], sizes = [4, 32], strides = [1, 1]} : vector<4x128xf32> to vector<4x32xf32>
    %208 = vector.extract_strided_slice %199 {offsets = [0, 64], sizes = [4, 32], strides = [1, 1]} : vector<4x128xf32> to vector<4x32xf32>
    %209 = math.tanh %208 : vector<4x32xf32>
    %210 = arith.mulf %206, %186 : vector<4x32xf32>
    %211 = arith.mulf %205, %209 : vector<4x32xf32>
    %212 = arith.addf %210, %211 : vector<4x32xf32>
    %213 = math.tanh %212 : vector<4x32xf32>
    %214 = arith.mulf %207, %213 : vector<4x32xf32>
    %cst_48 = arith.constant 7.000000e+00 : f32
    %215 = vector.broadcast %cst_48 : f32 to vector<4x1xf32>
    %216 = arith.cmpf ogt, %1, %215 : vector<4x1xf32>
    %217 = arith.extui %216 : vector<4x1xi1> to vector<4x1xi32>
    %218 = arith.sitofp %217 : vector<4x1xi32> to vector<4x1xf32>
    %219 = vector.broadcast %218 : vector<4x1xf32> to vector<4x32xf32>
    %220 = arith.mulf %214, %219 : vector<4x32xf32>
    %c28 = arith.constant 28 : index
    %c0_49 = arith.constant 0 : index
    %221 = vector.load %arg18[%c28, %c0_49] : memref<32x32xf32, #tpu.memory_space<vmem>>, vector<4x32xf32>
    tpu.vector_store %arg18[%c28, %c0_49], %220 {strides = array<i32>} : memref<32x32xf32, #tpu.memory_space<vmem>>, vector<4x32xf32>,
    %c0_50 = arith.constant 0 : index
    %c0_51 = arith.constant 0 : index
    %222 = tpu.strided_load %arg18[%c0_50, %c0_51] {strides = array<i32: 4, 1>} : memref<32x32xf32, #tpu.memory_space<vmem>>, vector<8x32xf32>
    %c2 = arith.constant 2 : index
    %c0_52 = arith.constant 0 : index
    %223 = tpu.strided_load %arg18[%c2, %c0_52] {strides = array<i32: 4, 1>} : memref<32x32xf32, #tpu.memory_space<vmem>>, vector<8x32xf32>
    %224 = arith.truncf %222 : vector<8x32xf32> to vector<8x32xbf16>
    %225 = arith.truncf %223 : vector<8x32xf32> to vector<8x32xbf16>
    "tpu.trace_start"() <{level = 10 : i32, message = "qd,kd->qk"}> : () -> ()
    %cst_53 = arith.constant dense<0.000000e+00> : vector<8x8xf32>
    %226 = tpu.matmul %224, %225, %cst_53 {dimension_numbers = #tpu.dot_dimension_numbers<[1], [1], [0], [0], [0, 0, 1, 0], [], []>} : vector<8x32xbf16>, vector<8x32xbf16>, vector<8x8xf32> -> vector<8x8xf32>
    "tpu.trace_stop"() : () -> ()
    %227 = arith.truncf %223 : vector<8x32xf32> to vector<8x32xbf16>
    %228 = arith.truncf %222 : vector<8x32xf32> to vector<8x32xbf16>
    "tpu.trace_start"() <{level = 10 : i32, message = "qd,kd->qk"}> : () -> ()
    %cst_54 = arith.constant dense<0.000000e+00> : vector<8x8xf32>
    %229 = tpu.matmul %227, %228, %cst_54 {dimension_numbers = #tpu.dot_dimension_numbers<[1], [1], [0], [0], [0, 0, 1, 0], [], []>} : vector<8x32xbf16>, vector<8x32xbf16>, vector<8x8xf32> -> vector<8x8xf32>
    "tpu.trace_stop"() : () -> ()
    %cst_55 = arith.constant dense<0xFF800000> : vector<8xf32>
    %230 = vector.multi_reduction <maximumf>, %226, %cst_55 [1] : vector<8x8xf32> to vector<8xf32>
    %cst_56 = arith.constant 0xFF800000 : f32
    %231 = vector.broadcast %cst_56 : f32 to vector<8xf32>
    %232 = arith.maximumf %231, %230 : vector<8xf32>
    %233 = vector.shape_cast %232 : vector<8xf32> to vector<8x1xf32>
    %234 = vector.broadcast %233 : vector<8x1xf32> to vector<8x8xf32>
    %235 = arith.subf %226, %234 : vector<8x8xf32>
    %236 = math.exp %235 : vector<8x8xf32>
    %cst_57 = arith.constant dense<0.000000e+00> : vector<8xf32>
    %237 = vector.multi_reduction <add>, %236, %cst_57 [1] : vector<8x8xf32> to vector<8xf32>
    %238 = vector.shape_cast %237 : vector<8xf32> to vector<8x1xf32>
    %239 = vector.broadcast %238 : vector<8x1xf32> to vector<8x8xf32>
    %240 = arith.divf %236, %239 : vector<8x8xf32>
    %241 = arith.truncf %240 : vector<8x8xf32> to vector<8x8xbf16>
    %242 = arith.truncf %222 : vector<8x32xf32> to vector<8x32xbf16>
    %cst_58 = arith.constant dense<0.000000e+00> : vector<8x32xf32>
    %243 = tpu.matmul %241, %242, %cst_58 {dimension_numbers = #tpu.dot_dimension_numbers<[1], [0], [0], [1], [0, 0, 1, 1], [], []>} : vector<8x8xbf16>, vector<8x32xbf16>, vector<8x32xf32> -> vector<8x32xf32>
    %cst_59 = arith.constant dense<0xFF800000> : vector<8xf32>
    %244 = vector.multi_reduction <maximumf>, %229, %cst_59 [1] : vector<8x8xf32> to vector<8xf32>
    %cst_60 = arith.constant 0xFF800000 : f32
    %245 = vector.broadcast %cst_60 : f32 to vector<8xf32>
    %246 = arith.maximumf %245, %244 : vector<8xf32>
    %247 = vector.shape_cast %246 : vector<8xf32> to vector<8x1xf32>
    %248 = vector.broadcast %247 : vector<8x1xf32> to vector<8x8xf32>
    %249 = arith.subf %229, %248 : vector<8x8xf32>
    %250 = math.exp %249 : vector<8x8xf32>
    %cst_61 = arith.constant dense<0.000000e+00> : vector<8xf32>
    %251 = vector.multi_reduction <add>, %250, %cst_61 [1] : vector<8x8xf32> to vector<8xf32>
    %252 = vector.shape_cast %251 : vector<8xf32> to vector<8x1xf32>
    %253 = vector.broadcast %252 : vector<8x1xf32> to vector<8x8xf32>
    %254 = arith.divf %250, %253 : vector<8x8xf32>
    %255 = arith.truncf %254 : vector<8x8xf32> to vector<8x8xbf16>
    %256 = arith.truncf %223 : vector<8x32xf32> to vector<8x32xbf16>
    %cst_62 = arith.constant dense<0.000000e+00> : vector<8x32xf32>
    %257 = tpu.matmul %255, %256, %cst_62 {dimension_numbers = #tpu.dot_dimension_numbers<[1], [0], [0], [1], [0, 0, 1, 1], [], []>} : vector<8x8xbf16>, vector<8x32xbf16>, vector<8x32xf32> -> vector<8x32xf32>
    %258 = arith.subf %222, %243 : vector<8x32xf32>
    %259 = arith.mulf %222, %243 : vector<8x32xf32>
    %260 = tpu.concatenate %222, %243, %258, %259 in 1 : vector<8x32xf32>, vector<8x32xf32>, vector<8x32xf32>, vector<8x32xf32> -> vector<8x128xf32>
    %261 = arith.subf %223, %257 : vector<8x32xf32>
    %262 = arith.mulf %223, %257 : vector<8x32xf32>
    %263 = tpu.concatenate %223, %257, %261, %262 in 1 : vector<8x32xf32>, vector<8x32xf32>, vector<8x32xf32>, vector<8x32xf32> -> vector<8x128xf32>
    %c0_63 = arith.constant 0 : index
    %c0_64 = arith.constant 0 : index
    %264 = vector.load %arg19[%c0_63, %c0_64] : memref<32x128xf32, #tpu.memory_space<vmem>>, vector<8x128xf32>
    tpu.vector_store %arg19[%c0_63, %c0_64], %260 {strides = array<i32>} : memref<32x128xf32, #tpu.memory_space<vmem>>, vector<8x128xf32>,
    %c16_65 = arith.constant 16 : index
    %c0_66 = arith.constant 0 : index
    %265 = vector.load %arg19[%c16_65, %c0_66] : memref<32x128xf32, #tpu.memory_space<vmem>>, vector<8x128xf32>
    tpu.vector_store %arg19[%c16_65, %c0_66], %263 {strides = array<i32>} : memref<32x128xf32, #tpu.memory_space<vmem>>, vector<8x128xf32>,
    %c1 = arith.constant 1 : index
    %c0_67 = arith.constant 0 : index
    %266 = tpu.strided_load %arg18[%c1, %c0_67] {strides = array<i32: 4, 1>} : memref<32x32xf32, #tpu.memory_space<vmem>>, vector<8x32xf32>
    %c3 = arith.constant 3 : index
    %c0_68 = arith.constant 0 : index
    %267 = tpu.strided_load %arg18[%c3, %c0_68] {strides = array<i32: 4, 1>} : memref<32x32xf32, #tpu.memory_space<vmem>>, vector<8x32xf32>
    %268 = arith.truncf %266 : vector<8x32xf32> to vector<8x32xbf16>
    %269 = arith.truncf %267 : vector<8x32xf32> to vector<8x32xbf16>
    "tpu.trace_start"() <{level = 10 : i32, message = "qd,kd->qk"}> : () -> ()
    %cst_69 = arith.constant dense<0.000000e+00> : vector<8x8xf32>
    %270 = tpu.matmul %268, %269, %cst_69 {dimension_numbers = #tpu.dot_dimension_numbers<[1], [1], [0], [0], [0, 0, 1, 0], [], []>} : vector<8x32xbf16>, vector<8x32xbf16>, vector<8x8xf32> -> vector<8x8xf32>
    "tpu.trace_stop"() : () -> ()
    %271 = arith.truncf %267 : vector<8x32xf32> to vector<8x32xbf16>
    %272 = arith.truncf %266 : vector<8x32xf32> to vector<8x32xbf16>
    "tpu.trace_start"() <{level = 10 : i32, message = "qd,kd->qk"}> : () -> ()
    %cst_70 = arith.constant dense<0.000000e+00> : vector<8x8xf32>
    %273 = tpu.matmul %271, %272, %cst_70 {dimension_numbers = #tpu.dot_dimension_numbers<[1], [1], [0], [0], [0, 0, 1, 0], [], []>} : vector<8x32xbf16>, vector<8x32xbf16>, vector<8x8xf32> -> vector<8x8xf32>
    "tpu.trace_stop"() : () -> ()
    %cst_71 = arith.constant dense<0xFF800000> : vector<8xf32>
    %274 = vector.multi_reduction <maximumf>, %270, %cst_71 [1] : vector<8x8xf32> to vector<8xf32>
    %cst_72 = arith.constant 0xFF800000 : f32
    %275 = vector.broadcast %cst_72 : f32 to vector<8xf32>
    %276 = arith.maximumf %275, %274 : vector<8xf32>
    %277 = vector.shape_cast %276 : vector<8xf32> to vector<8x1xf32>
    %278 = vector.broadcast %277 : vector<8x1xf32> to vector<8x8xf32>
    %279 = arith.subf %270, %278 : vector<8x8xf32>
    %280 = math.exp %279 : vector<8x8xf32>
    %cst_73 = arith.constant dense<0.000000e+00> : vector<8xf32>
    %281 = vector.multi_reduction <add>, %280, %cst_73 [1] : vector<8x8xf32> to vector<8xf32>
    %282 = vector.shape_cast %281 : vector<8xf32> to vector<8x1xf32>
    %283 = vector.broadcast %282 : vector<8x1xf32> to vector<8x8xf32>
    %284 = arith.divf %280, %283 : vector<8x8xf32>
    %285 = arith.truncf %284 : vector<8x8xf32> to vector<8x8xbf16>
    %286 = arith.truncf %266 : vector<8x32xf32> to vector<8x32xbf16>
    %cst_74 = arith.constant dense<0.000000e+00> : vector<8x32xf32>
    %287 = tpu.matmul %285, %286, %cst_74 {dimension_numbers = #tpu.dot_dimension_numbers<[1], [0], [0], [1], [0, 0, 1, 1], [], []>} : vector<8x8xbf16>, vector<8x32xbf16>, vector<8x32xf32> -> vector<8x32xf32>
    %cst_75 = arith.constant dense<0xFF800000> : vector<8xf32>
    %288 = vector.multi_reduction <maximumf>, %273, %cst_75 [1] : vector<8x8xf32> to vector<8xf32>
    %cst_76 = arith.constant 0xFF800000 : f32
    %289 = vector.broadcast %cst_76 : f32 to vector<8xf32>
    %290 = arith.maximumf %289, %288 : vector<8xf32>
    %291 = vector.shape_cast %290 : vector<8xf32> to vector<8x1xf32>
    %292 = vector.broadcast %291 : vector<8x1xf32> to vector<8x8xf32>
    %293 = arith.subf %273, %292 : vector<8x8xf32>
    %294 = math.exp %293 : vector<8x8xf32>
    %cst_77 = arith.constant dense<0.000000e+00> : vector<8xf32>
    %295 = vector.multi_reduction <add>, %294, %cst_77 [1] : vector<8x8xf32> to vector<8xf32>
    %296 = vector.shape_cast %295 : vector<8xf32> to vector<8x1xf32>
    %297 = vector.broadcast %296 : vector<8x1xf32> to vector<8x8xf32>
    %298 = arith.divf %294, %297 : vector<8x8xf32>
    %299 = arith.truncf %298 : vector<8x8xf32> to vector<8x8xbf16>
    %300 = arith.truncf %267 : vector<8x32xf32> to vector<8x32xbf16>
    %cst_78 = arith.constant dense<0.000000e+00> : vector<8x32xf32>
    %301 = tpu.matmul %299, %300, %cst_78 {dimension_numbers = #tpu.dot_dimension_numbers<[1], [0], [0], [1], [0, 0, 1, 1], [], []>} : vector<8x8xbf16>, vector<8x32xbf16>, vector<8x32xf32> -> vector<8x32xf32>
    %302 = arith.subf %266, %287 : vector<8x32xf32>
    %303 = arith.mulf %266, %287 : vector<8x32xf32>
    %304 = tpu.concatenate %266, %287, %302, %303 in 1 : vector<8x32xf32>, vector<8x32xf32>, vector<8x32xf32>, vector<8x32xf32> -> vector<8x128xf32>
    %305 = arith.subf %267, %301 : vector<8x32xf32>
    %306 = arith.mulf %267, %301 : vector<8x32xf32>
    %307 = tpu.concatenate %267, %301, %305, %306 in 1 : vector<8x32xf32>, vector<8x32xf32>, vector<8x32xf32>, vector<8x32xf32> -> vector<8x128xf32>
    %c8_79 = arith.constant 8 : index
    %c0_80 = arith.constant 0 : index
    %308 = vector.load %arg19[%c8_79, %c0_80] : memref<32x128xf32, #tpu.memory_space<vmem>>, vector<8x128xf32>
    tpu.vector_store %arg19[%c8_79, %c0_80], %304 {strides = array<i32>} : memref<32x128xf32, #tpu.memory_space<vmem>>, vector<8x128xf32>,
    %c24_81 = arith.constant 24 : index
    %c0_82 = arith.constant 0 : index
    %309 = vector.load %arg19[%c24_81, %c0_82] : memref<32x128xf32, #tpu.memory_space<vmem>>, vector<8x128xf32>
    tpu.vector_store %arg19[%c24_81, %c0_82], %307 {strides = array<i32>} : memref<32x128xf32, #tpu.memory_space<vmem>>, vector<8x128xf32>,
    %c0_83 = arith.constant 0 : index
    %c0_84 = arith.constant 0 : index
    %310 = vector.load %arg19[%c0_83, %c0_84] : memref<32x128xf32, #tpu.memory_space<vmem>>, vector<32x128xf32>
    %c0_85 = arith.constant 0 : index
    %c0_86 = arith.constant 0 : index
    %311 = vector.load %arg8[%c0_85, %c0_86] : memref<128x32xbf16, #tpu.memory_space<vmem>>, vector<128x32xbf16>
    %312 = arith.truncf %310 : vector<32x128xf32> to vector<32x128xbf16>
    %cst_87 = arith.constant dense<0.000000e+00> : vector<32x32xf32>
    %313 = tpu.matmul %312, %311, %cst_87 {dimension_numbers = #tpu.dot_dimension_numbers<[1], [0], [0], [1], [0, 0, 1, 1], [], []>} : vector<32x128xbf16>, vector<128x32xbf16>, vector<32x32xf32> -> vector<32x32xf32>
    %c0_88 = arith.constant 0 : index
    %c0_89 = arith.constant 0 : index
    %314 = vector.load %arg9[%c0_88, %c0_89] : memref<1x32xf32, #tpu.memory_space<vmem>>, vector<1x32xf32>
    %315 = vector.broadcast %314 : vector<1x32xf32> to vector<32x32xf32>
    %316 = arith.addf %313, %315 : vector<32x32xf32>
    %cst_90 = arith.constant 0.000000e+00 : f32
    %317 = vector.broadcast %cst_90 : f32 to vector<32x32xf32>
    %318 = arith.maximumf %316, %317 : vector<32x32xf32>
    %c0_91 = arith.constant 0 : index
    %c0_92 = arith.constant 0 : index
    %319 = vector.load %arg10[%c0_91, %c0_92] : memref<32x128xbf16, #tpu.memory_space<vmem>>, vector<32x128xbf16>
    %320 = arith.truncf %318 : vector<32x32xf32> to vector<32x32xbf16>
    %cst_93 = arith.constant dense<0.000000e+00> : vector<32x128xf32>
    %321 = tpu.matmul %320, %319, %cst_93 {dimension_numbers = #tpu.dot_dimension_numbers<[1], [0], [0], [1], [0, 0, 1, 1], [], []>} : vector<32x32xbf16>, vector<32x128xbf16>, vector<32x128xf32> -> vector<32x128xf32>
    %c0_94 = arith.constant 0 : index
    %c0_95 = arith.constant 0 : index
    %322 = vector.load %arg12[%c0_94, %c0_95] : memref<1x128xf32, #tpu.memory_space<vmem>>, vector<1x128xf32>
    %323 = vector.broadcast %322 : vector<1x128xf32> to vector<32x128xf32>
    %324 = arith.addf %321, %323 : vector<32x128xf32>
    %c0_96 = arith.constant 0 : index
    %c0_97 = arith.constant 0 : index
    %325 = vector.load %arg20[%c0_96, %c0_97] : memref<32x128xf32, #tpu.memory_space<vmem>>, vector<32x128xf32>
    tpu.vector_store %arg20[%c0_96, %c0_97], %324 {strides = array<i32>} : memref<32x128xf32, #tpu.memory_space<vmem>>, vector<32x128xf32>,
    %c0_98 = arith.constant 0 : index
    %c0_99 = arith.constant 0 : index
    %326 = vector.load %arg11[%c0_98, %c0_99] : memref<32x128xbf16, #tpu.memory_space<vmem>>, vector<32x128xbf16>
    %cst_100 = arith.constant 0.000000e+00 : f32
    %327 = vector.broadcast %cst_100 : f32 to vector<4x32xf32>
    %cst_101 = arith.constant 0.000000e+00 : f32
    %328 = vector.broadcast %cst_101 : f32 to vector<4x32xf32>
    %cst_102 = arith.constant 0.000000e+00 : f32
    %329 = vector.broadcast %cst_102 : f32 to vector<4x32xf32>
    %cst_103 = arith.constant 0xFF800000 : f32
    %330 = vector.broadcast %cst_103 : f32 to vector<4x32xf32>
    %c0_104 = arith.constant 0 : index
    %c0_105 = arith.constant 0 : index
    %331 = tpu.strided_load %arg20[%c0_104, %c0_105] {strides = array<i32: 8, 1>} : memref<32x128xf32, #tpu.memory_space<vmem>>, vector<4x128xf32>
    %332 = arith.truncf %327 : vector<4x32xf32> to vector<4x32xbf16>
    %cst_106 = arith.constant dense<0.000000e+00> : vector<4x128xf32>
    %333 = tpu.matmul %332, %326, %cst_106 {dimension_numbers = #tpu.dot_dimension_numbers<[1], [0], [0], [1], [0, 0, 1, 1], [], []>} : vector<4x32xbf16>, vector<32x128xbf16>, vector<4x128xf32> -> vector<4x128xf32>
    %334 = arith.addf %331, %333 : vector<4x128xf32>
    %335 = arith.negf %334 : vector<4x128xf32>
    %336 = math.exp %335 : vector<4x128xf32>
    %cst_107 = arith.constant 1.000000e+00 : f32
    %337 = vector.broadcast %cst_107 : f32 to vector<4x128xf32>
    %338 = arith.addf %337, %336 : vector<4x128xf32>
    %339 = arith.divf %337, %338 : vector<4x128xf32>
    %340 = vector.extract_strided_slice %339 {offsets = [0, 0], sizes = [4, 32], strides = [1, 1]} : vector<4x128xf32> to vector<4x32xf32>
    %341 = vector.extract_strided_slice %339 {offsets = [0, 32], sizes = [4, 32], strides = [1, 1]} : vector<4x128xf32> to vector<4x32xf32>
    %342 = vector.extract_strided_slice %339 {offsets = [0, 96], sizes = [4, 32], strides = [1, 1]} : vector<4x128xf32> to vector<4x32xf32>
    %343 = vector.extract_strided_slice %334 {offsets = [0, 64], sizes = [4, 32], strides = [1, 1]} : vector<4x128xf32> to vector<4x32xf32>
    %344 = math.tanh %343 : vector<4x32xf32>
    %345 = arith.mulf %341, %328 : vector<4x32xf32>
    %346 = arith.mulf %340, %344 : vector<4x32xf32>
    %347 = arith.addf %345, %346 : vector<4x32xf32>
    %348 = math.tanh %347 : vector<4x32xf32>
    %349 = arith.mulf %342, %348 : vector<4x32xf32>
    %cst_108 = arith.constant 0.000000e+00 : f32
    %350 = vector.broadcast %cst_108 : f32 to vector<4x1xf32>
    %351 = arith.cmpf ogt, %1, %350 : vector<4x1xf32>
    %352 = arith.extui %351 : vector<4x1xi1> to vector<4x1xi32>
    %353 = arith.sitofp %352 : vector<4x1xi32> to vector<4x1xf32>
    %354 = vector.broadcast %353 : vector<4x1xf32> to vector<4x32xf32>
    %355 = arith.mulf %349, %354 : vector<4x32xf32>
    %356 = arith.addf %329, %355 : vector<4x32xf32>
    %357 = arith.maximumf %330, %349 : vector<4x32xf32>
    %c1_109 = arith.constant 1 : index
    %c0_110 = arith.constant 0 : index
    %358 = tpu.strided_load %arg20[%c1_109, %c0_110] {strides = array<i32: 8, 1>} : memref<32x128xf32, #tpu.memory_space<vmem>>, vector<4x128xf32>
    %359 = arith.truncf %349 : vector<4x32xf32> to vector<4x32xbf16>
    %cst_111 = arith.constant dense<0.000000e+00> : vector<4x128xf32>
    %360 = tpu.matmul %359, %326, %cst_111 {dimension_numbers = #tpu.dot_dimension_numbers<[1], [0], [0], [1], [0, 0, 1, 1], [], []>} : vector<4x32xbf16>, vector<32x128xbf16>, vector<4x128xf32> -> vector<4x128xf32>
    %361 = arith.addf %358, %360 : vector<4x128xf32>
    %362 = arith.negf %361 : vector<4x128xf32>
    %363 = math.exp %362 : vector<4x128xf32>
    %cst_112 = arith.constant 1.000000e+00 : f32
    %364 = vector.broadcast %cst_112 : f32 to vector<4x128xf32>
    %365 = arith.addf %364, %363 : vector<4x128xf32>
    %366 = arith.divf %364, %365 : vector<4x128xf32>
    %367 = vector.extract_strided_slice %366 {offsets = [0, 0], sizes = [4, 32], strides = [1, 1]} : vector<4x128xf32> to vector<4x32xf32>
    %368 = vector.extract_strided_slice %366 {offsets = [0, 32], sizes = [4, 32], strides = [1, 1]} : vector<4x128xf32> to vector<4x32xf32>
    %369 = vector.extract_strided_slice %366 {offsets = [0, 96], sizes = [4, 32], strides = [1, 1]} : vector<4x128xf32> to vector<4x32xf32>
    %370 = vector.extract_strided_slice %361 {offsets = [0, 64], sizes = [4, 32], strides = [1, 1]} : vector<4x128xf32> to vector<4x32xf32>
    %371 = math.tanh %370 : vector<4x32xf32>
    %372 = arith.mulf %368, %347 : vector<4x32xf32>
    %373 = arith.mulf %367, %371 : vector<4x32xf32>
    %374 = arith.addf %372, %373 : vector<4x32xf32>
    %375 = math.tanh %374 : vector<4x32xf32>
    %376 = arith.mulf %369, %375 : vector<4x32xf32>
    %cst_113 = arith.constant 1.000000e+00 : f32
    %377 = vector.broadcast %cst_113 : f32 to vector<4x1xf32>
    %378 = arith.cmpf ogt, %1, %377 : vector<4x1xf32>
    %379 = arith.extui %378 : vector<4x1xi1> to vector<4x1xi32>
    %380 = arith.sitofp %379 : vector<4x1xi32> to vector<4x1xf32>
    %381 = vector.broadcast %380 : vector<4x1xf32> to vector<4x32xf32>
    %382 = arith.mulf %376, %381 : vector<4x32xf32>
    %383 = arith.addf %356, %382 : vector<4x32xf32>
    %384 = arith.maximumf %357, %376 : vector<4x32xf32>
    %c2_114 = arith.constant 2 : index
    %c0_115 = arith.constant 0 : index
    %385 = tpu.strided_load %arg20[%c2_114, %c0_115] {strides = array<i32: 8, 1>} : memref<32x128xf32, #tpu.memory_space<vmem>>, vector<4x128xf32>
    %386 = arith.truncf %376 : vector<4x32xf32> to vector<4x32xbf16>
    %cst_116 = arith.constant dense<0.000000e+00> : vector<4x128xf32>
    %387 = tpu.matmul %386, %326, %cst_116 {dimension_numbers = #tpu.dot_dimension_numbers<[1], [0], [0], [1], [0, 0, 1, 1], [], []>} : vector<4x32xbf16>, vector<32x128xbf16>, vector<4x128xf32> -> vector<4x128xf32>
    %388 = arith.addf %385, %387 : vector<4x128xf32>
    %389 = arith.negf %388 : vector<4x128xf32>
    %390 = math.exp %389 : vector<4x128xf32>
    %cst_117 = arith.constant 1.000000e+00 : f32
    %391 = vector.broadcast %cst_117 : f32 to vector<4x128xf32>
    %392 = arith.addf %391, %390 : vector<4x128xf32>
    %393 = arith.divf %391, %392 : vector<4x128xf32>
    %394 = vector.extract_strided_slice %393 {offsets = [0, 0], sizes = [4, 32], strides = [1, 1]} : vector<4x128xf32> to vector<4x32xf32>
    %395 = vector.extract_strided_slice %393 {offsets = [0, 32], sizes = [4, 32], strides = [1, 1]} : vector<4x128xf32> to vector<4x32xf32>
    %396 = vector.extract_strided_slice %393 {offsets = [0, 96], sizes = [4, 32], strides = [1, 1]} : vector<4x128xf32> to vector<4x32xf32>
    %397 = vector.extract_strided_slice %388 {offsets = [0, 64], sizes = [4, 32], strides = [1, 1]} : vector<4x128xf32> to vector<4x32xf32>
    %398 = math.tanh %397 : vector<4x32xf32>
    %399 = arith.mulf %395, %374 : vector<4x32xf32>
    %400 = arith.mulf %394, %398 : vector<4x32xf32>
    %401 = arith.addf %399, %400 : vector<4x32xf32>
    %402 = math.tanh %401 : vector<4x32xf32>
    %403 = arith.mulf %396, %402 : vector<4x32xf32>
    %cst_118 = arith.constant 2.000000e+00 : f32
    %404 = vector.broadcast %cst_118 : f32 to vector<4x1xf32>
    %405 = arith.cmpf ogt, %1, %404 : vector<4x1xf32>
    %406 = arith.extui %405 : vector<4x1xi1> to vector<4x1xi32>
    %407 = arith.sitofp %406 : vector<4x1xi32> to vector<4x1xf32>
    %408 = vector.broadcast %407 : vector<4x1xf32> to vector<4x32xf32>
    %409 = arith.mulf %403, %408 : vector<4x32xf32>
    %410 = arith.addf %383, %409 : vector<4x32xf32>
    %411 = arith.maximumf %384, %403 : vector<4x32xf32>
    %c3_119 = arith.constant 3 : index
    %c0_120 = arith.constant 0 : index
    %412 = tpu.strided_load %arg20[%c3_119, %c0_120] {strides = array<i32: 8, 1>} : memref<32x128xf32, #tpu.memory_space<vmem>>, vector<4x128xf32>
    %413 = arith.truncf %403 : vector<4x32xf32> to vector<4x32xbf16>
    %cst_121 = arith.constant dense<0.000000e+00> : vector<4x128xf32>
    %414 = tpu.matmul %413, %326, %cst_121 {dimension_numbers = #tpu.dot_dimension_numbers<[1], [0], [0], [1], [0, 0, 1, 1], [], []>} : vector<4x32xbf16>, vector<32x128xbf16>, vector<4x128xf32> -> vector<4x128xf32>
    %415 = arith.addf %412, %414 : vector<4x128xf32>
    %416 = arith.negf %415 : vector<4x128xf32>
    %417 = math.exp %416 : vector<4x128xf32>
    %cst_122 = arith.constant 1.000000e+00 : f32
    %418 = vector.broadcast %cst_122 : f32 to vector<4x128xf32>
    %419 = arith.addf %418, %417 : vector<4x128xf32>
    %420 = arith.divf %418, %419 : vector<4x128xf32>
    %421 = vector.extract_strided_slice %420 {offsets = [0, 0], sizes = [4, 32], strides = [1, 1]} : vector<4x128xf32> to vector<4x32xf32>
    %422 = vector.extract_strided_slice %420 {offsets = [0, 32], sizes = [4, 32], strides = [1, 1]} : vector<4x128xf32> to vector<4x32xf32>
    %423 = vector.extract_strided_slice %420 {offsets = [0, 96], sizes = [4, 32], strides = [1, 1]} : vector<4x128xf32> to vector<4x32xf32>
    %424 = vector.extract_strided_slice %415 {offsets = [0, 64], sizes = [4, 32], strides = [1, 1]} : vector<4x128xf32> to vector<4x32xf32>
    %425 = math.tanh %424 : vector<4x32xf32>
    %426 = arith.mulf %422, %401 : vector<4x32xf32>
    %427 = arith.mulf %421, %425 : vector<4x32xf32>
    %428 = arith.addf %426, %427 : vector<4x32xf32>
    %429 = math.tanh %428 : vector<4x32xf32>
    %430 = arith.mulf %423, %429 : vector<4x32xf32>
    %cst_123 = arith.constant 3.000000e+00 : f32
    %431 = vector.broadcast %cst_123 : f32 to vector<4x1xf32>
    %432 = arith.cmpf ogt, %1, %431 : vector<4x1xf32>
    %433 = arith.extui %432 : vector<4x1xi1> to vector<4x1xi32>
    %434 = arith.sitofp %433 : vector<4x1xi32> to vector<4x1xf32>
    %435 = vector.broadcast %434 : vector<4x1xf32> to vector<4x32xf32>
    %436 = arith.mulf %430, %435 : vector<4x32xf32>
    %437 = arith.addf %410, %436 : vector<4x32xf32>
    %438 = arith.maximumf %411, %430 : vector<4x32xf32>
    %c4_124 = arith.constant 4 : index
    %c0_125 = arith.constant 0 : index
    %439 = tpu.strided_load %arg20[%c4_124, %c0_125] {strides = array<i32: 8, 1>} : memref<32x128xf32, #tpu.memory_space<vmem>>, vector<4x128xf32>
    %440 = arith.truncf %430 : vector<4x32xf32> to vector<4x32xbf16>
    %cst_126 = arith.constant dense<0.000000e+00> : vector<4x128xf32>
    %441 = tpu.matmul %440, %326, %cst_126 {dimension_numbers = #tpu.dot_dimension_numbers<[1], [0], [0], [1], [0, 0, 1, 1], [], []>} : vector<4x32xbf16>, vector<32x128xbf16>, vector<4x128xf32> -> vector<4x128xf32>
    %442 = arith.addf %439, %441 : vector<4x128xf32>
    %443 = arith.negf %442 : vector<4x128xf32>
    %444 = math.exp %443 : vector<4x128xf32>
    %cst_127 = arith.constant 1.000000e+00 : f32
    %445 = vector.broadcast %cst_127 : f32 to vector<4x128xf32>
    %446 = arith.addf %445, %444 : vector<4x128xf32>
    %447 = arith.divf %445, %446 : vector<4x128xf32>
    %448 = vector.extract_strided_slice %447 {offsets = [0, 0], sizes = [4, 32], strides = [1, 1]} : vector<4x128xf32> to vector<4x32xf32>
    %449 = vector.extract_strided_slice %447 {offsets = [0, 32], sizes = [4, 32], strides = [1, 1]} : vector<4x128xf32> to vector<4x32xf32>
    %450 = vector.extract_strided_slice %447 {offsets = [0, 96], sizes = [4, 32], strides = [1, 1]} : vector<4x128xf32> to vector<4x32xf32>
    %451 = vector.extract_strided_slice %442 {offsets = [0, 64], sizes = [4, 32], strides = [1, 1]} : vector<4x128xf32> to vector<4x32xf32>
    %452 = math.tanh %451 : vector<4x32xf32>
    %453 = arith.mulf %449, %428 : vector<4x32xf32>
    %454 = arith.mulf %448, %452 : vector<4x32xf32>
    %455 = arith.addf %453, %454 : vector<4x32xf32>
    %456 = math.tanh %455 : vector<4x32xf32>
    %457 = arith.mulf %450, %456 : vector<4x32xf32>
    %cst_128 = arith.constant 4.000000e+00 : f32
    %458 = vector.broadcast %cst_128 : f32 to vector<4x1xf32>
    %459 = arith.cmpf ogt, %1, %458 : vector<4x1xf32>
    %460 = arith.extui %459 : vector<4x1xi1> to vector<4x1xi32>
    %461 = arith.sitofp %460 : vector<4x1xi32> to vector<4x1xf32>
    %462 = vector.broadcast %461 : vector<4x1xf32> to vector<4x32xf32>
    %463 = arith.mulf %457, %462 : vector<4x32xf32>
    %464 = arith.addf %437, %463 : vector<4x32xf32>
    %465 = arith.maximumf %438, %457 : vector<4x32xf32>
    %c5 = arith.constant 5 : index
    %c0_129 = arith.constant 0 : index
    %466 = tpu.strided_load %arg20[%c5, %c0_129] {strides = array<i32: 8, 1>} : memref<32x128xf32, #tpu.memory_space<vmem>>, vector<4x128xf32>
    %467 = arith.truncf %457 : vector<4x32xf32> to vector<4x32xbf16>
    %cst_130 = arith.constant dense<0.000000e+00> : vector<4x128xf32>
    %468 = tpu.matmul %467, %326, %cst_130 {dimension_numbers = #tpu.dot_dimension_numbers<[1], [0], [0], [1], [0, 0, 1, 1], [], []>} : vector<4x32xbf16>, vector<32x128xbf16>, vector<4x128xf32> -> vector<4x128xf32>
    %469 = arith.addf %466, %468 : vector<4x128xf32>
    %470 = arith.negf %469 : vector<4x128xf32>
    %471 = math.exp %470 : vector<4x128xf32>
    %cst_131 = arith.constant 1.000000e+00 : f32
    %472 = vector.broadcast %cst_131 : f32 to vector<4x128xf32>
    %473 = arith.addf %472, %471 : vector<4x128xf32>
    %474 = arith.divf %472, %473 : vector<4x128xf32>
    %475 = vector.extract_strided_slice %474 {offsets = [0, 0], sizes = [4, 32], strides = [1, 1]} : vector<4x128xf32> to vector<4x32xf32>
    %476 = vector.extract_strided_slice %474 {offsets = [0, 32], sizes = [4, 32], strides = [1, 1]} : vector<4x128xf32> to vector<4x32xf32>
    %477 = vector.extract_strided_slice %474 {offsets = [0, 96], sizes = [4, 32], strides = [1, 1]} : vector<4x128xf32> to vector<4x32xf32>
    %478 = vector.extract_strided_slice %469 {offsets = [0, 64], sizes = [4, 32], strides = [1, 1]} : vector<4x128xf32> to vector<4x32xf32>
    %479 = math.tanh %478 : vector<4x32xf32>
    %480 = arith.mulf %476, %455 : vector<4x32xf32>
    %481 = arith.mulf %475, %479 : vector<4x32xf32>
    %482 = arith.addf %480, %481 : vector<4x32xf32>
    %483 = math.tanh %482 : vector<4x32xf32>
    %484 = arith.mulf %477, %483 : vector<4x32xf32>
    %cst_132 = arith.constant 5.000000e+00 : f32
    %485 = vector.broadcast %cst_132 : f32 to vector<4x1xf32>
    %486 = arith.cmpf ogt, %1, %485 : vector<4x1xf32>
    %487 = arith.extui %486 : vector<4x1xi1> to vector<4x1xi32>
    %488 = arith.sitofp %487 : vector<4x1xi32> to vector<4x1xf32>
    %489 = vector.broadcast %488 : vector<4x1xf32> to vector<4x32xf32>
    %490 = arith.mulf %484, %489 : vector<4x32xf32>
    %491 = arith.addf %464, %490 : vector<4x32xf32>
    %492 = arith.maximumf %465, %484 : vector<4x32xf32>
    %c6 = arith.constant 6 : index
    %c0_133 = arith.constant 0 : index
    %493 = tpu.strided_load %arg20[%c6, %c0_133] {strides = array<i32: 8, 1>} : memref<32x128xf32, #tpu.memory_space<vmem>>, vector<4x128xf32>
    %494 = arith.truncf %484 : vector<4x32xf32> to vector<4x32xbf16>
    %cst_134 = arith.constant dense<0.000000e+00> : vector<4x128xf32>
    %495 = tpu.matmul %494, %326, %cst_134 {dimension_numbers = #tpu.dot_dimension_numbers<[1], [0], [0], [1], [0, 0, 1, 1], [], []>} : vector<4x32xbf16>, vector<32x128xbf16>, vector<4x128xf32> -> vector<4x128xf32>
    %496 = arith.addf %493, %495 : vector<4x128xf32>
    %497 = arith.negf %496 : vector<4x128xf32>
    %498 = math.exp %497 : vector<4x128xf32>
    %cst_135 = arith.constant 1.000000e+00 : f32
    %499 = vector.broadcast %cst_135 : f32 to vector<4x128xf32>
    %500 = arith.addf %499, %498 : vector<4x128xf32>
    %501 = arith.divf %499, %500 : vector<4x128xf32>
    %502 = vector.extract_strided_slice %501 {offsets = [0, 0], sizes = [4, 32], strides = [1, 1]} : vector<4x128xf32> to vector<4x32xf32>
    %503 = vector.extract_strided_slice %501 {offsets = [0, 32], sizes = [4, 32], strides = [1, 1]} : vector<4x128xf32> to vector<4x32xf32>
    %504 = vector.extract_strided_slice %501 {offsets = [0, 96], sizes = [4, 32], strides = [1, 1]} : vector<4x128xf32> to vector<4x32xf32>
    %505 = vector.extract_strided_slice %496 {offsets = [0, 64], sizes = [4, 32], strides = [1, 1]} : vector<4x128xf32> to vector<4x32xf32>
    %506 = math.tanh %505 : vector<4x32xf32>
    %507 = arith.mulf %503, %482 : vector<4x32xf32>
    %508 = arith.mulf %502, %506 : vector<4x32xf32>
    %509 = arith.addf %507, %508 : vector<4x32xf32>
    %510 = math.tanh %509 : vector<4x32xf32>
    %511 = arith.mulf %504, %510 : vector<4x32xf32>
    %cst_136 = arith.constant 6.000000e+00 : f32
    %512 = vector.broadcast %cst_136 : f32 to vector<4x1xf32>
    %513 = arith.cmpf ogt, %1, %512 : vector<4x1xf32>
    %514 = arith.extui %513 : vector<4x1xi1> to vector<4x1xi32>
    %515 = arith.sitofp %514 : vector<4x1xi32> to vector<4x1xf32>
    %516 = vector.broadcast %515 : vector<4x1xf32> to vector<4x32xf32>
    %517 = arith.mulf %511, %516 : vector<4x32xf32>
    %518 = arith.addf %491, %517 : vector<4x32xf32>
    %519 = arith.maximumf %492, %511 : vector<4x32xf32>
    %c7 = arith.constant 7 : index
    %c0_137 = arith.constant 0 : index
    %520 = tpu.strided_load %arg20[%c7, %c0_137] {strides = array<i32: 8, 1>} : memref<32x128xf32, #tpu.memory_space<vmem>>, vector<4x128xf32>
    %521 = arith.truncf %511 : vector<4x32xf32> to vector<4x32xbf16>
    %cst_138 = arith.constant dense<0.000000e+00> : vector<4x128xf32>
    %522 = tpu.matmul %521, %326, %cst_138 {dimension_numbers = #tpu.dot_dimension_numbers<[1], [0], [0], [1], [0, 0, 1, 1], [], []>} : vector<4x32xbf16>, vector<32x128xbf16>, vector<4x128xf32> -> vector<4x128xf32>
    %523 = arith.addf %520, %522 : vector<4x128xf32>
    %524 = arith.negf %523 : vector<4x128xf32>
    %525 = math.exp %524 : vector<4x128xf32>
    %cst_139 = arith.constant 1.000000e+00 : f32
    %526 = vector.broadcast %cst_139 : f32 to vector<4x128xf32>
    %527 = arith.addf %526, %525 : vector<4x128xf32>
    %528 = arith.divf %526, %527 : vector<4x128xf32>
    %529 = vector.extract_strided_slice %528 {offsets = [0, 0], sizes = [4, 32], strides = [1, 1]} : vector<4x128xf32> to vector<4x32xf32>
    %530 = vector.extract_strided_slice %528 {offsets = [0, 32], sizes = [4, 32], strides = [1, 1]} : vector<4x128xf32> to vector<4x32xf32>
    %531 = vector.extract_strided_slice %528 {offsets = [0, 96], sizes = [4, 32], strides = [1, 1]} : vector<4x128xf32> to vector<4x32xf32>
    %532 = vector.extract_strided_slice %523 {offsets = [0, 64], sizes = [4, 32], strides = [1, 1]} : vector<4x128xf32> to vector<4x32xf32>
    %533 = math.tanh %532 : vector<4x32xf32>
    %534 = arith.mulf %530, %509 : vector<4x32xf32>
    %535 = arith.mulf %529, %533 : vector<4x32xf32>
    %536 = arith.addf %534, %535 : vector<4x32xf32>
    %537 = math.tanh %536 : vector<4x32xf32>
    %538 = arith.mulf %531, %537 : vector<4x32xf32>
    %cst_140 = arith.constant 7.000000e+00 : f32
    %539 = vector.broadcast %cst_140 : f32 to vector<4x1xf32>
    %540 = arith.cmpf ogt, %1, %539 : vector<4x1xf32>
    %541 = arith.extui %540 : vector<4x1xi1> to vector<4x1xi32>
    %542 = arith.sitofp %541 : vector<4x1xi32> to vector<4x1xf32>
    %543 = vector.broadcast %542 : vector<4x1xf32> to vector<4x32xf32>
    %544 = arith.mulf %538, %543 : vector<4x32xf32>
    %545 = arith.addf %518, %544 : vector<4x32xf32>
    %546 = arith.maximumf %519, %538 : vector<4x32xf32>
    %cst_141 = arith.constant 1.000000e+00 : f32
    %547 = vector.broadcast %cst_141 : f32 to vector<4x1xf32>
    %548 = arith.maximumf %1, %547 : vector<4x1xf32>
    %549 = vector.broadcast %548 : vector<4x1xf32> to vector<4x32xf32>
    %550 = arith.divf %545, %549 : vector<4x32xf32>
    %c0_142 = arith.constant 0 : index
    %c0_143 = arith.constant 0 : index
    %551 = vector.load %arg13[%c0_142, %c0_143] : memref<128x32xbf16, #tpu.memory_space<vmem>>, vector<128x32xbf16>
    %552 = vector.extract_strided_slice %550 {offsets = [0, 0], sizes = [2, 32], strides = [1, 1]} : vector<4x32xf32> to vector<2x32xf32>
    %553 = vector.extract_strided_slice %551 {offsets = [0, 0], sizes = [32, 32], strides = [1, 1]} : vector<128x32xbf16> to vector<32x32xbf16>
    %554 = arith.truncf %552 : vector<2x32xf32> to vector<2x32xbf16>
    %cst_144 = arith.constant dense<0.000000e+00> : vector<2x32xf32>
    %555 = tpu.matmul %554, %553, %cst_144 {dimension_numbers = #tpu.dot_dimension_numbers<[1], [0], [0], [1], [0, 0, 1, 1], [], []>} : vector<2x32xbf16>, vector<32x32xbf16>, vector<2x32xf32> -> vector<2x32xf32>
    %556 = vector.extract_strided_slice %546 {offsets = [0, 0], sizes = [2, 32], strides = [1, 1]} : vector<4x32xf32> to vector<2x32xf32>
    %557 = vector.extract_strided_slice %551 {offsets = [32, 0], sizes = [32, 32], strides = [1, 1]} : vector<128x32xbf16> to vector<32x32xbf16>
    %558 = arith.truncf %556 : vector<2x32xf32> to vector<2x32xbf16>
    %cst_145 = arith.constant dense<0.000000e+00> : vector<2x32xf32>
    %559 = tpu.matmul %558, %557, %cst_145 {dimension_numbers = #tpu.dot_dimension_numbers<[1], [0], [0], [1], [0, 0, 1, 1], [], []>} : vector<2x32xbf16>, vector<32x32xbf16>, vector<2x32xf32> -> vector<2x32xf32>
    %560 = arith.addf %555, %559 : vector<2x32xf32>
    %561 = vector.extract_strided_slice %550 {offsets = [2, 0], sizes = [2, 32], strides = [1, 1]} : vector<4x32xf32> to vector<2x32xf32>
    %562 = vector.extract_strided_slice %551 {offsets = [64, 0], sizes = [32, 32], strides = [1, 1]} : vector<128x32xbf16> to vector<32x32xbf16>
    %563 = arith.truncf %561 : vector<2x32xf32> to vector<2x32xbf16>
    %cst_146 = arith.constant dense<0.000000e+00> : vector<2x32xf32>
    %564 = tpu.matmul %563, %562, %cst_146 {dimension_numbers = #tpu.dot_dimension_numbers<[1], [0], [0], [1], [0, 0, 1, 1], [], []>} : vector<2x32xbf16>, vector<32x32xbf16>, vector<2x32xf32> -> vector<2x32xf32>
    %565 = arith.addf %560, %564 : vector<2x32xf32>
    %566 = vector.extract_strided_slice %546 {offsets = [2, 0], sizes = [2, 32], strides = [1, 1]} : vector<4x32xf32> to vector<2x32xf32>
    %567 = vector.extract_strided_slice %551 {offsets = [96, 0], sizes = [32, 32], strides = [1, 1]} : vector<128x32xbf16> to vector<32x32xbf16>
    %568 = arith.truncf %566 : vector<2x32xf32> to vector<2x32xbf16>
    %cst_147 = arith.constant dense<0.000000e+00> : vector<2x32xf32>
    %569 = tpu.matmul %568, %567, %cst_147 {dimension_numbers = #tpu.dot_dimension_numbers<[1], [0], [0], [1], [0, 0, 1, 1], [], []>} : vector<2x32xbf16>, vector<32x32xbf16>, vector<2x32xf32> -> vector<2x32xf32>
    %570 = arith.addf %565, %569 : vector<2x32xf32>
    %c0_148 = arith.constant 0 : index
    %c0_149 = arith.constant 0 : index
    %571 = vector.load %arg14[%c0_148, %c0_149] : memref<1x32xf32, #tpu.memory_space<vmem>>, vector<1x32xf32>
    %572 = vector.broadcast %571 : vector<1x32xf32> to vector<2x32xf32>
    %573 = arith.addf %570, %572 : vector<2x32xf32>
    %cst_150 = arith.constant 0.000000e+00 : f32
    %574 = vector.broadcast %cst_150 : f32 to vector<2x32xf32>
    %575 = arith.maximumf %573, %574 : vector<2x32xf32>
    %c0_151 = arith.constant 0 : index
    %c0_152 = arith.constant 0 : index
    %576 = vector.load %arg15[%c0_151, %c0_152] : memref<32x2xbf16, #tpu.memory_space<vmem>>, vector<32x2xbf16>
    %577 = arith.truncf %575 : vector<2x32xf32> to vector<2x32xbf16>
    %cst_153 = arith.constant dense<0.000000e+00> : vector<2x2xf32>
    %578 = tpu.matmul %577, %576, %cst_153 {dimension_numbers = #tpu.dot_dimension_numbers<[1], [0], [0], [1], [0, 0, 1, 1], [], []>} : vector<2x32xbf16>, vector<32x2xbf16>, vector<2x2xf32> -> vector<2x2xf32>
    %c0_154 = arith.constant 0 : index
    %c0_155 = arith.constant 0 : index
    %579 = vector.load %arg16[%c0_154, %c0_155] : memref<1x2xf32, #tpu.memory_space<vmem>>, vector<1x2xf32>
    %580 = vector.broadcast %579 : vector<1x2xf32> to vector<2x2xf32>
    %581 = arith.addf %578, %580 : vector<2x2xf32>
    %cst_156 = arith.constant dense<0xFF800000> : vector<2xf32>
    %582 = vector.multi_reduction <maximumf>, %581, %cst_156 [1] : vector<2x2xf32> to vector<2xf32>
    %cst_157 = arith.constant 0xFF800000 : f32
    %583 = vector.broadcast %cst_157 : f32 to vector<2xf32>
    %584 = arith.maximumf %583, %582 : vector<2xf32>
    %585 = vector.shape_cast %584 : vector<2xf32> to vector<2x1xf32>
    %586 = vector.broadcast %585 : vector<2x1xf32> to vector<2x2xf32>
    %587 = arith.subf %581, %586 : vector<2x2xf32>
    %588 = math.exp %587 : vector<2x2xf32>
    %cst_158 = arith.constant dense<0.000000e+00> : vector<2xf32>
    %589 = vector.multi_reduction <add>, %588, %cst_158 [1] : vector<2x2xf32> to vector<2xf32>
    %590 = vector.shape_cast %589 : vector<2xf32> to vector<2x1xf32>
    %591 = vector.broadcast %590 : vector<2x1xf32> to vector<2x2xf32>
    %592 = arith.divf %588, %591 : vector<2x2xf32>
    %c0_159 = arith.constant 0 : index
    %c0_160 = arith.constant 0 : index
    %c0_161 = arith.constant 0 : index
    %593 = vector.load %arg17[%c0_159, %c0_160, %c0_161] : memref<1x2x2xf32, #tpu.memory_space<vmem>>, vector<1x2x2xf32>
    %594 = vector.shape_cast %593 : vector<1x2x2xf32> to vector<2x2xf32>
    %595 = vector.shape_cast %592 : vector<2x2xf32> to vector<1x2x2xf32>
    tpu.vector_store %arg17[%c0_159, %c0_160, %c0_161], %595 {strides = array<i32>} : memref<1x2x2xf32, #tpu.memory_space<vmem>>, vector<1x2x2xf32>,
    return
  }
  func.func @transform_0(%arg0: i32) -> (i32, i32, i32) {
    %c0_i32 = arith.constant 0 : i32
    %c0_i32_0 = arith.constant 0 : i32
    %c0_i32_1 = arith.constant 0 : i32
    return %arg0, %c0_i32, %c0_i32_0 : i32, i32, i32
  }
  func.func @transform_1(%arg0: i32) -> (i32, i32, i32) {
    %c0_i32 = arith.constant 0 : i32
    %c0_i32_0 = arith.constant 0 : i32
    %c0_i32_1 = arith.constant 0 : i32
    return %arg0, %c0_i32, %c0_i32_0 : i32, i32, i32
  }
  func.func @transform_2(%arg0: i32) -> (i32, i32, i32) {
    %c0_i32 = arith.constant 0 : i32
    %c0_i32_0 = arith.constant 0 : i32
    %c0_i32_1 = arith.constant 0 : i32
    return %arg0, %c0_i32, %c0_i32_0 : i32, i32, i32
  }
  func.func @transform_3(%arg0: i32) -> (i32, i32, i32) {
    %c0_i32 = arith.constant 0 : i32
    %c0_i32_0 = arith.constant 0 : i32
    %c0_i32_1 = arith.constant 0 : i32
    return %arg0, %c0_i32, %c0_i32_0 : i32, i32, i32
  }
  func.func @transform_4(%arg0: i32) -> (i32, i32) {
    %c0_i32 = arith.constant 0 : i32
    %c0_i32_0 = arith.constant 0 : i32
    %c0_i32_1 = arith.constant 0 : i32
    return %c0_i32, %c0_i32_0 : i32, i32
  }
  func.func @transform_5(%arg0: i32) -> (i32, i32) {
    %c0_i32 = arith.constant 0 : i32
    %c0_i32_0 = arith.constant 0 : i32
    %c0_i32_1 = arith.constant 0 : i32
    return %c0_i32, %c0_i32_0 : i32, i32
  }
  func.func @transform_6(%arg0: i32) -> (i32, i32) {
    %c0_i32 = arith.constant 0 : i32
    %c0_i32_0 = arith.constant 0 : i32
    %c0_i32_1 = arith.constant 0 : i32
    return %c0_i32, %c0_i32_0 : i32, i32
  }
  func.func @transform_7(%arg0: i32) -> (i32, i32) {
    %c0_i32 = arith.constant 0 : i32
    %c0_i32_0 = arith.constant 0 : i32
    %c0_i32_1 = arith.constant 0 : i32
    return %c0_i32, %c0_i32_0 : i32, i32
  }
  func.func @transform_8(%arg0: i32) -> (i32, i32) {
    %c0_i32 = arith.constant 0 : i32
    %c0_i32_0 = arith.constant 0 : i32
    %c0_i32_1 = arith.constant 0 : i32
    return %c0_i32, %c0_i32_0 : i32, i32
  }
  func.func @transform_9(%arg0: i32) -> (i32, i32) {
    %c0_i32 = arith.constant 0 : i32
    %c0_i32_0 = arith.constant 0 : i32
    %c0_i32_1 = arith.constant 0 : i32
    return %c0_i32, %c0_i32_0 : i32, i32
  }
  func.func @transform_10(%arg0: i32) -> (i32, i32) {
    %c0_i32 = arith.constant 0 : i32
    %c0_i32_0 = arith.constant 0 : i32
    %c0_i32_1 = arith.constant 0 : i32
    return %c0_i32, %c0_i32_0 : i32, i32
  }
  func.func @transform_11(%arg0: i32) -> (i32, i32) {
    %c0_i32 = arith.constant 0 : i32
    %c0_i32_0 = arith.constant 0 : i32
    %c0_i32_1 = arith.constant 0 : i32
    return %c0_i32, %c0_i32_0 : i32, i32
  }
  func.func @transform_12(%arg0: i32) -> (i32, i32) {
    %c0_i32 = arith.constant 0 : i32
    %c0_i32_0 = arith.constant 0 : i32
    %c0_i32_1 = arith.constant 0 : i32
    return %c0_i32, %c0_i32_0 : i32, i32
  }
  func.func @transform_13(%arg0: i32) -> (i32, i32) {
    %c0_i32 = arith.constant 0 : i32
    %c0_i32_0 = arith.constant 0 : i32
    %c0_i32_1 = arith.constant 0 : i32
    return %c0_i32, %c0_i32_0 : i32, i32
  }
  func.func @transform_14(%arg0: i32) -> (i32, i32) {
    %c0_i32 = arith.constant 0 : i32
    %c0_i32_0 = arith.constant 0 : i32
    %c0_i32_1 = arith.constant 0 : i32
    return %c0_i32, %c0_i32_0 : i32, i32
  }
  func.func @transform_15(%arg0: i32) -> (i32, i32) {
    %c0_i32 = arith.constant 0 : i32
    %c0_i32_0 = arith.constant 0 : i32
    %c0_i32_1 = arith.constant 0 : i32
    return %c0_i32, %c0_i32_0 : i32, i32
  }
  func.func @transform_16(%arg0: i32) -> (i32, i32, i32) {
    %c0_i32 = arith.constant 0 : i32
    %c0_i32_0 = arith.constant 0 : i32
    %c0_i32_1 = arith.constant 0 : i32
    return %arg0, %c0_i32, %c0_i32_0 : i32, i32, i32
  }
}

</mosaic_0001>

<llo_original>
// kernel: tpu_custom_call.1
$region0: #{tpu_custom_call.1}
  #allocation0 [shape = 'u32[]', space=smem, size = 0x4, offset = 0x4, fixed_abs, tag = 'smem constant byte address 0x4 - core index']
  #allocation1 [shape = 'u32[144,128]{1,0:T(1,128)}', space=vmem, size = 0x12000, scoped, tag = 'internal scratch']
  #allocation2 [shape = 'f32[32,32]{1,0:T(8,128)}', space=vmem, size = 0x4000, scoped, tag = 'scratch operand']
  #allocation3 [shape = 'f32[32,128]{1,0:T(8,128)}', space=vmem, size = 0x4000, scoped, tag = 'scratch operand']
  #allocation4 [shape = 'f32[32,128]{1,0:T(8,128)}', space=vmem, size = 0x4000, scoped, tag = 'scratch operand']
  %s0 = inlined_call_operand.vmem [shape: bf16[2,32,16], index: 0, kind: input, shape index: {}]
  %s1 = inlined_call_operand.vmem [shape: f32[2,4,32], index: 1, kind: input, shape index: {}]
  %s2 = inlined_call_operand.vmem [shape: f32[2,4,32], index: 2, kind: input, shape index: {}]
  %s3 = inlined_call_operand.vmem [shape: f32[2,4,1], index: 3, kind: input, shape index: {}]
  %s4 = inlined_call_operand.vmem [shape: bf16[16,128], index: 4, kind: input, shape index: {}]
  %s5 = inlined_call_operand.vmem [shape: bf16[32,128], index: 5, kind: input, shape index: {}]
  %s6 = inlined_call_operand.vmem [shape: f32[1,128], index: 6, kind: input, shape index: {}]
  %s7 = inlined_call_operand.vmem [shape: bf16[128,32], index: 7, kind: input, shape index: {}]
  %s8 = inlined_call_operand.vmem [shape: f32[1,32], index: 8, kind: input, shape index: {}]
  %s9 = inlined_call_operand.vmem [shape: bf16[32,128], index: 9, kind: input, shape index: {}]
  %s10 = inlined_call_operand.vmem [shape: bf16[32,128], index: 10, kind: input, shape index: {}]
  %s11 = inlined_call_operand.vmem [shape: f32[1,128], index: 11, kind: input, shape index: {}]
  %s12 = inlined_call_operand.vmem [shape: bf16[128,32], index: 12, kind: input, shape index: {}]
  %s13 = inlined_call_operand.vmem [shape: f32[1,32], index: 13, kind: input, shape index: {}]
  %s14 = inlined_call_operand.vmem [shape: bf16[32,2], index: 14, kind: input, shape index: {}]
  %s15 = inlined_call_operand.vmem [shape: f32[1,2], index: 15, kind: input, shape index: {}]
  %s16 = inlined_call_operand.hbm [shape: f32[2,2,2], index: 16, kind: output, shape index: {}]
  %s17 = sld [smem:[#allocation0]]
  $region97: #{tpu_custom_call.1} parent=0
    _
  %s19 = ssub.s32 1, %s17
  %s20 = scalar_select 0, %s19, %s17
  $region1: #{tpu_custom_call.1} parent=0
    #allocation5 [shape = 'u8[2048]{0}', space=vmem, size = 0x800, scoped, tag = 'output window, operand 0']
    #allocation6 [shape = 's32[2]{0}', space=sflag, size = 0x8, scoped, tag = 'scoped memory for tpu_custom_call.1']
    %21 = vsyncpa [#allocation6], 0
    %s22 = scalar_lea.sflag [#allocation6], 1
    %23 = vsyncpa %s22, 0
    loop: start=0, step=1, limit=4
    $region2: #{tpu_custom_call.1} parent=1 // loop_pre_header
      _
    $region3: #{tpu_custom_call.1} parent=1 // loop_header
      %s25 = sphi 0, %s29
      %p26 = scmp.ge.s32.totalorder %s25, 4
      %s35 = sphi 0, %s37
      %s38 = sphi 0, %s35
      %s39 = sphi 0, %s38
      %s55 = sphi 0, %s39
      %s61 = sphi 0, %s63
      %s64 = sphi 0, %s61
      %s65 = sphi 0, %s64
      %s81 = sphi 0, %s65
      %s87 = sphi 0, %s89
      %s90 = sphi 0, %s87
      %s91 = sphi 0, %s90
      %s107 = sphi 0, %s91
      %s113 = sphi 0, %s115
      %s116 = sphi 0, %s113
      %s117 = sphi 0, %s116
      %s133 = sphi 0, %s117
      %s137 = sphi 0, %s137
      %s139 = sphi 0, %s137
      %s140 = sphi 0, %s139
      %s154 = sphi 0, %s140
      %s158 = sphi 0, %s158
      %s160 = sphi 0, %s158
      %s161 = sphi 0, %s160
      %s175 = sphi 0, %s161
      %s179 = sphi 0, %s179
      %s181 = sphi 0, %s179
      %s182 = sphi 0, %s181
      %s196 = sphi 0, %s182
      %s200 = sphi 0, %s200
      %s202 = sphi 0, %s200
      %s203 = sphi 0, %s202
      %s217 = sphi 0, %s203
      %s221 = sphi 0, %s221
      %s223 = sphi 0, %s221
      %s224 = sphi 0, %s223
      %s238 = sphi 0, %s224
      %s242 = sphi 0, %s242
      %s244 = sphi 0, %s242
      %s245 = sphi 0, %s244
      %s259 = sphi 0, %s245
      %s263 = sphi 0, %s263
      %s265 = sphi 0, %s263
      %s266 = sphi 0, %s265
      %s280 = sphi 0, %s266
      %s284 = sphi 0, %s284
      %s286 = sphi 0, %s284
      %s287 = sphi 0, %s286
      %s301 = sphi 0, %s287
      %s305 = sphi 0, %s305
      %s307 = sphi 0, %s305
      %s308 = sphi 0, %s307
      %s322 = sphi 0, %s308
      %s326 = sphi 0, %s326
      %s328 = sphi 0, %s326
      %s329 = sphi 0, %s328
      %s343 = sphi 0, %s329
      %s347 = sphi 0, %s347
      %s349 = sphi 0, %s347
      %s350 = sphi 0, %s349
      %s364 = sphi 0, %s350
      %s368 = sphi 0, %s368
      %s370 = sphi 0, %s368
      %s371 = sphi 0, %s370
      %s385 = sphi 0, %s371
      %s391 = sphi 0, %s393
      %s394 = sphi 0, %s391
      %s395 = sphi 0, %s394
      %s411 = sphi 0, %s395
    $region4: #{tpu_custom_call.1} parent=1 // loop_header_branch
      %28 = sbr.rel (%p26) target = $region8
    $region5: #{tpu_custom_call.1} parent=1 // loop_body
      %s30 = ssub.s32 %s25, 1
      %s31 = ssub.s32 %s25, 2
      %s32 = sadd.s32 %s25, 1
      %s33 = ssub.s32 %s25, %s32
      %p34 = scmp.eq.s32.totalorder %s33, 0
      %s36 = sadd.s32 %s35, 1
      %s37 = scalar_select %p34, %s35, %s36
      %p40 = pneg %p34
      %p41 = scmp.eq.s32.totalorder %s25, 1
      %p42 = por %p40, %p41
      %p43 = scmp.ne.s32.totalorder %s35, %s38
      %p44 = scmp.eq.s32.totalorder %s25, 0
      %p45 = por %p43, %p44
      %p46 = scmp.ne.s32.totalorder %s35, %s38
      %p47 = scmp.eq.s32.totalorder %s30, 1
      %p48 = por %p46, %p47
      %p49 = scmp.ne.s32.totalorder %s38, %s39
      %p50 = scmp.eq.s32.totalorder %s30, 0
      %p51 = por %p49, %p50
      %p52 = scmp.ne.s32.totalorder %s38, %s39
      %p53 = scmp.eq.s32.totalorder %s31, 1
      %p54 = por %p52, %p53
      %p56 = scmp.ne.s32.totalorder %s39, %s55
      %p57 = scmp.eq.s32.totalorder %s31, 0
      %p58 = por %p56, %p57
      %s59 = ssub.s32 %s25, %s32
      %p60 = scmp.eq.s32.totalorder %s59, 0
      %s62 = sadd.s32 %s61, 1
      %s63 = scalar_select %p60, %s61, %s62
      %p66 = pneg %p60
      %p67 = scmp.eq.s32.totalorder %s25, 1
      %p68 = por %p66, %p67
      %p69 = scmp.ne.s32.totalorder %s61, %s64
      %p70 = scmp.eq.s32.totalorder %s25, 0
      %p71 = por %p69, %p70
      %p72 = scmp.ne.s32.totalorder %s61, %s64
      %p73 = scmp.eq.s32.totalorder %s30, 1
      %p74 = por %p72, %p73
      %p75 = scmp.ne.s32.totalorder %s64, %s65
      %p76 = scmp.eq.s32.totalorder %s30, 0
      %p77 = por %p75, %p76
      %p78 = scmp.ne.s32.totalorder %s64, %s65
      %p79 = scmp.eq.s32.totalorder %s31, 1
      %p80 = por %p78, %p79
      %p82 = scmp.ne.s32.totalorder %s65, %s81
      %p83 = scmp.eq.s32.totalorder %s31, 0
      %p84 = por %p82, %p83
      %s85 = ssub.s32 %s25, %s32
      %p86 = scmp.eq.s32.totalorder %s85, 0
      %s88 = sadd.s32 %s87, 1
      %s89 = scalar_select %p86, %s87, %s88
      %p92 = pneg %p86
      %p93 = scmp.eq.s32.totalorder %s25, 1
      %p94 = por %p92, %p93
      %p95 = scmp.ne.s32.totalorder %s87, %s90
      %p96 = scmp.eq.s32.totalorder %s25, 0
      %p97 = por %p95, %p96
      %p98 = scmp.ne.s32.totalorder %s87, %s90
      %p99 = scmp.eq.s32.totalorder %s30, 1
      %p100 = por %p98, %p99
      %p101 = scmp.ne.s32.totalorder %s90, %s91
      %p102 = scmp.eq.s32.totalorder %s30, 0
      %p103 = por %p101, %p102
      %p104 = scmp.ne.s32.totalorder %s90, %s91
      %p105 = scmp.eq.s32.totalorder %s31, 1
      %p106 = por %p104, %p105
      %p108 = scmp.ne.s32.totalorder %s91, %s107
      %p109 = scmp.eq.s32.totalorder %s31, 0
      %p110 = por %p108, %p109
      %s111 = ssub.s32 %s25, %s32
      %p112 = scmp.eq.s32.totalorder %s111, 0
      %s114 = sadd.s32 %s113, 1
      %s115 = scalar_select %p112, %s113, %s114
      %p118 = pneg %p112
      %p119 = scmp.eq.s32.totalorder %s25, 1
      %p120 = por %p118, %p119
      %p121 = scmp.ne.s32.totalorder %s113, %s116
      %p122 = scmp.eq.s32.totalorder %s25, 0
      %p123 = por %p121, %p122
      %p124 = scmp.ne.s32.totalorder %s113, %s116
      %p125 = scmp.eq.s32.totalorder %s30, 1
      %p126 = por %p124, %p125
      %p127 = scmp.ne.s32.totalorder %s116, %s117
      %p128 = scmp.eq.s32.totalorder %s30, 0
      %p129 = por %p127, %p128
      %p130 = scmp.ne.s32.totalorder %s116, %s117
      %p131 = scmp.eq.s32.totalorder %s31, 1
      %p132 = por %p130, %p131
      %p134 = scmp.ne.s32.totalorder %s117, %s133
      %p135 = scmp.eq.s32.totalorder %s31, 0
      %p136 = por %p134, %p135
      %s138 = sadd.s32 %s137, 1
      %p141 = scmp.eq.s32.totalorder %s25, 1
      %p142 = scmp.ne.s32.totalorder %s137, %s139
      %p143 = scmp.eq.s32.totalorder %s25, 0
      %p144 = por %p142, %p143
      %p145 = scmp.ne.s32.totalorder %s137, %s139
      %p146 = scmp.eq.s32.totalorder %s30, 1
      %p147 = por %p145, %p146
      %p148 = scmp.ne.s32.totalorder %s139, %s140
      %p149 = scmp.eq.s32.totalorder %s30, 0
      %p150 = por %p148, %p149
      %p151 = scmp.ne.s32.totalorder %s139, %s140
      %p152 = scmp.eq.s32.totalorder %s31, 1
      %p153 = por %p151, %p152
      %p155 = scmp.ne.s32.totalorder %s140, %s154
      %p156 = scmp.eq.s32.totalorder %s31, 0
      %p157 = por %p155, %p156
      %s159 = sadd.s32 %s158, 1
      %p162 = scmp.eq.s32.totalorder %s25, 1
      %p163 = scmp.ne.s32.totalorder %s158, %s160
      %p164 = scmp.eq.s32.totalorder %s25, 0
      %p165 = por %p163, %p164
      %p166 = scmp.ne.s32.totalorder %s158, %s160
      %p167 = scmp.eq.s32.totalorder %s30, 1
      %p168 = por %p166, %p167
      %p169 = scmp.ne.s32.totalorder %s160, %s161
      %p170 = scmp.eq.s32.totalorder %s30, 0
      %p171 = por %p169, %p170
      %p172 = scmp.ne.s32.totalorder %s160, %s161
      %p173 = scmp.eq.s32.totalorder %s31, 1
      %p174 = por %p172, %p173
      %p176 = scmp.ne.s32.totalorder %s161, %s175
      %p177 = scmp.eq.s32.totalorder %s31, 0
      %p178 = por %p176, %p177
      %s180 = sadd.s32 %s179, 1
      %p183 = scmp.eq.s32.totalorder %s25, 1
      %p184 = scmp.ne.s32.totalorder %s179, %s181
      %p185 = scmp.eq.s32.totalorder %s25, 0
      %p186 = por %p184, %p185
      %p187 = scmp.ne.s32.totalorder %s179, %s181
      %p188 = scmp.eq.s32.totalorder %s30, 1
      %p189 = por %p187, %p188
      %p190 = scmp.ne.s32.totalorder %s181, %s182
      %p191 = scmp.eq.s32.totalorder %s30, 0
      %p192 = por %p190, %p191
      %p193 = scmp.ne.s32.totalorder %s181, %s182
      %p194 = scmp.eq.s32.totalorder %s31, 1
      %p195 = por %p193, %p194
      %p197 = scmp.ne.s32.totalorder %s182, %s196
      %p198 = scmp.eq.s32.totalorder %s31, 0
      %p199 = por %p197, %p198
      %s201 = sadd.s32 %s200, 1
      %p204 = scmp.eq.s32.totalorder %s25, 1
      %p205 = scmp.ne.s32.totalorder %s200, %s202
      %p206 = scmp.eq.s32.totalorder %s25, 0
      %p207 = por %p205, %p206
      %p208 = scmp.ne.s32.totalorder %s200, %s202
      %p209 = scmp.eq.s32.totalorder %s30, 1
      %p210 = por %p208, %p209
      %p211 = scmp.ne.s32.totalorder %s202, %s203
      %p212 = scmp.eq.s32.totalorder %s30, 0
      %p213 = por %p211, %p212
      %p214 = scmp.ne.s32.totalorder %s202, %s203
      %p215 = scmp.eq.s32.totalorder %s31, 1
      %p216 = por %p214, %p215
      %p218 = scmp.ne.s32.totalorder %s203, %s217
      %p219 = scmp.eq.s32.totalorder %s31, 0
      %p220 = por %p218, %p219
      %s222 = sadd.s32 %s221, 1
      %p225 = scmp.eq.s32.totalorder %s25, 1
      %p226 = scmp.ne.s32.totalorder %s221, %s223
      %p227 = scmp.eq.s32.totalorder %s25, 0
      %p228 = por %p226, %p227
      %p229 = scmp.ne.s32.totalorder %s221, %s223
      %p230 = scmp.eq.s32.totalorder %s30, 1
      %p231 = por %p229, %p230
      %p232 = scmp.ne.s32.totalorder %s223, %s224
      %p233 = scmp.eq.s32.totalorder %s30, 0
      %p234 = por %p232, %p233
      %p235 = scmp.ne.s32.totalorder %s223, %s224
      %p236 = scmp.eq.s32.totalorder %s31, 1
      %p237 = por %p235, %p236
      %p239 = scmp.ne.s32.totalorder %s224, %s238
      %p240 = scmp.eq.s32.totalorder %s31, 0
      %p241 = por %p239, %p240
      %s243 = sadd.s32 %s242, 1
      %p246 = scmp.eq.s32.totalorder %s25, 1
      %p247 = scmp.ne.s32.totalorder %s242, %s244
      %p248 = scmp.eq.s32.totalorder %s25, 0
      %p249 = por %p247, %p248
      %p250 = scmp.ne.s32.totalorder %s242, %s244
      %p251 = scmp.eq.s32.totalorder %s30, 1
      %p252 = por %p250, %p251
      %p253 = scmp.ne.s32.totalorder %s244, %s245
      %p254 = scmp.eq.s32.totalorder %s30, 0
      %p255 = por %p253, %p254
      %p256 = scmp.ne.s32.totalorder %s244, %s245
      %p257 = scmp.eq.s32.totalorder %s31, 1
      %p258 = por %p256, %p257
      %p260 = scmp.ne.s32.totalorder %s245, %s259
      %p261 = scmp.eq.s32.totalorder %s31, 0
      %p262 = por %p260, %p261
      %s264 = sadd.s32 %s263, 1
      %p267 = scmp.eq.s32.totalorder %s25, 1
      %p268 = scmp.ne.s32.totalorder %s263, %s265
      %p269 = scmp.eq.s32.totalorder %s25, 0
      %p270 = por %p268, %p269
      %p271 = scmp.ne.s32.totalorder %s263, %s265
      %p272 = scmp.eq.s32.totalorder %s30, 1
      %p273 = por %p271, %p272
      %p274 = scmp.ne.s32.totalorder %s265, %s266
      %p275 = scmp.eq.s32.totalorder %s30, 0
      %p276 = por %p274, %p275
      %p277 = scmp.ne.s32.totalorder %s265, %s266
      %p278 = scmp.eq.s32.totalorder %s31, 1
      %p279 = por %p277, %p278
      %p281 = scmp.ne.s32.totalorder %s266, %s280
      %p282 = scmp.eq.s32.totalorder %s31, 0
      %p283 = por %p281, %p282
      %s285 = sadd.s32 %s284, 1
      %p288 = scmp.eq.s32.totalorder %s25, 1
      %p289 = scmp.ne.s32.totalorder %s284, %s286
      %p290 = scmp.eq.s32.totalorder %s25, 0
      %p291 = por %p289, %p290
      %p292 = scmp.ne.s32.totalorder %s284, %s286
      %p293 = scmp.eq.s32.totalorder %s30, 1
      %p294 = por %p292, %p293
      %p295 = scmp.ne.s32.totalorder %s286, %s287
      %p296 = scmp.eq.s32.totalorder %s30, 0
      %p297 = por %p295, %p296
      %p298 = scmp.ne.s32.totalorder %s286, %s287
      %p299 = scmp.eq.s32.totalorder %s31, 1
      %p300 = por %p298, %p299
      %p302 = scmp.ne.s32.totalorder %s287, %s301
      %p303 = scmp.eq.s32.totalorder %s31, 0
      %p304 = por %p302, %p303
      %s306 = sadd.s32 %s305, 1
      %p309 = scmp.eq.s32.totalorder %s25, 1
      %p310 = scmp.ne.s32.totalorder %s305, %s307
      %p311 = scmp.eq.s32.totalorder %s25, 0
      %p312 = por %p310, %p311
      %p313 = scmp.ne.s32.totalorder %s305, %s307
      %p314 = scmp.eq.s32.totalorder %s30, 1
      %p315 = por %p313, %p314
      %p316 = scmp.ne.s32.totalorder %s307, %s308
      %p317 = scmp.eq.s32.totalorder %s30, 0
      %p318 = por %p316, %p317
      %p319 = scmp.ne.s32.totalorder %s307, %s308
      %p320 = scmp.eq.s32.totalorder %s31, 1
      %p321 = por %p319, %p320
      %p323 = scmp.ne.s32.totalorder %s308, %s322
      %p324 = scmp.eq.s32.totalorder %s31, 0
      %p325 = por %p323, %p324
      %s327 = sadd.s32 %s326, 1
      %p330 = scmp.eq.s32.totalorder %s25, 1
      %p331 = scmp.ne.s32.totalorder %s326, %s328
      %p332 = scmp.eq.s32.totalorder %s25, 0
      %p333 = por %p331, %p332
      %p334 = scmp.ne.s32.totalorder %s326, %s328
      %p335 = scmp.eq.s32.totalorder %s30, 1
      %p336 = por %p334, %p335
      %p337 = scmp.ne.s32.totalorder %s328, %s329
      %p338 = scmp.eq.s32.totalorder %s30, 0
      %p339 = por %p337, %p338
      %p340 = scmp.ne.s32.totalorder %s328, %s329
      %p341 = scmp.eq.s32.totalorder %s31, 1
      %p342 = por %p340, %p341
      %p344 = scmp.ne.s32.totalorder %s329, %s343
      %p345 = scmp.eq.s32.totalorder %s31, 0
      %p346 = por %p344, %p345
      %s348 = sadd.s32 %s347, 1
      %p351 = scmp.eq.s32.totalorder %s25, 1
      %p352 = scmp.ne.s32.totalorder %s347, %s349
      %p353 = scmp.eq.s32.totalorder %s25, 0
      %p354 = por %p352, %p353
      %p355 = scmp.ne.s32.totalorder %s347, %s349
      %p356 = scmp.eq.s32.totalorder %s30, 1
      %p357 = por %p355, %p356
      %p358 = scmp.ne.s32.totalorder %s349, %s350
      %p359 = scmp.eq.s32.totalorder %s30, 0
      %p360 = por %p358, %p359
      %p361 = scmp.ne.s32.totalorder %s349, %s350
      %p362 = scmp.eq.s32.totalorder %s31, 1
      %p363 = por %p361, %p362
      %p365 = scmp.ne.s32.totalorder %s350, %s364
      %p366 = scmp.eq.s32.totalorder %s31, 0
      %p367 = por %p365, %p366
      %s369 = sadd.s32 %s368, 1
      %p372 = scmp.eq.s32.totalorder %s25, 1
      %p373 = scmp.ne.s32.totalorder %s368, %s370
      %p374 = scmp.eq.s32.totalorder %s25, 0
      %p375 = por %p373, %p374
      %p376 = scmp.ne.s32.totalorder %s368, %s370
      %p377 = scmp.eq.s32.totalorder %s30, 1
      %p378 = por %p376, %p377
      %p379 = scmp.ne.s32.totalorder %s370, %s371
      %p380 = scmp.eq.s32.totalorder %s30, 0
      %p381 = por %p379, %p380
      %p382 = scmp.ne.s32.totalorder %s370, %s371
      %p383 = scmp.eq.s32.totalorder %s31, 1
      %p384 = por %p382, %p383
      %p386 = scmp.ne.s32.totalorder %s371, %s385
      %p387 = scmp.eq.s32.totalorder %s31, 0
      %p388 = por %p386, %p387
      %s389 = ssub.s32 %s25, %s32
      %p390 = scmp.eq.s32.totalorder %s389, 0
      %s392 = sadd.s32 %s391, 1
      %s393 = scalar_select %p390, %s391, %s392
      %p396 = pneg %p390
      %p397 = scmp.eq.s32.totalorder %s25, 1
      %p398 = por %p396, %p397
      %p399 = scmp.ne.s32.totalorder %s391, %s394
      %p400 = scmp.eq.s32.totalorder %s25, 0
      %p401 = por %p399, %p400
      %p402 = scmp.ne.s32.totalorder %s391, %s394
      %p403 = scmp.eq.s32.totalorder %s30, 1
      %p404 = por %p402, %p403
      %p405 = scmp.ne.s32.totalorder %s394, %s395
      %p406 = scmp.eq.s32.totalorder %s30, 0
      %p407 = por %p405, %p406
      %p408 = scmp.ne.s32.totalorder %s394, %s395
      %p409 = scmp.eq.s32.totalorder %s31, 1
      %p410 = por %p408, %p409
      %p412 = scmp.ne.s32.totalorder %s395, %s411
      %p413 = scmp.eq.s32.totalorder %s31, 0
      %p414 = por %p412, %p413
      %p415 = scmp.le.s32.totalorder 1, %s25
      %p416 = scmp.lt.s32.totalorder %s25, 3
      %p417 = pnand %p415, %p416
      %p418 = pneg %p417
      // Predicated region
      $region9: #{tpu_custom_call.1} parent=5 // pred_check
        _
      $region10: #{tpu_custom_call.1} parent=5 // pred_check_branch
        %420 = sbr.rel (%p417) target = $region12
      $region11: #{tpu_custom_call.1} parent=5 // pred_region
        %s421 = ssub.s32 %s25, 1
        // Predicated region
        $region13: #{tpu_custom_call.1} parent=11 // pred_check
          %p422 = pneg %p150
        $region14: #{tpu_custom_call.1} parent=11 // pred_check_branch
          %424 = sbr.rel (%p422) target = $region16
        $region15: #{tpu_custom_call.1} parent=11 // pred_region
          _
        $region16: #{tpu_custom_call.1} parent=11 // pred_fallthru
          _
        // Predicated region
        $region17: #{tpu_custom_call.1} parent=11 // pred_check
          %p425 = pneg %p171
        $region18: #{tpu_custom_call.1} parent=11 // pred_check_branch
          %427 = sbr.rel (%p425) target = $region20
        $region19: #{tpu_custom_call.1} parent=11 // pred_region
          _
        $region20: #{tpu_custom_call.1} parent=11 // pred_fallthru
          _
        // Predicated region
        $region21: #{tpu_custom_call.1} parent=11 // pred_check
          %p428 = pneg %p192
        $region22: #{tpu_custom_call.1} parent=11 // pred_check_branch
          %430 = sbr.rel (%p428) target = $region24
        $region23: #{tpu_custom_call.1} parent=11 // pred_region
          _
        $region24: #{tpu_custom_call.1} parent=11 // pred_fallthru
          _
        // Predicated region
        $region25: #{tpu_custom_call.1} parent=11 // pred_check
          %p431 = pneg %p213
        $region26: #{tpu_custom_call.1} parent=11 // pred_check_branch
          %433 = sbr.rel (%p431) target = $region28
        $region27: #{tpu_custom_call.1} parent=11 // pred_region
          _
        $region28: #{tpu_custom_call.1} parent=11 // pred_fallthru
          _
        // Predicated region
        $region29: #{tpu_custom_call.1} parent=11 // pred_check
          %p434 = pneg %p234
        $region30: #{tpu_custom_call.1} parent=11 // pred_check_branch
          %436 = sbr.rel (%p434) target = $region32
        $region31: #{tpu_custom_call.1} parent=11 // pred_region
          _
        $region32: #{tpu_custom_call.1} parent=11 // pred_fallthru
          _
        // Predicated region
        $region33: #{tpu_custom_call.1} parent=11 // pred_check
          %p437 = pneg %p255
        $region34: #{tpu_custom_call.1} parent=11 // pred_check_branch
          %439 = sbr.rel (%p437) target = $region36
        $region35: #{tpu_custom_call.1} parent=11 // pred_region
          _
        $region36: #{tpu_custom_call.1} parent=11 // pred_fallthru
          _
        // Predicated region
        $region37: #{tpu_custom_call.1} parent=11 // pred_check
          %p440 = pneg %p276
        $region38: #{tpu_custom_call.1} parent=11 // pred_check_branch
          %442 = sbr.rel (%p440) target = $region40
        $region39: #{tpu_custom_call.1} parent=11 // pred_region
          _
        $region40: #{tpu_custom_call.1} parent=11 // pred_fallthru
          _
        // Predicated region
        $region41: #{tpu_custom_call.1} parent=11 // pred_check
          %p443 = pneg %p297
        $region42: #{tpu_custom_call.1} parent=11 // pred_check_branch
          %445 = sbr.rel (%p443) target = $region44
        $region43: #{tpu_custom_call.1} parent=11 // pred_region
          _
        $region44: #{tpu_custom_call.1} parent=11 // pred_fallthru
          _
        // Predicated region
        $region45: #{tpu_custom_call.1} parent=11 // pred_check
          %p446 = pneg %p318
        $region46: #{tpu_custom_call.1} parent=11 // pred_check_branch
          %448 = sbr.rel (%p446) target = $region48
        $region47: #{tpu_custom_call.1} parent=11 // pred_region
          _
        $region48: #{tpu_custom_call.1} parent=11 // pred_fallthru
          _
        // Predicated region
        $region49: #{tpu_custom_call.1} parent=11 // pred_check
          %p449 = pneg %p339
        $region50: #{tpu_custom_call.1} parent=11 // pred_check_branch
          %451 = sbr.rel (%p449) target = $region52
        $region51: #{tpu_custom_call.1} parent=11 // pred_region
          _
        $region52: #{tpu_custom_call.1} parent=11 // pred_fallthru
          _
        // Predicated region
        $region53: #{tpu_custom_call.1} parent=11 // pred_check
          %p452 = pneg %p360
        $region54: #{tpu_custom_call.1} parent=11 // pred_check_branch
          %454 = sbr.rel (%p452) target = $region56
        $region55: #{tpu_custom_call.1} parent=11 // pred_region
          _
        $region56: #{tpu_custom_call.1} parent=11 // pred_fallthru
          _
        // Predicated region
        $region57: #{tpu_custom_call.1} parent=11 // pred_check
          %p455 = pneg %p381
        $region58: #{tpu_custom_call.1} parent=11 // pred_check_branch
          %457 = sbr.rel (%p455) target = $region60
        $region59: #{tpu_custom_call.1} parent=11 // pred_region
          _
        $region60: #{tpu_custom_call.1} parent=11 // pred_fallthru
          _
      $region12: #{tpu_custom_call.1} parent=5 // pred_fallthru
        _
      %p458 = scmp.lt.s32.totalorder %s25, 2
      // Predicated region
      $region61: #{tpu_custom_call.1} parent=5 // pred_check
        %p459 = pneg %p458
      $region62: #{tpu_custom_call.1} parent=5 // pred_check_branch
        %461 = sbr.rel (%p459) target = $region64
      $region63: #{tpu_custom_call.1} parent=5 // pred_region
        // Predicated region
        $region65: #{tpu_custom_call.1} parent=63 // pred_check
          %p462 = pneg %p45
        $region66: #{tpu_custom_call.1} parent=63 // pred_check_branch
          %464 = sbr.rel (%p462) target = $region68
        $region67: #{tpu_custom_call.1} parent=63 // pred_region
          %p465 = scmp.lt.s32.totalorder %s25, 1
          %s466 = scalar_select %p465, %s25, 1
          %s467 = smul.addr %s466, 4
          %s468 = smul.addr %s467, 4
          %s469 = scalar_lea.vmem %s0, %s468
        $region68: #{tpu_custom_call.1} parent=63 // pred_fallthru
          _
        // Predicated region
        $region69: #{tpu_custom_call.1} parent=63 // pred_check
          %p470 = pneg %p71
        $region70: #{tpu_custom_call.1} parent=63 // pred_check_branch
          %472 = sbr.rel (%p470) target = $region72
        $region71: #{tpu_custom_call.1} parent=63 // pred_region
          %p473 = scmp.lt.s32.totalorder %s25, 1
          %s474 = scalar_select %p473, %s25, 1
          %s475 = smul.addr %s474, 4
          %s476 = scalar_lea.vmem %s1, %s475
        $region72: #{tpu_custom_call.1} parent=63 // pred_fallthru
          _
        // Predicated region
        $region73: #{tpu_custom_call.1} parent=63 // pred_check
          %p477 = pneg %p97
        $region74: #{tpu_custom_call.1} parent=63 // pred_check_branch
          %479 = sbr.rel (%p477) target = $region76
        $region75: #{tpu_custom_call.1} parent=63 // pred_region
          %p480 = scmp.lt.s32.totalorder %s25, 1
          %s481 = scalar_select %p480, %s25, 1
          %s482 = smul.addr %s481, 4
          %s483 = scalar_lea.vmem %s2, %s482
        $region76: #{tpu_custom_call.1} parent=63 // pred_fallthru
          _
        // Predicated region
        $region77: #{tpu_custom_call.1} parent=63 // pred_check
          %p484 = pneg %p123
        $region78: #{tpu_custom_call.1} parent=63 // pred_check_branch
          %486 = sbr.rel (%p484) target = $region80
        $region79: #{tpu_custom_call.1} parent=63 // pred_region
          %p487 = scmp.lt.s32.totalorder %s25, 1
          %s488 = scalar_select %p487, %s25, 1
          %s489 = smul.addr %s488, 4
          %s490 = scalar_lea.vmem %s3, %s489
        $region80: #{tpu_custom_call.1} parent=63 // pred_fallthru
          _
      $region64: #{tpu_custom_call.1} parent=5 // pred_fallthru
        _
      %p491 = scmp.le.s32.totalorder 1, %s25
      %p492 = scmp.lt.s32.totalorder %s25, 3
      %p493 = pnand %p491, %p492
      %p494 = pneg %p493
      // Predicated region
      $region81: #{tpu_custom_call.1} parent=5 // pred_check
        _
      $region82: #{tpu_custom_call.1} parent=5 // pred_check_branch
        %496 = sbr.rel (%p493) target = $region84
      $region83: #{tpu_custom_call.1} parent=5 // pred_region
        %s497 = ssub.s32 %s25, 1
        %p498 = scmp.lt.s32.totalorder %s30, 1
        %s499 = scalar_select %p498, %s30, 1
        %s500 = smul.addr %s499, 4
        %s501 = smul.addr %s500, 4
        %s502 = scalar_lea.vmem %s0, %s501
        %p503 = pneg %p51
        %p504 = pneg %p48
        %p505 = scmp.lt.s32.totalorder %s30, 1
        %s506 = scalar_select %p505, %s30, 1
        %s507 = smul.addr %s506, 4
        %s508 = scalar_lea.vmem %s1, %s507
        %p509 = pneg %p77
        %p510 = pneg %p74
        %p511 = scmp.lt.s32.totalorder %s30, 1
        %s512 = scalar_select %p511, %s30, 1
        %s513 = smul.addr %s512, 4
        %s514 = scalar_lea.vmem %s2, %s513
        %p515 = pneg %p103
        %p516 = pneg %p100
        %p517 = scmp.lt.s32.totalorder %s30, 1
        %s518 = scalar_select %p517, %s30, 1
        %s519 = smul.addr %s518, 4
        %s520 = scalar_lea.vmem %s3, %s519
        %p521 = pneg %p129
        %p522 = pneg %p126
        %p523 = pneg %p150
        %p524 = pneg %p147
        %p525 = pneg %p171
        %p526 = pneg %p168
        %p527 = pneg %p192
        %p528 = pneg %p189
        %p529 = pneg %p213
        %p530 = pneg %p210
        %p531 = pneg %p234
        %p532 = pneg %p231
        %p533 = pneg %p255
        %p534 = pneg %p252
        %p535 = pneg %p276
        %p536 = pneg %p273
        %p537 = pneg %p297
        %p538 = pneg %p294
        %p539 = pneg %p318
        %p540 = pneg %p315
        %p541 = pneg %p339
        %p542 = pneg %p336
        %p543 = pneg %p360
        %p544 = pneg %p357
        %p545 = pneg %p381
        %p546 = pneg %p378
        %p547 = pneg %p407
        %p548 = pneg %p404
        %s549 = sand.u32 %s394, 1
        %s550 = scalar_lea.sflag [#allocation6], %s549
        %s551 = sand.u32 %s394, 1
        %s552 = smul.addr %s551, 2
        %s553 = scalar_lea.vmem [#allocation5], %s552
        %p554 = scmp.lt.s32.totalorder %s30, 1
        %s555 = scalar_select %p554, %s30, 1
        %s556 = smul.addr %s555, 4
        %s557 = smul.addr %s556, 4
        %s558 = scalar_lea.vmem %s0, %s557
        %p559 = scmp.lt.s32.totalorder %s30, 1
        %s560 = scalar_select %p559, %s30, 1
        %s561 = smul.addr %s560, 4
        %s562 = scalar_lea.vmem %s1, %s561
        %p563 = scmp.lt.s32.totalorder %s30, 1
        %s564 = scalar_select %p563, %s30, 1
        %s565 = smul.addr %s564, 4
        %s566 = scalar_lea.vmem %s2, %s565
        %p567 = scmp.lt.s32.totalorder %s30, 1
        %s568 = scalar_select %p567, %s30, 1
        %s569 = smul.addr %s568, 4
        %s570 = scalar_lea.vmem %s3, %s569
        %v572 = vld [vmem:[%s570] sm:$0xf]
        %v573 = vld [vmem:[%s558] sm:$0xf]
        %v574 = vld [vmem:[%s558 + $0x4] sm:$0xf]
        %v575 = vld [vmem:[%s558 + $0x8] sm:$0xf]
        %v576 = vld [vmem:[%s558 + $0xc] sm:$0xf]
        %v577 = vld [vmem:[%s4] sm:$0xf]
        %v578 = vld [vmem:[%s4 + $0x4] sm:$0xf]
        %v579 = vld [vmem:[%s6] sm:$0x1]
        %v581 = vlaneseq
        %v582 = vshrl.u32 %v581, 7
        %v583 = vsub.s32 0, %v582
        %v584 = vrot.slane %v579, %v583
        %v590 = vunpack.c.l.b16 %v573
        %v591 = vunpack.c.l.b16 %v574
        %v592 = vunpack.c.l.b16 %v575
        %v593 = vunpack.c.l.b16 %v576
        %v594 = vpack.c.b16 %v591, %v590
        %v595 = vpack.c.b16 %v593, %v592
        %v598 = vunpack.c.l.b16 %v577
        %v599 = vunpack.c.l.b16 %v578
        %v600 = vpack.c.b16 %v599, %v598
        %vm602 = vcmask 130048
        %v604 = vsel %vm602, %v594, 0
        %v607 = vsel %vm602, %v595, 0
        %609 = vmatprep.subr.bf16.mxu0 0
        %610 = vmatpush1.bf16.msra.mxu0 %v600
        %611 = vmatprep.subr.bf16.mxu0 0
        %612 = vmatpush1.bf16.msra.mxu0 0
        %613 = vmatprep.subr.bf16.mxu0 0
        %614 = vmatpush1.bf16.msra.mxu0 0
        %615 = vmatprep.subr.bf16.mxu0 0
        %616 = vmatpush1.bf16.msra.mxu0 0
        %617 = vmatprep.subr.bf16.mxu0 0
        %618 = vmatpush1.bf16.msra.mxu0 0
        %619 = vmatprep.subr.bf16.mxu0 0
        %620 = vmatpush1.bf16.msra.mxu0 0
        %621 = vmatprep.subr.bf16.mxu0 0
        %622 = vmatpush1.bf16.msra.mxu0 0
        %623 = vmatprep.subr.bf16.mxu0 0
        %624 = vmatpush1.bf16.msra.mxu0 0
        %625 = vmatprep.subr.bf16.mxu0 0
        %626 = vmatpush1.bf16.msra.mxu0 0
        %627 = vmatprep.subr.bf16.mxu0 0
        %628 = vmatpush1.bf16.msra.mxu0 0
        %629 = vmatprep.subr.bf16.mxu0 0
        %630 = vmatpush1.bf16.msra.mxu0 0
        %631 = vmatprep.subr.bf16.mxu0 0
        %632 = vmatpush1.bf16.msra.mxu0 0
        %633 = vmatprep.subr.bf16.mxu0 0
        %634 = vmatpush1.bf16.msra.mxu0 0
        %635 = vmatprep.subr.bf16.mxu0 0
        %636 = vmatpush1.bf16.msra.mxu0 0
        %637 = vmatprep.subr.bf16.mxu0 0
        %638 = vmatpush1.bf16.msra.mxu0 0
        %639 = vmatprep.subr.bf16.mxu0 0
        %640 = vmatpush1.bf16.msra.mxu0 0
        %641 = vmatprep.mubr.bf16.mxu0 0
        %642 = vmatmul.mubr.bf16.gmra.mrb[0].mxu0 %v604
        %v643 = vpop.f32.mrb[0].mxu0
        %v644 = vadd.f32 %v584, %v643
        %v645 = vpop.f32.mrb[0].mxu0
        %v646 = vpop.f32.mrb[0].mxu0
        %v647 = vadd.f32 %v584, %v646
        %v648 = vpop.f32.mrb[0].mxu0
        %649 = vmatprep.mubr.bf16.mxu0 0
        %650 = vmatmul.mubr.bf16.gmra.mrb[0].mxu0 %v607
        %v651 = vpop.f32.mrb[0].mxu0
        %v652 = vadd.f32 %v584, %v651
        %v653 = vpop.f32.mrb[0].mxu0
        %v654 = vpop.f32.mrb[0].mxu0
        %v655 = vadd.f32 %v584, %v654
        %v656 = vpop.f32.mrb[0].mxu0
        %657 = vdwg.mxu0
        %v658 = vld [vmem:[%s5] sm:$0xf]
        %v659 = vld [vmem:[%s5 + $0x4] sm:$0xf]
        %v660 = vld [vmem:[%s5 + $0x8] sm:$0xf]
        %v661 = vld [vmem:[%s5 + $0xc] sm:$0xf]
        %v662 = vld [vmem:[%s562] sm:$0xf]
        %v663 = vld [vmem:[%s566] sm:$0xf]
        %v664 = vpack.c.bf16 %v662, %v662
        %v669 = vunpack.c.l.b16 %v658
        %v670 = vunpack.c.l.b16 %v659
        %v671 = vunpack.c.l.b16 %v660
        %v672 = vunpack.c.l.b16 %v661
        %v673 = vpack.c.b16 %v670, %v669
        %v674 = vpack.c.b16 %v672, %v671
        %vm677 = vcmask 261120
        %v679 = vsel %vm677, %v664, 0
        %681 = vmatprep.subr.bf16.mxu0 0
        %682 = vmatpush1.bf16.msra.mxu0 %v673
        %683 = vmatprep.subr.bf16.mxu0 0
        %684 = vmatpush1.bf16.msra.mxu0 %v674
        %685 = vmatprep.subr.bf16.mxu0 0
        %686 = vmatpush1.bf16.msra.mxu0 0
        %687 = vmatprep.subr.bf16.mxu0 0
        %688 = vmatpush1.bf16.msra.mxu0 0
        %689 = vmatprep.subr.bf16.mxu0 0
        %690 = vmatpush1.bf16.msra.mxu0 0
        %691 = vmatprep.subr.bf16.mxu0 0
        %692 = vmatpush1.bf16.msra.mxu0 0
        %693 = vmatprep.subr.bf16.mxu0 0
        %694 = vmatpush1.bf16.msra.mxu0 0
        %695 = vmatprep.subr.bf16.mxu0 0
        %696 = vmatpush1.bf16.msra.mxu0 0
        %697 = vmatprep.subr.bf16.mxu0 0
        %698 = vmatpush1.bf16.msra.mxu0 0
        %699 = vmatprep.subr.bf16.mxu0 0
        %700 = vmatpush1.bf16.msra.mxu0 0
        %701 = vmatprep.subr.bf16.mxu0 0
        %702 = vmatpush1.bf16.msra.mxu0 0
        %703 = vmatprep.subr.bf16.mxu0 0
        %704 = vmatpush1.bf16.msra.mxu0 0
        %705 = vmatprep.subr.bf16.mxu0 0
        %706 = vmatpush1.bf16.msra.mxu0 0
        %707 = vmatprep.subr.bf16.mxu0 0
        %708 = vmatpush1.bf16.msra.mxu0 0
        %709 = vmatprep.subr.bf16.mxu0 0
        %710 = vmatpush1.bf16.msra.mxu0 0
        %711 = vmatprep.subr.bf16.mxu0 0
        %712 = vmatpush1.bf16.msra.mxu0 0
        %713 = vmatprep.mubr.bf16.mxu0 0
        %714 = vmatmul.mubr.bf16.gmra.mrb[0].mxu0 %v679
        %v715 = vpop.f32.mrb[0].mxu0
        %v716 = vadd.f32 0.0, %v715
        %v717 = vpop.f32.mrb[0].mxu0
        %v718 = vpop.f32.mrb[0].mxu0
        %v719 = vpop.f32.mrb[0].mxu0
        %720 = vdwg.mxu0
        %v721 = vadd.f32 %v644, %v716
        %v722 = vxor.u32 %v721, 2147483648
        %v723 = vmul.f32 %v722, 1.442695
        %v724 = vpow.pop %v723
        %v725 = vadd.f32 %v724, 1.0
        %v726 = vrcp.pop %v725
        %v727 = vmul.f32 1.0, %v726
        %v728 = vtanh.pop %v721
        %730 = vrot.lane.b32.xlu0 %v663, 32
        %v731 = vpop.permute.xlu0 %730
        %v733 = vmul.f32 %v727, %v731
        %735 = vrot.lane.b32.xlu0 %v728, 64
        %v736 = vpop.permute.xlu0 %735
        %v738 = vmul.f32 %v727, %v736
        %740 = vrot.lane.b32.xlu0 %v738, 32
        %v741 = vpop.permute.xlu0 %740
        %v743 = vadd.f32 %v733, %v741
        %v744 = vtanh.pop %v743
        %746 = vrot.lane.b32.xlu0 %v744, 64
        %v747 = vpop.permute.xlu0 %746
        %v749 = vmul.f32 %v727, %v747
        %vm750 = vcmp.gt.f32.partialorder %v572, 0.0
        %v751 = vsel %vm750, 1, 0
        %v752 = vcvt.s32.f32 %v751
        %754 = vset.pattern.permute.xlu0 0
        %755 = vperm.xlu0 %754, %v752
        %v756 = vpop.permute.xlu0 %755
        %v758 = vmul.f32 %v749, %v756
        %760 = vrot.lane.b32.xlu0 %v758, 32
        %v761 = vpop.permute.xlu0 %760
        %vm763 = vcmask 257024
        %764 = vst.msk [vmem:[#allocation2] sm:$0xf] %vm763, %v761
        %v765 = vpack.c.bf16 %v749, %v749
        %767 = vrot.lane.b32.xlu0 %v765, 32
        %v768 = vpop.permute.xlu0 %767
        %v770 = vsel %vm677, %v768, 0
        %772 = vmatprep.subr.bf16.mxu0 0
        %773 = vmatpush1.bf16.msra.mxu0 %v673
        %774 = vmatprep.subr.bf16.mxu0 0
        %775 = vmatpush1.bf16.msra.mxu0 %v674
        %776 = vmatprep.subr.bf16.mxu0 0
        %777 = vmatpush1.bf16.msra.mxu0 0
        %778 = vmatprep.subr.bf16.mxu0 0
        %779 = vmatpush1.bf16.msra.mxu0 0
        %780 = vmatprep.subr.bf16.mxu0 0
        %781 = vmatpush1.bf16.msra.mxu0 0
        %782 = vmatprep.subr.bf16.mxu0 0
        %783 = vmatpush1.bf16.msra.mxu0 0
        %784 = vmatprep.subr.bf16.mxu0 0
        %785 = vmatpush1.bf16.msra.mxu0 0
        %786 = vmatprep.subr.bf16.mxu0 0
        %787 = vmatpush1.bf16.msra.mxu0 0
        %788 = vmatprep.subr.bf16.mxu0 0
        %789 = vmatpush1.bf16.msra.mxu0 0
        %790 = vmatprep.subr.bf16.mxu0 0
        %791 = vmatpush1.bf16.msra.mxu0 0
        %792 = vmatprep.subr.bf16.mxu0 0
        %793 = vmatpush1.bf16.msra.mxu0 0
        %794 = vmatprep.subr.bf16.mxu0 0
        %795 = vmatpush1.bf16.msra.mxu0 0
        %796 = vmatprep.subr.bf16.mxu0 0
        %797 = vmatpush1.bf16.msra.mxu0 0
        %798 = vmatprep.subr.bf16.mxu0 0
        %799 = vmatpush1.bf16.msra.mxu0 0
        %800 = vmatprep.subr.bf16.mxu0 0
        %801 = vmatpush1.bf16.msra.mxu0 0
        %802 = vmatprep.subr.bf16.mxu0 0
        %803 = vmatpush1.bf16.msra.mxu0 0
        %804 = vmatprep.mubr.bf16.mxu0 0
        %805 = vmatmul.mubr.bf16.gmra.mrb[0].mxu0 %v770
        %v806 = vpop.f32.mrb[0].mxu0
        %v807 = vadd.f32 0.0, %v806
        %v808 = vpop.f32.mrb[0].mxu0
        %v809 = vpop.f32.mrb[0].mxu0
        %v810 = vpop.f32.mrb[0].mxu0
        %811 = vdwg.mxu0
        %v813 = vrot.slane %v807, 4
        %v815 = vadd.f32 %v644, %v813
        %v816 = vxor.u32 %v815, 2147483648
        %v817 = vmul.f32 %v816, 1.442695
        %v818 = vpow.pop %v817
        %v819 = vadd.f32 %v818, 1.0
        %v820 = vrcp.pop %v819
        %v821 = vmul.f32 1.0, %v820
        %v822 = vtanh.pop %v815
        %v824 = vrot.slane %v743, 4
        %v826 = vmul.f32 %v821, %v824
        %828 = vrot.lane.b32.xlu0 %v822, 64
        %v829 = vpop.permute.xlu0 %828
        %v831 = vmul.f32 %v821, %v829
        %833 = vrot.lane.b32.xlu0 %v831, 32
        %v834 = vpop.permute.xlu0 %833
        %v836 = vadd.f32 %v826, %v834
        %v837 = vtanh.pop %v836
        %839 = vrot.lane.b32.xlu0 %v837, 64
        %v840 = vpop.permute.xlu0 %839
        %v842 = vmul.f32 %v821, %v840
        %vm843 = vcmp.gt.f32.partialorder %v572, 1.0
        %v844 = vsel %vm843, 1, 0
        %v845 = vcvt.s32.f32 %v844
        %847 = vset.pattern.permute.xlu0 0
        %848 = vperm.xlu0 %847, %v845
        %v849 = vpop.permute.xlu0 %848
        %v851 = vrot.slane %v849, 4
        %v853 = vmul.f32 %v842, %v851
        %855 = vrot.lane.b32.xlu0 %v853, 32
        %v856 = vpop.permute.xlu0 %855
        %vm858 = vcmask 261124
        %859 = vst.msk [vmem:[#allocation2] sm:$0xf0] %vm858, %v856
        %v860 = vpack.c.bf16 %v842, %v842
        %v862 = vrot.slane %v860, 2
        %863 = vrot.lane.b32.xlu0 %v862, 32
        %v864 = vpop.permute.xlu0 %863
        %v866 = vsel %vm677, %v864, 0
        %868 = vmatprep.subr.bf16.mxu0 0
        %869 = vmatpush1.bf16.msra.mxu0 %v673
        %870 = vmatprep.subr.bf16.mxu0 0
        %871 = vmatpush1.bf16.msra.mxu0 %v674
        %872 = vmatprep.subr.bf16.mxu0 0
        %873 = vmatpush1.bf16.msra.mxu0 0
        %874 = vmatprep.subr.bf16.mxu0 0
        %875 = vmatpush1.bf16.msra.mxu0 0
        %876 = vmatprep.subr.bf16.mxu0 0
        %877 = vmatpush1.bf16.msra.mxu0 0
        %878 = vmatprep.subr.bf16.mxu0 0
        %879 = vmatpush1.bf16.msra.mxu0 0
        %880 = vmatprep.subr.bf16.mxu0 0
        %881 = vmatpush1.bf16.msra.mxu0 0
        %882 = vmatprep.subr.bf16.mxu0 0
        %883 = vmatpush1.bf16.msra.mxu0 0
        %884 = vmatprep.subr.bf16.mxu0 0
        %885 = vmatpush1.bf16.msra.mxu0 0
        %886 = vmatprep.subr.bf16.mxu0 0
        %887 = vmatpush1.bf16.msra.mxu0 0
        %888 = vmatprep.subr.bf16.mxu0 0
        %889 = vmatpush1.bf16.msra.mxu0 0
        %890 = vmatprep.subr.bf16.mxu0 0
        %891 = vmatpush1.bf16.msra.mxu0 0
        %892 = vmatprep.subr.bf16.mxu0 0
        %893 = vmatpush1.bf16.msra.mxu0 0
        %894 = vmatprep.subr.bf16.mxu0 0
        %895 = vmatpush1.bf16.msra.mxu0 0
        %896 = vmatprep.subr.bf16.mxu0 0
        %897 = vmatpush1.bf16.msra.mxu0 0
        %898 = vmatprep.subr.bf16.mxu0 0
        %899 = vmatpush1.bf16.msra.mxu0 0
        %900 = vmatprep.mubr.bf16.mxu0 0
        %901 = vmatmul.mubr.bf16.gmra.mrb[0].mxu0 %v866
        %v902 = vpop.f32.mrb[0].mxu0
        %v903 = vadd.f32 0.0, %v902
        %v904 = vpop.f32.mrb[0].mxu0
        %v905 = vpop.f32.mrb[0].mxu0
        %v906 = vpop.f32.mrb[0].mxu0
        %907 = vdwg.mxu0
        %v908 = vadd.f32 %v647, %v903
        %v909 = vxor.u32 %v908, 2147483648
        %v910 = vmul.f32 %v909, 1.442695
        %v911 = vpow.pop %v910
        %v912 = vadd.f32 %v911, 1.0
        %v913 = vrcp.pop %v912
        %v914 = vmul.f32 1.0, %v913
        %v915 = vtanh.pop %v908
        %v917 = vrot.slane %v836, 4
        %v919 = vmul.f32 %v914, %v917
        %921 = vrot.lane.b32.xlu0 %v915, 64
        %v922 = vpop.permute.xlu0 %921
        %v924 = vmul.f32 %v914, %v922
        %926 = vrot.lane.b32.xlu0 %v924, 32
        %v927 = vpop.permute.xlu0 %926
        %v929 = vadd.f32 %v919, %v927
        %v930 = vtanh.pop %v929
        %932 = vrot.lane.b32.xlu0 %v930, 64
        %v933 = vpop.permute.xlu0 %932
        %v935 = vmul.f32 %v914, %v933
        %vm936 = vcmp.gt.f32.partialorder %v572, 2.0
        %v937 = vsel %vm936, 1, 0
        %v938 = vcvt.s32.f32 %v937
        %940 = vset.pattern.permute.xlu0 0
        %941 = vperm.xlu0 %940, %v938
        %v942 = vpop.permute.xlu0 %941
        %v944 = vmul.f32 %v935, %v942
        %946 = vrot.lane.b32.xlu0 %v944, 32
        %v947 = vpop.permute.xlu0 %946
        %949 = vst.msk [vmem:[#allocation2 + $0x8] sm:$0xf] %vm763, %v947
        %v950 = vpack.c.bf16 %v935, %v935
        %952 = vrot.lane.b32.xlu0 %v950, 32
        %v953 = vpop.permute.xlu0 %952
        %v955 = vsel %vm677, %v953, 0
        %957 = vmatprep.subr.bf16.mxu0 0
        %958 = vmatpush1.bf16.msra.mxu0 %v673
        %959 = vmatprep.subr.bf16.mxu0 0
        %960 = vmatpush1.bf16.msra.mxu0 %v674
        %961 = vmatprep.subr.bf16.mxu0 0
        %962 = vmatpush1.bf16.msra.mxu0 0
        %963 = vmatprep.subr.bf16.mxu0 0
        %964 = vmatpush1.bf16.msra.mxu0 0
        %965 = vmatprep.subr.bf16.mxu0 0
        %966 = vmatpush1.bf16.msra.mxu0 0
        %967 = vmatprep.subr.bf16.mxu0 0
        %968 = vmatpush1.bf16.msra.mxu0 0
        %969 = vmatprep.subr.bf16.mxu0 0
        %970 = vmatpush1.bf16.msra.mxu0 0
        %971 = vmatprep.subr.bf16.mxu0 0
        %972 = vmatpush1.bf16.msra.mxu0 0
        %973 = vmatprep.subr.bf16.mxu0 0
        %974 = vmatpush1.bf16.msra.mxu0 0
        %975 = vmatprep.subr.bf16.mxu0 0
        %976 = vmatpush1.bf16.msra.mxu0 0
        %977 = vmatprep.subr.bf16.mxu0 0
        %978 = vmatpush1.bf16.msra.mxu0 0
        %979 = vmatprep.subr.bf16.mxu0 0
        %980 = vmatpush1.bf16.msra.mxu0 0
        %981 = vmatprep.subr.bf16.mxu0 0
        %982 = vmatpush1.bf16.msra.mxu0 0
        %983 = vmatprep.subr.bf16.mxu0 0
        %984 = vmatpush1.bf16.msra.mxu0 0
        %985 = vmatprep.subr.bf16.mxu0 0
        %986 = vmatpush1.bf16.msra.mxu0 0
        %987 = vmatprep.subr.bf16.mxu0 0
        %988 = vmatpush1.bf16.msra.mxu0 0
        %989 = vmatprep.mubr.bf16.mxu0 0
        %990 = vmatmul.mubr.bf16.gmra.mrb[0].mxu0 %v955
        %v991 = vpop.f32.mrb[0].mxu0
        %v992 = vadd.f32 0.0, %v991
        %v993 = vpop.f32.mrb[0].mxu0
        %v994 = vpop.f32.mrb[0].mxu0
        %v995 = vpop.f32.mrb[0].mxu0
        %996 = vdwg.mxu0
        %v998 = vrot.slane %v992, 4
        %v1000 = vadd.f32 %v647, %v998
        %v1001 = vxor.u32 %v1000, 2147483648
        %v1002 = vmul.f32 %v1001, 1.442695
        %v1003 = vpow.pop %v1002
        %v1004 = vadd.f32 %v1003, 1.0
        %v1005 = vrcp.pop %v1004
        %v1006 = vmul.f32 1.0, %v1005
        %v1007 = vtanh.pop %v1000
        %v1009 = vrot.slane %v929, 4
        %v1011 = vmul.f32 %v1006, %v1009
        %1013 = vrot.lane.b32.xlu0 %v1007, 64
        %v1014 = vpop.permute.xlu0 %1013
        %v1016 = vmul.f32 %v1006, %v1014
        %1018 = vrot.lane.b32.xlu0 %v1016, 32
        %v1019 = vpop.permute.xlu0 %1018
        %v1021 = vadd.f32 %v1011, %v1019
        %v1022 = vtanh.pop %v1021
        %1024 = vrot.lane.b32.xlu0 %v1022, 64
        %v1025 = vpop.permute.xlu0 %1024
        %v1027 = vmul.f32 %v1006, %v1025
        %vm1028 = vcmp.gt.f32.partialorder %v572, 3.0
        %v1029 = vsel %vm1028, 1, 0
        %v1030 = vcvt.s32.f32 %v1029
        %1032 = vset.pattern.permute.xlu0 0
        %1033 = vperm.xlu0 %1032, %v1030
        %v1034 = vpop.permute.xlu0 %1033
        %v1036 = vrot.slane %v1034, 4
        %v1038 = vmul.f32 %v1027, %v1036
        %1040 = vrot.lane.b32.xlu0 %v1038, 32
        %v1041 = vpop.permute.xlu0 %1040
        %1043 = vst.msk [vmem:[#allocation2 + $0x8] sm:$0xf0] %vm858, %v1041
        %v1044 = vpack.c.bf16 %v1027, %v1027
        %v1046 = vrot.slane %v1044, 2
        %1047 = vrot.lane.b32.xlu0 %v1046, 32
        %v1048 = vpop.permute.xlu0 %1047
        %v1050 = vsel %vm677, %v1048, 0
        %1052 = vmatprep.subr.bf16.mxu0 0
        %1053 = vmatpush1.bf16.msra.mxu0 %v673
        %1054 = vmatprep.subr.bf16.mxu0 0
        %1055 = vmatpush1.bf16.msra.mxu0 %v674
        %1056 = vmatprep.subr.bf16.mxu0 0
        %1057 = vmatpush1.bf16.msra.mxu0 0
        %1058 = vmatprep.subr.bf16.mxu0 0
        %1059 = vmatpush1.bf16.msra.mxu0 0
        %1060 = vmatprep.subr.bf16.mxu0 0
        %1061 = vmatpush1.bf16.msra.mxu0 0
        %1062 = vmatprep.subr.bf16.mxu0 0
        %1063 = vmatpush1.bf16.msra.mxu0 0
        %1064 = vmatprep.subr.bf16.mxu0 0
        %1065 = vmatpush1.bf16.msra.mxu0 0
        %1066 = vmatprep.subr.bf16.mxu0 0
        %1067 = vmatpush1.bf16.msra.mxu0 0
        %1068 = vmatprep.subr.bf16.mxu0 0
        %1069 = vmatpush1.bf16.msra.mxu0 0
        %1070 = vmatprep.subr.bf16.mxu0 0
        %1071 = vmatpush1.bf16.msra.mxu0 0
        %1072 = vmatprep.subr.bf16.mxu0 0
        %1073 = vmatpush1.bf16.msra.mxu0 0
        %1074 = vmatprep.subr.bf16.mxu0 0
        %1075 = vmatpush1.bf16.msra.mxu0 0
        %1076 = vmatprep.subr.bf16.mxu0 0
        %1077 = vmatpush1.bf16.msra.mxu0 0
        %1078 = vmatprep.subr.bf16.mxu0 0
        %1079 = vmatpush1.bf16.msra.mxu0 0
        %1080 = vmatprep.subr.bf16.mxu0 0
        %1081 = vmatpush1.bf16.msra.mxu0 0
        %1082 = vmatprep.subr.bf16.mxu0 0
        %1083 = vmatpush1.bf16.msra.mxu0 0
        %1084 = vmatprep.mubr.bf16.mxu0 0
        %1085 = vmatmul.mubr.bf16.gmra.mrb[0].mxu0 %v1050
        %v1086 = vpop.f32.mrb[0].mxu0
        %v1087 = vadd.f32 0.0, %v1086
        %v1088 = vpop.f32.mrb[0].mxu0
        %v1089 = vpop.f32.mrb[0].mxu0
        %v1090 = vpop.f32.mrb[0].mxu0
        %1091 = vdwg.mxu0
        %v1092 = vadd.f32 %v652, %v1087
        %v1093 = vxor.u32 %v1092, 2147483648
        %v1094 = vmul.f32 %v1093, 1.442695
        %v1095 = vpow.pop %v1094
        %v1096 = vadd.f32 %v1095, 1.0
        %v1097 = vrcp.pop %v1096
        %v1098 = vmul.f32 1.0, %v1097
        %v1099 = vtanh.pop %v1092
        %v1101 = vrot.slane %v1021, 4
        %v1103 = vmul.f32 %v1098, %v1101
        %1105 = vrot.lane.b32.xlu0 %v1099, 64
        %v1106 = vpop.permute.xlu0 %1105
        %v1108 = vmul.f32 %v1098, %v1106
        %1110 = vrot.lane.b32.xlu0 %v1108, 32
        %v1111 = vpop.permute.xlu0 %1110
        %v1113 = vadd.f32 %v1103, %v1111
        %v1114 = vtanh.pop %v1113
        %1116 = vrot.lane.b32.xlu0 %v1114, 64
        %v1117 = vpop.permute.xlu0 %1116
        %v1119 = vmul.f32 %v1098, %v1117
        %vm1120 = vcmp.gt.f32.partialorder %v572, 4.0
        %v1121 = vsel %vm1120, 1, 0
        %v1122 = vcvt.s32.f32 %v1121
        %1124 = vset.pattern.permute.xlu0 0
        %1125 = vperm.xlu0 %1124, %v1122
        %v1126 = vpop.permute.xlu0 %1125
        %v1128 = vmul.f32 %v1119, %v1126
        %1130 = vrot.lane.b32.xlu0 %v1128, 32
        %v1131 = vpop.permute.xlu0 %1130
        %1133 = vst.msk [vmem:[#allocation2 + $0x10] sm:$0xf] %vm763, %v1131
        %v1134 = vpack.c.bf16 %v1119, %v1119
        %1136 = vrot.lane.b32.xlu0 %v1134, 32
        %v1137 = vpop.permute.xlu0 %1136
        %v1139 = vsel %vm677, %v1137, 0
        %1141 = vmatprep.subr.bf16.mxu0 0
        %1142 = vmatpush1.bf16.msra.mxu0 %v673
        %1143 = vmatprep.subr.bf16.mxu0 0
        %1144 = vmatpush1.bf16.msra.mxu0 %v674
        %1145 = vmatprep.subr.bf16.mxu0 0
        %1146 = vmatpush1.bf16.msra.mxu0 0
        %1147 = vmatprep.subr.bf16.mxu0 0
        %1148 = vmatpush1.bf16.msra.mxu0 0
        %1149 = vmatprep.subr.bf16.mxu0 0
        %1150 = vmatpush1.bf16.msra.mxu0 0
        %1151 = vmatprep.subr.bf16.mxu0 0
        %1152 = vmatpush1.bf16.msra.mxu0 0
        %1153 = vmatprep.subr.bf16.mxu0 0
        %1154 = vmatpush1.bf16.msra.mxu0 0
        %1155 = vmatprep.subr.bf16.mxu0 0
        %1156 = vmatpush1.bf16.msra.mxu0 0
        %1157 = vmatprep.subr.bf16.mxu0 0
        %1158 = vmatpush1.bf16.msra.mxu0 0
        %1159 = vmatprep.subr.bf16.mxu0 0
        %1160 = vmatpush1.bf16.msra.mxu0 0
        %1161 = vmatprep.subr.bf16.mxu0 0
        %1162 = vmatpush1.bf16.msra.mxu0 0
        %1163 = vmatprep.subr.bf16.mxu0 0
        %1164 = vmatpush1.bf16.msra.mxu0 0
        %1165 = vmatprep.subr.bf16.mxu0 0
        %1166 = vmatpush1.bf16.msra.mxu0 0
        %1167 = vmatprep.subr.bf16.mxu0 0
        %1168 = vmatpush1.bf16.msra.mxu0 0
        %1169 = vmatprep.subr.bf16.mxu0 0
        %1170 = vmatpush1.bf16.msra.mxu0 0
        %1171 = vmatprep.subr.bf16.mxu0 0
        %1172 = vmatpush1.bf16.msra.mxu0 0
        %1173 = vmatprep.mubr.bf16.mxu0 0
        %1174 = vmatmul.mubr.bf16.gmra.mrb[0].mxu0 %v1139
        %v1175 = vpop.f32.mrb[0].mxu0
        %v1176 = vadd.f32 0.0, %v1175
        %v1177 = vpop.f32.mrb[0].mxu0
        %v1178 = vpop.f32.mrb[0].mxu0
        %v1179 = vpop.f32.mrb[0].mxu0
        %1180 = vdwg.mxu0
        %v1182 = vrot.slane %v1176, 4
        %v1184 = vadd.f32 %v652, %v1182
        %v1185 = vxor.u32 %v1184, 2147483648
        %v1186 = vmul.f32 %v1185, 1.442695
        %v1187 = vpow.pop %v1186
        %v1188 = vadd.f32 %v1187, 1.0
        %v1189 = vrcp.pop %v1188
        %v1190 = vmul.f32 1.0, %v1189
        %v1191 = vtanh.pop %v1184
        %v1193 = vrot.slane %v1113, 4
        %v1195 = vmul.f32 %v1190, %v1193
        %1197 = vrot.lane.b32.xlu0 %v1191, 64
        %v1198 = vpop.permute.xlu0 %1197
        %v1200 = vmul.f32 %v1190, %v1198
        %1202 = vrot.lane.b32.xlu0 %v1200, 32
        %v1203 = vpop.permute.xlu0 %1202
        %v1205 = vadd.f32 %v1195, %v1203
        %v1206 = vtanh.pop %v1205
        %1208 = vrot.lane.b32.xlu0 %v1206, 64
        %v1209 = vpop.permute.xlu0 %1208
        %v1211 = vmul.f32 %v1190, %v1209
        %vm1212 = vcmp.gt.f32.partialorder %v572, 5.0
        %v1213 = vsel %vm1212, 1, 0
        %v1214 = vcvt.s32.f32 %v1213
        %1216 = vset.pattern.permute.xlu0 0
        %1217 = vperm.xlu0 %1216, %v1214
        %v1218 = vpop.permute.xlu0 %1217
        %v1220 = vrot.slane %v1218, 4
        %v1222 = vmul.f32 %v1211, %v1220
        %1224 = vrot.lane.b32.xlu0 %v1222, 32
        %v1225 = vpop.permute.xlu0 %1224
        %1227 = vst.msk [vmem:[#allocation2 + $0x10] sm:$0xf0] %vm858, %v1225
        %v1228 = vpack.c.bf16 %v1211, %v1211
        %v1230 = vrot.slane %v1228, 2
        %1231 = vrot.lane.b32.xlu0 %v1230, 32
        %v1232 = vpop.permute.xlu0 %1231
        %v1234 = vsel %vm677, %v1232, 0
        %1236 = vmatprep.subr.bf16.mxu0 0
        %1237 = vmatpush1.bf16.msra.mxu0 %v673
        %1238 = vmatprep.subr.bf16.mxu0 0
        %1239 = vmatpush1.bf16.msra.mxu0 %v674
        %1240 = vmatprep.subr.bf16.mxu0 0
        %1241 = vmatpush1.bf16.msra.mxu0 0
        %1242 = vmatprep.subr.bf16.mxu0 0
        %1243 = vmatpush1.bf16.msra.mxu0 0
        %1244 = vmatprep.subr.bf16.mxu0 0
        %1245 = vmatpush1.bf16.msra.mxu0 0
        %1246 = vmatprep.subr.bf16.mxu0 0
        %1247 = vmatpush1.bf16.msra.mxu0 0
        %1248 = vmatprep.subr.bf16.mxu0 0
        %1249 = vmatpush1.bf16.msra.mxu0 0
        %1250 = vmatprep.subr.bf16.mxu0 0
        %1251 = vmatpush1.bf16.msra.mxu0 0
        %1252 = vmatprep.subr.bf16.mxu0 0
        %1253 = vmatpush1.bf16.msra.mxu0 0
        %1254 = vmatprep.subr.bf16.mxu0 0
        %1255 = vmatpush1.bf16.msra.mxu0 0
        %1256 = vmatprep.subr.bf16.mxu0 0
        %1257 = vmatpush1.bf16.msra.mxu0 0
        %1258 = vmatprep.subr.bf16.mxu0 0
        %1259 = vmatpush1.bf16.msra.mxu0 0
        %1260 = vmatprep.subr.bf16.mxu0 0
        %1261 = vmatpush1.bf16.msra.mxu0 0
        %1262 = vmatprep.subr.bf16.mxu0 0
        %1263 = vmatpush1.bf16.msra.mxu0 0
        %1264 = vmatprep.subr.bf16.mxu0 0
        %1265 = vmatpush1.bf16.msra.mxu0 0
        %1266 = vmatprep.subr.bf16.mxu0 0
        %1267 = vmatpush1.bf16.msra.mxu0 0
        %1268 = vmatprep.mubr.bf16.mxu0 0
        %1269 = vmatmul.mubr.bf16.gmra.mrb[0].mxu0 %v1234
        %v1270 = vpop.f32.mrb[0].mxu0
        %v1271 = vadd.f32 0.0, %v1270
        %v1272 = vpop.f32.mrb[0].mxu0
        %v1273 = vpop.f32.mrb[0].mxu0
        %v1274 = vpop.f32.mrb[0].mxu0
        %1275 = vdwg.mxu0
        %v1276 = vadd.f32 %v655, %v1271
        %v1277 = vxor.u32 %v1276, 2147483648
        %v1278 = vmul.f32 %v1277, 1.442695
        %v1279 = vpow.pop %v1278
        %v1280 = vadd.f32 %v1279, 1.0
        %v1281 = vrcp.pop %v1280
        %v1282 = vmul.f32 1.0, %v1281
        %v1283 = vtanh.pop %v1276
        %v1285 = vrot.slane %v1205, 4
        %v1287 = vmul.f32 %v1282, %v1285
        %1289 = vrot.lane.b32.xlu0 %v1283, 64
        %v1290 = vpop.permute.xlu0 %1289
        %v1292 = vmul.f32 %v1282, %v1290
        %1294 = vrot.lane.b32.xlu0 %v1292, 32
        %v1295 = vpop.permute.xlu0 %1294
        %v1297 = vadd.f32 %v1287, %v1295
        %v1298 = vtanh.pop %v1297
        %1300 = vrot.lane.b32.xlu0 %v1298, 64
        %v1301 = vpop.permute.xlu0 %1300
        %v1303 = vmul.f32 %v1282, %v1301
        %vm1304 = vcmp.gt.f32.partialorder %v572, 6.0
        %v1305 = vsel %vm1304, 1, 0
        %v1306 = vcvt.s32.f32 %v1305
        %1308 = vset.pattern.permute.xlu0 0
        %1309 = vperm.xlu0 %1308, %v1306
        %v1310 = vpop.permute.xlu0 %1309
        %v1312 = vmul.f32 %v1303, %v1310
        %1314 = vrot.lane.b32.xlu0 %v1312, 32
        %v1315 = vpop.permute.xlu0 %1314
        %1317 = vst.msk [vmem:[#allocation2 + $0x18] sm:$0xf] %vm763, %v1315
        %v1318 = vpack.c.bf16 %v1303, %v1303
        %1320 = vrot.lane.b32.xlu0 %v1318, 32
        %v1321 = vpop.permute.xlu0 %1320
        %v1323 = vsel %vm677, %v1321, 0
        %1325 = vmatprep.subr.bf16.mxu0 0
        %1326 = vmatpush1.bf16.msra.mxu0 %v673
        %1327 = vmatprep.subr.bf16.mxu0 0
        %1328 = vmatpush1.bf16.msra.mxu0 %v674
        %1329 = vmatprep.subr.bf16.mxu0 0
        %1330 = vmatpush1.bf16.msra.mxu0 0
        %1331 = vmatprep.subr.bf16.mxu0 0
        %1332 = vmatpush1.bf16.msra.mxu0 0
        %1333 = vmatprep.subr.bf16.mxu0 0
        %1334 = vmatpush1.bf16.msra.mxu0 0
        %1335 = vmatprep.subr.bf16.mxu0 0
        %1336 = vmatpush1.bf16.msra.mxu0 0
        %1337 = vmatprep.subr.bf16.mxu0 0
        %1338 = vmatpush1.bf16.msra.mxu0 0
        %1339 = vmatprep.subr.bf16.mxu0 0
        %1340 = vmatpush1.bf16.msra.mxu0 0
        %1341 = vmatprep.subr.bf16.mxu0 0
        %1342 = vmatpush1.bf16.msra.mxu0 0
        %1343 = vmatprep.subr.bf16.mxu0 0
        %1344 = vmatpush1.bf16.msra.mxu0 0
        %1345 = vmatprep.subr.bf16.mxu0 0
        %1346 = vmatpush1.bf16.msra.mxu0 0
        %1347 = vmatprep.subr.bf16.mxu0 0
        %1348 = vmatpush1.bf16.msra.mxu0 0
        %1349 = vmatprep.subr.bf16.mxu0 0
        %1350 = vmatpush1.bf16.msra.mxu0 0
        %1351 = vmatprep.subr.bf16.mxu0 0
        %1352 = vmatpush1.bf16.msra.mxu0 0
        %1353 = vmatprep.subr.bf16.mxu0 0
        %1354 = vmatpush1.bf16.msra.mxu0 0
        %1355 = vmatprep.subr.bf16.mxu0 0
        %1356 = vmatpush1.bf16.msra.mxu0 0
        %1357 = vmatprep.mubr.bf16.mxu0 0
        %1358 = vmatmul.mubr.bf16.gmra.mrb[0].mxu0 %v1323
        %v1359 = vpop.f32.mrb[0].mxu0
        %v1360 = vadd.f32 0.0, %v1359
        %v1361 = vpop.f32.mrb[0].mxu0
        %v1362 = vpop.f32.mrb[0].mxu0
        %v1363 = vpop.f32.mrb[0].mxu0
        %1364 = vdwg.mxu0
        %v1366 = vrot.slane %v1360, 4
        %v1368 = vadd.f32 %v655, %v1366
        %v1369 = vxor.u32 %v1368, 2147483648
        %v1370 = vmul.f32 %v1369, 1.442695
        %v1371 = vpow.pop %v1370
        %v1372 = vadd.f32 %v1371, 1.0
        %v1373 = vrcp.pop %v1372
        %v1374 = vmul.f32 1.0, %v1373
        %v1375 = vtanh.pop %v1368
        %v1377 = vrot.slane %v1297, 4
        %v1379 = vmul.f32 %v1374, %v1377
        %1381 = vrot.lane.b32.xlu0 %v1375, 64
        %v1382 = vpop.permute.xlu0 %1381
        %v1384 = vmul.f32 %v1374, %v1382
        %1386 = vrot.lane.b32.xlu0 %v1384, 32
        %v1387 = vpop.permute.xlu0 %1386
        %v1389 = vadd.f32 %v1379, %v1387
        %v1390 = vtanh.pop %v1389
        %1392 = vrot.lane.b32.xlu0 %v1390, 64
        %v1393 = vpop.permute.xlu0 %1392
        %v1395 = vmul.f32 %v1374, %v1393
        %vm1396 = vcmp.gt.f32.partialorder %v572, 7.0
        %v1397 = vsel %vm1396, 1, 0
        %v1398 = vcvt.s32.f32 %v1397
        %1400 = vset.pattern.permute.xlu0 0
        %1401 = vperm.xlu0 %1400, %v1398
        %v1402 = vpop.permute.xlu0 %1401
        %v1404 = vrot.slane %v1402, 4
        %v1406 = vmul.f32 %v1395, %v1404
        %1408 = vrot.lane.b32.xlu0 %v1406, 32
        %v1409 = vpop.permute.xlu0 %1408
        %1411 = vst.msk [vmem:[#allocation2 + $0x18] sm:$0xf0] %vm858, %v1409
        %v1412 = vld [vmem:[#allocation2] ss:$4 sm:$0xff]
        %s1413 = scalar_lea.vmem [#allocation2], 2
        %v1414 = vld [vmem:[%s1413] ss:$4 sm:$0xff]
        %v1415 = vpack.c.bf16 %v1412, %v1412
        %v1416 = vpack.c.bf16 %v1414, %v1414
        %v1418 = vsel %vm677, %v1415, 0
        %v1421 = vsel %vm677, %v1416, 0
        %1423 = vmatprep.subr.bf16.mxu0 0
        %1424 = vmatpush1.bf16.xpose.msra.mxu0 %v1421
        %1425 = vmatprep.subr.bf16.mxu0 0
        %1426 = vmatpush1.bf16.xpose.msra.mxu0 0
        %1427 = vmatprep.subr.bf16.mxu0 0
        %1428 = vmatpush1.bf16.xpose.msra.mxu0 0
        %1429 = vmatprep.subr.bf16.mxu0 0
        %1430 = vmatpush1.bf16.xpose.msra.mxu0 0
        %1431 = vmatprep.subr.bf16.mxu0 0
        %1432 = vmatpush1.bf16.xpose.msra.mxu0 0
        %1433 = vmatprep.subr.bf16.mxu0 0
        %1434 = vmatpush1.bf16.xpose.msra.mxu0 0
        %1435 = vmatprep.subr.bf16.mxu0 0
        %1436 = vmatpush1.bf16.xpose.msra.mxu0 0
        %1437 = vmatprep.subr.bf16.mxu0 0
        %1438 = vmatpush1.bf16.xpose.msra.mxu0 0
        %1439 = vmatprep.subr.bf16.mxu0 0
        %1440 = vmatpush1.bf16.xpose.msra.mxu0 0
        %1441 = vmatprep.subr.bf16.mxu0 0
        %1442 = vmatpush1.bf16.xpose.msra.mxu0 0
        %1443 = vmatprep.subr.bf16.mxu0 0
        %1444 = vmatpush1.bf16.xpose.msra.mxu0 0
        %1445 = vmatprep.subr.bf16.mxu0 0
        %1446 = vmatpush1.bf16.xpose.msra.mxu0 0
        %1447 = vmatprep.subr.bf16.mxu0 0
        %1448 = vmatpush1.bf16.xpose.msra.mxu0 0
        %1449 = vmatprep.subr.bf16.mxu0 0
        %1450 = vmatpush1.bf16.xpose.msra.mxu0 0
        %1451 = vmatprep.subr.bf16.mxu0 0
        %1452 = vmatpush1.bf16.xpose.msra.mxu0 0
        %1453 = vmatprep.subr.bf16.mxu0 0
        %1454 = vmatpush1.bf16.xpose.msra.mxu0 0
        %1455 = vmatprep.mubr.bf16.mxu0 0
        %1456 = vmatmul.mubr.bf16.gmra.mrb[0].mxu0 %v1418
        %v1457 = vpop.f32.mrb[0].mxu0
        %v1458 = vadd.f32 0.0, %v1457
        %v1459 = vpop.f32.mrb[0].mxu0
        %v1460 = vpop.f32.mrb[0].mxu0
        %v1461 = vpop.f32.mrb[0].mxu0
        %1462 = vdwg.mxu0
        %1463 = vmatprep.subr.bf16.mxu0 0
        %1464 = vmatpush1.bf16.xpose.msra.mxu0 %v1418
        %1465 = vmatprep.subr.bf16.mxu0 0
        %1466 = vmatpush1.bf16.xpose.msra.mxu0 0
        %1467 = vmatprep.subr.bf16.mxu0 0
        %1468 = vmatpush1.bf16.xpose.msra.mxu0 0
        %1469 = vmatprep.subr.bf16.mxu0 0
        %1470 = vmatpush1.bf16.xpose.msra.mxu0 0
        %1471 = vmatprep.subr.bf16.mxu0 0
        %1472 = vmatpush1.bf16.xpose.msra.mxu0 0
        %1473 = vmatprep.subr.bf16.mxu0 0
        %1474 = vmatpush1.bf16.xpose.msra.mxu0 0
        %1475 = vmatprep.subr.bf16.mxu0 0
        %1476 = vmatpush1.bf16.xpose.msra.mxu0 0
        %1477 = vmatprep.subr.bf16.mxu0 0
        %1478 = vmatpush1.bf16.xpose.msra.mxu0 0
        %1479 = vmatprep.subr.bf16.mxu0 0
        %1480 = vmatpush1.bf16.xpose.msra.mxu0 0
        %1481 = vmatprep.subr.bf16.mxu0 0
        %1482 = vmatpush1.bf16.xpose.msra.mxu0 0
        %1483 = vmatprep.subr.bf16.mxu0 0
        %1484 = vmatpush1.bf16.xpose.msra.mxu0 0
        %1485 = vmatprep.subr.bf16.mxu0 0
        %1486 = vmatpush1.bf16.xpose.msra.mxu0 0
        %1487 = vmatprep.subr.bf16.mxu0 0
        %1488 = vmatpush1.bf16.xpose.msra.mxu0 0
        %1489 = vmatprep.subr.bf16.mxu0 0
        %1490 = vmatpush1.bf16.xpose.msra.mxu0 0
        %1491 = vmatprep.subr.bf16.mxu0 0
        %1492 = vmatpush1.bf16.xpose.msra.mxu0 0
        %1493 = vmatprep.subr.bf16.mxu0 0
        %1494 = vmatpush1.bf16.xpose.msra.mxu0 0
        %1495 = vmatprep.mubr.bf16.mxu0 0
        %1496 = vmatmul.mubr.bf16.gmra.mrb[0].mxu0 %v1421
        %v1497 = vpop.f32.mrb[0].mxu0
        %v1498 = vadd.f32 0.0, %v1497
        %v1499 = vpop.f32.mrb[0].mxu0
        %v1500 = vpop.f32.mrb[0].mxu0
        %v1501 = vpop.f32.mrb[0].mxu0
        %1502 = vdwg.mxu0
        %vm1503 = vcmask 64512
        %v1504 = vsel %vm1503, %v1458, -inf
        %1505 = vmax.xlane.f32.xlu0 %v1504
        %v1506 = vpop.xlane.xlu0 %1505
        %v1507 = vsub.f32 %v1458, %v1506
        %v1508 = vmul.f32 %v1507, 1.442695
        %v1509 = vpow.pop %v1508
        %v1510 = vsel %vm1503, %v1509, 0.0
        %1511 = vadd.xlane.f32.xlu0 %v1510
        %v1512 = vpop.xlane.xlu0 %1511
        %v1513 = vrcp.pop %v1512
        %v1514 = vmul.f32 %v1509, %v1513
        %v1515 = vpack.c.bf16 %v1514, %v1514
        %v1517 = vsel %vm1503, %v1515, 0
        %vm1519 = vcmask 1043456
        %v1520 = vsel %vm1519, %v1415, 0
        %1522 = vmatprep.subr.bf16.mxu0 0
        %1523 = vmatpush1.bf16.msra.mxu0 %v1520
        %1524 = vmatprep.subr.bf16.mxu0 0
        %1525 = vmatpush1.bf16.msra.mxu0 0
        %1526 = vmatprep.subr.bf16.mxu0 0
        %1527 = vmatpush1.bf16.msra.mxu0 0
        %1528 = vmatprep.subr.bf16.mxu0 0
        %1529 = vmatpush1.bf16.msra.mxu0 0
        %1530 = vmatprep.subr.bf16.mxu0 0
        %1531 = vmatpush1.bf16.msra.mxu0 0
        %1532 = vmatprep.subr.bf16.mxu0 0
        %1533 = vmatpush1.bf16.msra.mxu0 0
        %1534 = vmatprep.subr.bf16.mxu0 0
        %1535 = vmatpush1.bf16.msra.mxu0 0
        %1536 = vmatprep.subr.bf16.mxu0 0
        %1537 = vmatpush1.bf16.msra.mxu0 0
        %1538 = vmatprep.subr.bf16.mxu0 0
        %1539 = vmatpush1.bf16.msra.mxu0 0
        %1540 = vmatprep.subr.bf16.mxu0 0
        %1541 = vmatpush1.bf16.msra.mxu0 0
        %1542 = vmatprep.subr.bf16.mxu0 0
        %1543 = vmatpush1.bf16.msra.mxu0 0
        %1544 = vmatprep.subr.bf16.mxu0 0
        %1545 = vmatpush1.bf16.msra.mxu0 0
        %1546 = vmatprep.subr.bf16.mxu0 0
        %1547 = vmatpush1.bf16.msra.mxu0 0
        %1548 = vmatprep.subr.bf16.mxu0 0
        %1549 = vmatpush1.bf16.msra.mxu0 0
        %1550 = vmatprep.subr.bf16.mxu0 0
        %1551 = vmatpush1.bf16.msra.mxu0 0
        %1552 = vmatprep.subr.bf16.mxu0 0
        %1553 = vmatpush1.bf16.msra.mxu0 0
        %1554 = vmatprep.mubr.bf16.mxu0 0
        %1555 = vmatmul.mubr.bf16.gmra.mrb[0].mxu0 %v1517
        %v1556 = vpop.f32.mrb[0].mxu0
        %v1557 = vadd.f32 0.0, %v1556
        %v1558 = vpop.f32.mrb[0].mxu0
        %v1559 = vpop.f32.mrb[0].mxu0
        %v1560 = vpop.f32.mrb[0].mxu0
        %1561 = vdwg.mxu0
        %v1562 = vsel %vm1503, %v1498, -inf
        %1563 = vmax.xlane.f32.xlu0 %v1562
        %v1564 = vpop.xlane.xlu0 %1563
        %v1565 = vsub.f32 %v1498, %v1564
        %v1566 = vmul.f32 %v1565, 1.442695
        %v1567 = vpow.pop %v1566
        %v1568 = vsel %vm1503, %v1567, 0.0
        %1569 = vadd.xlane.f32.xlu0 %v1568
        %v1570 = vpop.xlane.xlu0 %1569
        %v1571 = vrcp.pop %v1570
        %v1572 = vmul.f32 %v1567, %v1571
        %v1573 = vpack.c.bf16 %v1572, %v1572
        %v1575 = vsel %vm1503, %v1573, 0
        %v1577 = vsel %vm1519, %v1416, 0
        %1579 = vmatprep.subr.bf16.mxu0 0
        %1580 = vmatpush1.bf16.msra.mxu0 %v1577
        %1581 = vmatprep.subr.bf16.mxu0 0
        %1582 = vmatpush1.bf16.msra.mxu0 0
        %1583 = vmatprep.subr.bf16.mxu0 0
        %1584 = vmatpush1.bf16.msra.mxu0 0
        %1585 = vmatprep.subr.bf16.mxu0 0
        %1586 = vmatpush1.bf16.msra.mxu0 0
        %1587 = vmatprep.subr.bf16.mxu0 0
        %1588 = vmatpush1.bf16.msra.mxu0 0
        %1589 = vmatprep.subr.bf16.mxu0 0
        %1590 = vmatpush1.bf16.msra.mxu0 0
        %1591 = vmatprep.subr.bf16.mxu0 0
        %1592 = vmatpush1.bf16.msra.mxu0 0
        %1593 = vmatprep.subr.bf16.mxu0 0
        %1594 = vmatpush1.bf16.msra.mxu0 0
        %1595 = vmatprep.subr.bf16.mxu0 0
        %1596 = vmatpush1.bf16.msra.mxu0 0
        %1597 = vmatprep.subr.bf16.mxu0 0
        %1598 = vmatpush1.bf16.msra.mxu0 0
        %1599 = vmatprep.subr.bf16.mxu0 0
        %1600 = vmatpush1.bf16.msra.mxu0 0
        %1601 = vmatprep.subr.bf16.mxu0 0
        %1602 = vmatpush1.bf16.msra.mxu0 0
        %1603 = vmatprep.subr.bf16.mxu0 0
        %1604 = vmatpush1.bf16.msra.mxu0 0
        %1605 = vmatprep.subr.bf16.mxu0 0
        %1606 = vmatpush1.bf16.msra.mxu0 0
        %1607 = vmatprep.subr.bf16.mxu0 0
        %1608 = vmatpush1.bf16.msra.mxu0 0
        %1609 = vmatprep.subr.bf16.mxu0 0
        %1610 = vmatpush1.bf16.msra.mxu0 0
        %1611 = vmatprep.mubr.bf16.mxu0 0
        %1612 = vmatmul.mubr.bf16.gmra.mrb[0].mxu0 %v1575
        %v1613 = vpop.f32.mrb[0].mxu0
        %v1614 = vadd.f32 0.0, %v1613
        %v1615 = vpop.f32.mrb[0].mxu0
        %v1616 = vpop.f32.mrb[0].mxu0
        %v1617 = vpop.f32.mrb[0].mxu0
        %1618 = vdwg.mxu0
        %v1619 = vsub.f32 %v1412, %v1557
        %v1620 = vmul.f32 %v1412, %v1557
        %1622 = vrot.lane.b32.xlu0 %v1557, 32
        %v1623 = vpop.permute.xlu0 %1622
        %1626 = vrot.lane.b32.xlu0 %v1619, 64
        %v1627 = vpop.permute.xlu0 %1626
        %1630 = vrot.lane.b32.xlu0 %v1620, 96
        %v1631 = vpop.permute.xlu0 %1630
        %v1633 = vsel %vm677, %v1412, %v1623
        %vm1634 = vcmask 523264
        %v1635 = vsel %vm1634, %v1633, %v1627
        %vm1636 = vcmask 785408
        %v1637 = vsel %vm1636, %v1635, %v1631
        %v1638 = vsub.f32 %v1414, %v1614
        %v1639 = vmul.f32 %v1414, %v1614
        %1641 = vrot.lane.b32.xlu0 %v1614, 32
        %v1642 = vpop.permute.xlu0 %1641
        %1645 = vrot.lane.b32.xlu0 %v1638, 64
        %v1646 = vpop.permute.xlu0 %1645
        %1649 = vrot.lane.b32.xlu0 %v1639, 96
        %v1650 = vpop.permute.xlu0 %1649
        %v1652 = vsel %vm677, %v1414, %v1642
        %v1653 = vsel %vm1634, %v1652, %v1646
        %v1654 = vsel %vm1636, %v1653, %v1650
        %1655 = vst [vmem:[#allocation3] sm:$0xff] %v1637
        %1656 = vst [vmem:[#allocation3 + $0x10] sm:$0xff] %v1654
        %s1657 = scalar_lea.vmem [#allocation2], 1
        %v1658 = vld [vmem:[%s1657] ss:$4 sm:$0xff]
        %s1659 = scalar_lea.vmem [#allocation2], 3
        %v1660 = vld [vmem:[%s1659] ss:$4 sm:$0xff]
        %v1661 = vpack.c.bf16 %v1658, %v1658
        %v1662 = vpack.c.bf16 %v1660, %v1660
        %v1664 = vsel %vm677, %v1661, 0
        %v1667 = vsel %vm677, %v1662, 0
        %1669 = vmatprep.subr.bf16.mxu0 0
        %1670 = vmatpush1.bf16.xpose.msra.mxu0 %v1667
        %1671 = vmatprep.subr.bf16.mxu0 0
        %1672 = vmatpush1.bf16.xpose.msra.mxu0 0
        %1673 = vmatprep.subr.bf16.mxu0 0
        %1674 = vmatpush1.bf16.xpose.msra.mxu0 0
        %1675 = vmatprep.subr.bf16.mxu0 0
        %1676 = vmatpush1.bf16.xpose.msra.mxu0 0
        %1677 = vmatprep.subr.bf16.mxu0 0
        %1678 = vmatpush1.bf16.xpose.msra.mxu0 0
        %1679 = vmatprep.subr.bf16.mxu0 0
        %1680 = vmatpush1.bf16.xpose.msra.mxu0 0
        %1681 = vmatprep.subr.bf16.mxu0 0
        %1682 = vmatpush1.bf16.xpose.msra.mxu0 0
        %1683 = vmatprep.subr.bf16.mxu0 0
        %1684 = vmatpush1.bf16.xpose.msra.mxu0 0
        %1685 = vmatprep.subr.bf16.mxu0 0
        %1686 = vmatpush1.bf16.xpose.msra.mxu0 0
        %1687 = vmatprep.subr.bf16.mxu0 0
        %1688 = vmatpush1.bf16.xpose.msra.mxu0 0
        %1689 = vmatprep.subr.bf16.mxu0 0
        %1690 = vmatpush1.bf16.xpose.msra.mxu0 0
        %1691 = vmatprep.subr.bf16.mxu0 0
        %1692 = vmatpush1.bf16.xpose.msra.mxu0 0
        %1693 = vmatprep.subr.bf16.mxu0 0
        %1694 = vmatpush1.bf16.xpose.msra.mxu0 0
        %1695 = vmatprep.subr.bf16.mxu0 0
        %1696 = vmatpush1.bf16.xpose.msra.mxu0 0
        %1697 = vmatprep.subr.bf16.mxu0 0
        %1698 = vmatpush1.bf16.xpose.msra.mxu0 0
        %1699 = vmatprep.subr.bf16.mxu0 0
        %1700 = vmatpush1.bf16.xpose.msra.mxu0 0
        %1701 = vmatprep.mubr.bf16.mxu0 0
        %1702 = vmatmul.mubr.bf16.gmra.mrb[0].mxu0 %v1664
        %v1703 = vpop.f32.mrb[0].mxu0
        %v1704 = vadd.f32 0.0, %v1703
        %v1705 = vpop.f32.mrb[0].mxu0
        %v1706 = vpop.f32.mrb[0].mxu0
        %v1707 = vpop.f32.mrb[0].mxu0
        %1708 = vdwg.mxu0
        %1709 = vmatprep.subr.bf16.mxu0 0
        %1710 = vmatpush1.bf16.xpose.msra.mxu0 %v1664
        %1711 = vmatprep.subr.bf16.mxu0 0
        %1712 = vmatpush1.bf16.xpose.msra.mxu0 0
        %1713 = vmatprep.subr.bf16.mxu0 0
        %1714 = vmatpush1.bf16.xpose.msra.mxu0 0
        %1715 = vmatprep.subr.bf16.mxu0 0
        %1716 = vmatpush1.bf16.xpose.msra.mxu0 0
        %1717 = vmatprep.subr.bf16.mxu0 0
        %1718 = vmatpush1.bf16.xpose.msra.mxu0 0
        %1719 = vmatprep.subr.bf16.mxu0 0
        %1720 = vmatpush1.bf16.xpose.msra.mxu0 0
        %1721 = vmatprep.subr.bf16.mxu0 0
        %1722 = vmatpush1.bf16.xpose.msra.mxu0 0
        %1723 = vmatprep.subr.bf16.mxu0 0
        %1724 = vmatpush1.bf16.xpose.msra.mxu0 0
        %1725 = vmatprep.subr.bf16.mxu0 0
        %1726 = vmatpush1.bf16.xpose.msra.mxu0 0
        %1727 = vmatprep.subr.bf16.mxu0 0
        %1728 = vmatpush1.bf16.xpose.msra.mxu0 0
        %1729 = vmatprep.subr.bf16.mxu0 0
        %1730 = vmatpush1.bf16.xpose.msra.mxu0 0
        %1731 = vmatprep.subr.bf16.mxu0 0
        %1732 = vmatpush1.bf16.xpose.msra.mxu0 0
        %1733 = vmatprep.subr.bf16.mxu0 0
        %1734 = vmatpush1.bf16.xpose.msra.mxu0 0
        %1735 = vmatprep.subr.bf16.mxu0 0
        %1736 = vmatpush1.bf16.xpose.msra.mxu0 0
        %1737 = vmatprep.subr.bf16.mxu0 0
        %1738 = vmatpush1.bf16.xpose.msra.mxu0 0
        %1739 = vmatprep.subr.bf16.mxu0 0
        %1740 = vmatpush1.bf16.xpose.msra.mxu0 0
        %1741 = vmatprep.mubr.bf16.mxu0 0
        %1742 = vmatmul.mubr.bf16.gmra.mrb[0].mxu0 %v1667
        %v1743 = vpop.f32.mrb[0].mxu0
        %v1744 = vadd.f32 0.0, %v1743
        %v1745 = vpop.f32.mrb[0].mxu0
        %v1746 = vpop.f32.mrb[0].mxu0
        %v1747 = vpop.f32.mrb[0].mxu0
        %1748 = vdwg.mxu0
        %v1749 = vsel %vm1503, %v1704, -inf
        %1750 = vmax.xlane.f32.xlu0 %v1749
        %v1751 = vpop.xlane.xlu0 %1750
        %v1752 = vsub.f32 %v1704, %v1751
        %v1753 = vmul.f32 %v1752, 1.442695
        %v1754 = vpow.pop %v1753
        %v1755 = vsel %vm1503, %v1754, 0.0
        %1756 = vadd.xlane.f32.xlu0 %v1755
        %v1757 = vpop.xlane.xlu0 %1756
        %v1758 = vrcp.pop %v1757
        %v1759 = vmul.f32 %v1754, %v1758
        %v1760 = vpack.c.bf16 %v1759, %v1759
        %v1762 = vsel %vm1503, %v1760, 0
        %v1764 = vsel %vm1519, %v1661, 0
        %1766 = vmatprep.subr.bf16.mxu0 0
        %1767 = vmatpush1.bf16.msra.mxu0 %v1764
        %1768 = vmatprep.subr.bf16.mxu0 0
        %1769 = vmatpush1.bf16.msra.mxu0 0
        %1770 = vmatprep.subr.bf16.mxu0 0
        %1771 = vmatpush1.bf16.msra.mxu0 0
        %1772 = vmatprep.subr.bf16.mxu0 0
        %1773 = vmatpush1.bf16.msra.mxu0 0
        %1774 = vmatprep.subr.bf16.mxu0 0
        %1775 = vmatpush1.bf16.msra.mxu0 0
        %1776 = vmatprep.subr.bf16.mxu0 0
        %1777 = vmatpush1.bf16.msra.mxu0 0
        %1778 = vmatprep.subr.bf16.mxu0 0
        %1779 = vmatpush1.bf16.msra.mxu0 0
        %1780 = vmatprep.subr.bf16.mxu0 0
        %1781 = vmatpush1.bf16.msra.mxu0 0
        %1782 = vmatprep.subr.bf16.mxu0 0
        %1783 = vmatpush1.bf16.msra.mxu0 0
        %1784 = vmatprep.subr.bf16.mxu0 0
        %1785 = vmatpush1.bf16.msra.mxu0 0
        %1786 = vmatprep.subr.bf16.mxu0 0
        %1787 = vmatpush1.bf16.msra.mxu0 0
        %1788 = vmatprep.subr.bf16.mxu0 0
        %1789 = vmatpush1.bf16.msra.mxu0 0
        %1790 = vmatprep.subr.bf16.mxu0 0
        %1791 = vmatpush1.bf16.msra.mxu0 0
        %1792 = vmatprep.subr.bf16.mxu0 0
        %1793 = vmatpush1.bf16.msra.mxu0 0
        %1794 = vmatprep.subr.bf16.mxu0 0
        %1795 = vmatpush1.bf16.msra.mxu0 0
        %1796 = vmatprep.subr.bf16.mxu0 0
        %1797 = vmatpush1.bf16.msra.mxu0 0
        %1798 = vmatprep.mubr.bf16.mxu0 0
        %1799 = vmatmul.mubr.bf16.gmra.mrb[0].mxu0 %v1762
        %v1800 = vpop.f32.mrb[0].mxu0
        %v1801 = vadd.f32 0.0, %v1800
        %v1802 = vpop.f32.mrb[0].mxu0
        %v1803 = vpop.f32.mrb[0].mxu0
        %v1804 = vpop.f32.mrb[0].mxu0
        %1805 = vdwg.mxu0
        %v1806 = vsel %vm1503, %v1744, -inf
        %1807 = vmax.xlane.f32.xlu0 %v1806
        %v1808 = vpop.xlane.xlu0 %1807
        %v1809 = vsub.f32 %v1744, %v1808
        %v1810 = vmul.f32 %v1809, 1.442695
        %v1811 = vpow.pop %v1810
        %v1812 = vsel %vm1503, %v1811, 0.0
        %1813 = vadd.xlane.f32.xlu0 %v1812
        %v1814 = vpop.xlane.xlu0 %1813
        %v1815 = vrcp.pop %v1814
        %v1816 = vmul.f32 %v1811, %v1815
        %v1817 = vpack.c.bf16 %v1816, %v1816
        %v1819 = vsel %vm1503, %v1817, 0
        %v1821 = vsel %vm1519, %v1662, 0
        %1823 = vmatprep.subr.bf16.mxu0 0
        %1824 = vmatpush1.bf16.msra.mxu0 %v1821
        %1825 = vmatprep.subr.bf16.mxu0 0
        %1826 = vmatpush1.bf16.msra.mxu0 0
        %1827 = vmatprep.subr.bf16.mxu0 0
        %1828 = vmatpush1.bf16.msra.mxu0 0
        %1829 = vmatprep.subr.bf16.mxu0 0
        %1830 = vmatpush1.bf16.msra.mxu0 0
        %1831 = vmatprep.subr.bf16.mxu0 0
        %1832 = vmatpush1.bf16.msra.mxu0 0
        %1833 = vmatprep.subr.bf16.mxu0 0
        %1834 = vmatpush1.bf16.msra.mxu0 0
        %1835 = vmatprep.subr.bf16.mxu0 0
        %1836 = vmatpush1.bf16.msra.mxu0 0
        %1837 = vmatprep.subr.bf16.mxu0 0
        %1838 = vmatpush1.bf16.msra.mxu0 0
        %1839 = vmatprep.subr.bf16.mxu0 0
        %1840 = vmatpush1.bf16.msra.mxu0 0
        %1841 = vmatprep.subr.bf16.mxu0 0
        %1842 = vmatpush1.bf16.msra.mxu0 0
        %1843 = vmatprep.subr.bf16.mxu0 0
        %1844 = vmatpush1.bf16.msra.mxu0 0
        %1845 = vmatprep.subr.bf16.mxu0 0
        %1846 = vmatpush1.bf16.msra.mxu0 0
        %1847 = vmatprep.subr.bf16.mxu0 0
        %1848 = vmatpush1.bf16.msra.mxu0 0
        %1849 = vmatprep.subr.bf16.mxu0 0
        %1850 = vmatpush1.bf16.msra.mxu0 0
        %1851 = vmatprep.subr.bf16.mxu0 0
        %1852 = vmatpush1.bf16.msra.mxu0 0
        %1853 = vmatprep.subr.bf16.mxu0 0
        %1854 = vmatpush1.bf16.msra.mxu0 0
        %1855 = vmatprep.mubr.bf16.mxu0 0
        %1856 = vmatmul.mubr.bf16.gmra.mrb[0].mxu0 %v1819
        %v1857 = vpop.f32.mrb[0].mxu0
        %v1858 = vadd.f32 0.0, %v1857
        %v1859 = vpop.f32.mrb[0].mxu0
        %v1860 = vpop.f32.mrb[0].mxu0
        %v1861 = vpop.f32.mrb[0].mxu0
        %1862 = vdwg.mxu0
        %v1863 = vsub.f32 %v1658, %v1801
        %v1864 = vmul.f32 %v1658, %v1801
        %1866 = vrot.lane.b32.xlu0 %v1801, 32
        %v1867 = vpop.permute.xlu0 %1866
        %1870 = vrot.lane.b32.xlu0 %v1863, 64
        %v1871 = vpop.permute.xlu0 %1870
        %1874 = vrot.lane.b32.xlu0 %v1864, 96
        %v1875 = vpop.permute.xlu0 %1874
        %v1877 = vsel %vm677, %v1658, %v1867
        %v1878 = vsel %vm1634, %v1877, %v1871
        %v1879 = vsel %vm1636, %v1878, %v1875
        %v1880 = vsub.f32 %v1660, %v1858
        %v1881 = vmul.f32 %v1660, %v1858
        %1883 = vrot.lane.b32.xlu0 %v1858, 32
        %v1884 = vpop.permute.xlu0 %1883
        %1887 = vrot.lane.b32.xlu0 %v1880, 64
        %v1888 = vpop.permute.xlu0 %1887
        %1891 = vrot.lane.b32.xlu0 %v1881, 96
        %v1892 = vpop.permute.xlu0 %1891
        %v1894 = vsel %vm677, %v1660, %v1884
        %v1895 = vsel %vm1634, %v1894, %v1888
        %v1896 = vsel %vm1636, %v1895, %v1892
        %1897 = vst [vmem:[#allocation3 + $0x8] sm:$0xff] %v1879
        %1898 = vst [vmem:[#allocation3 + $0x18] sm:$0xff] %v1896
        %v1899 = vld [vmem:[#allocation3] sm:$0xff]
        %v1900 = vld [vmem:[#allocation3 + $0x8] sm:$0xff]
        %v1901 = vld [vmem:[#allocation3 + $0x10] sm:$0xff]
        %v1902 = vld [vmem:[#allocation3 + $0x18] sm:$0xff]
        %v1903 = vld [vmem:[%s7] sm:$0xf]
        %v1904 = vld [vmem:[%s7 + $0x4] sm:$0xf]
        %v1905 = vld [vmem:[%s7 + $0x8] sm:$0xf]
        %v1906 = vld [vmem:[%s7 + $0xc] sm:$0xf]
        %v1907 = vld [vmem:[%s7 + $0x10] sm:$0xf]
        %v1908 = vld [vmem:[%s7 + $0x14] sm:$0xf]
        %v1909 = vld [vmem:[%s7 + $0x18] sm:$0xf]
        %v1910 = vld [vmem:[%s7 + $0x1c] sm:$0xf]
        %v1911 = vld [vmem:[%s7 + $0x20] sm:$0xf]
        %v1912 = vld [vmem:[%s7 + $0x24] sm:$0xf]
        %v1913 = vld [vmem:[%s7 + $0x28] sm:$0xf]
        %v1914 = vld [vmem:[%s7 + $0x2c] sm:$0xf]
        %v1915 = vld [vmem:[%s7 + $0x30] sm:$0xf]
        %v1916 = vld [vmem:[%s7 + $0x34] sm:$0xf]
        %v1917 = vld [vmem:[%s7 + $0x38] sm:$0xf]
        %v1918 = vld [vmem:[%s7 + $0x3c] sm:$0xf]
        %v1919 = vpack.c.bf16 %v1900, %v1899
        %v1920 = vpack.c.bf16 %v1902, %v1901
        %v1921 = vld [vmem:[%s8] sm:$0x1]
        %v1923 = vlaneseq
        %v1924 = vshrl.u32 %v1923, 7
        %v1925 = vsub.s32 0, %v1924
        %v1926 = vrot.slane %v1921, %v1925
        %v1944 = vunpack.c.l.b16 %v1903
        %v1945 = vunpack.c.l.b16 %v1904
        %v1946 = vunpack.c.l.b16 %v1905
        %v1947 = vunpack.c.l.b16 %v1906
        %v1948 = vunpack.c.l.b16 %v1907
        %v1949 = vunpack.c.l.b16 %v1908
        %v1950 = vunpack.c.l.b16 %v1909
        %v1951 = vunpack.c.l.b16 %v1910
        %v1952 = vunpack.c.l.b16 %v1911
        %v1953 = vunpack.c.l.b16 %v1912
        %v1954 = vunpack.c.l.b16 %v1913
        %v1955 = vunpack.c.l.b16 %v1914
        %v1956 = vunpack.c.l.b16 %v1915
        %v1957 = vunpack.c.l.b16 %v1916
        %v1958 = vunpack.c.l.b16 %v1917
        %v1959 = vunpack.c.l.b16 %v1918
        %v1960 = vpack.c.b16 %v1945, %v1944
        %v1961 = vpack.c.b16 %v1947, %v1946
        %v1962 = vpack.c.b16 %v1949, %v1948
        %v1963 = vpack.c.b16 %v1951, %v1950
        %v1964 = vpack.c.b16 %v1953, %v1952
        %v1965 = vpack.c.b16 %v1955, %v1954
        %v1966 = vpack.c.b16 %v1957, %v1956
        %v1967 = vpack.c.b16 %v1959, %v1958
        %1976 = vmatprep.subr.bf16.mxu0 0
        %1977 = vmatpush1.bf16.msra.mxu0 %v1960
        %1978 = vmatprep.subr.bf16.mxu0 0
        %1979 = vmatpush1.bf16.msra.mxu0 %v1961
        %1980 = vmatprep.subr.bf16.mxu0 0
        %1981 = vmatpush1.bf16.msra.mxu0 %v1962
        %1982 = vmatprep.subr.bf16.mxu0 0
        %1983 = vmatpush1.bf16.msra.mxu0 %v1963
        %1984 = vmatprep.subr.bf16.mxu0 0
        %1985 = vmatpush1.bf16.msra.mxu0 %v1964
        %1986 = vmatprep.subr.bf16.mxu0 0
        %1987 = vmatpush1.bf16.msra.mxu0 %v1965
        %1988 = vmatprep.subr.bf16.mxu0 0
        %1989 = vmatpush1.bf16.msra.mxu0 %v1966
        %1990 = vmatprep.subr.bf16.mxu0 0
        %1991 = vmatpush1.bf16.msra.mxu0 %v1967
        %1992 = vmatprep.subr.bf16.mxu0 0
        %1993 = vmatpush1.bf16.msra.mxu0 0
        %1994 = vmatprep.subr.bf16.mxu0 0
        %1995 = vmatpush1.bf16.msra.mxu0 0
        %1996 = vmatprep.subr.bf16.mxu0 0
        %1997 = vmatpush1.bf16.msra.mxu0 0
        %1998 = vmatprep.subr.bf16.mxu0 0
        %1999 = vmatpush1.bf16.msra.mxu0 0
        %2000 = vmatprep.subr.bf16.mxu0 0
        %2001 = vmatpush1.bf16.msra.mxu0 0
        %2002 = vmatprep.subr.bf16.mxu0 0
        %2003 = vmatpush1.bf16.msra.mxu0 0
        %2004 = vmatprep.subr.bf16.mxu0 0
        %2005 = vmatpush1.bf16.msra.mxu0 0
        %2006 = vmatprep.subr.bf16.mxu0 0
        %2007 = vmatpush1.bf16.msra.mxu0 0
        %2008 = vmatprep.mubr.bf16.mxu0 0
        %2009 = vmatmul.mubr.bf16.gmra.mrb[0].mxu0 %v1919
        %v2010 = vpop.f32.mrb[0].mxu0
        %v2011 = vadd.f32 %v1926, %v2010
        %v2012 = vpop.f32.mrb[0].mxu0
        %v2013 = vpop.f32.mrb[0].mxu0
        %v2014 = vadd.f32 %v1926, %v2013
        %v2015 = vpop.f32.mrb[0].mxu0
        %2016 = vmatprep.mubr.bf16.mxu0 0
        %2017 = vmatmul.mubr.bf16.gmra.mrb[0].mxu0 %v1920
        %v2018 = vpop.f32.mrb[0].mxu0
        %v2019 = vadd.f32 %v1926, %v2018
        %v2020 = vpop.f32.mrb[0].mxu0
        %v2021 = vpop.f32.mrb[0].mxu0
        %v2022 = vadd.f32 %v1926, %v2021
        %v2023 = vpop.f32.mrb[0].mxu0
        %2024 = vdwg.mxu0
        %v2025 = vmax.f32 %v2011, 0.0
        %v2026 = vmax.f32 %v2014, 0.0
        %v2027 = vmax.f32 %v2019, 0.0
        %v2028 = vmax.f32 %v2022, 0.0
        %v2029 = vld [vmem:[%s9] sm:$0xf]
        %v2030 = vld [vmem:[%s9 + $0x4] sm:$0xf]
        %v2031 = vld [vmem:[%s9 + $0x8] sm:$0xf]
        %v2032 = vld [vmem:[%s9 + $0xc] sm:$0xf]
        %v2033 = vpack.c.bf16 %v2026, %v2025
        %v2034 = vpack.c.bf16 %v2028, %v2027
        %v2035 = vld [vmem:[%s11] sm:$0x1]
        %v2037 = vlaneseq
        %v2038 = vshrl.u32 %v2037, 7
        %v2039 = vsub.s32 0, %v2038
        %v2040 = vrot.slane %v2035, %v2039
        %v2046 = vunpack.c.l.b16 %v2029
        %v2047 = vunpack.c.l.b16 %v2030
        %v2048 = vunpack.c.l.b16 %v2031
        %v2049 = vunpack.c.l.b16 %v2032
        %v2050 = vpack.c.b16 %v2047, %v2046
        %v2051 = vpack.c.b16 %v2049, %v2048
        %v2055 = vsel %vm677, %v2033, 0
        %v2058 = vsel %vm677, %v2034, 0
        %2060 = vmatprep.subr.bf16.mxu0 0
        %2061 = vmatpush1.bf16.msra.mxu0 %v2050
        %2062 = vmatprep.subr.bf16.mxu0 0
        %2063 = vmatpush1.bf16.msra.mxu0 %v2051
        %2064 = vmatprep.subr.bf16.mxu0 0
        %2065 = vmatpush1.bf16.msra.mxu0 0
        %2066 = vmatprep.subr.bf16.mxu0 0
        %2067 = vmatpush1.bf16.msra.mxu0 0
        %2068 = vmatprep.subr.bf16.mxu0 0
        %2069 = vmatpush1.bf16.msra.mxu0 0
        %2070 = vmatprep.subr.bf16.mxu0 0
        %2071 = vmatpush1.bf16.msra.mxu0 0
        %2072 = vmatprep.subr.bf16.mxu0 0
        %2073 = vmatpush1.bf16.msra.mxu0 0
        %2074 = vmatprep.subr.bf16.mxu0 0
        %2075 = vmatpush1.bf16.msra.mxu0 0
        %2076 = vmatprep.subr.bf16.mxu0 0
        %2077 = vmatpush1.bf16.msra.mxu0 0
        %2078 = vmatprep.subr.bf16.mxu0 0
        %2079 = vmatpush1.bf16.msra.mxu0 0
        %2080 = vmatprep.subr.bf16.mxu0 0
        %2081 = vmatpush1.bf16.msra.mxu0 0
        %2082 = vmatprep.subr.bf16.mxu0 0
        %2083 = vmatpush1.bf16.msra.mxu0 0
        %2084 = vmatprep.subr.bf16.mxu0 0
        %2085 = vmatpush1.bf16.msra.mxu0 0
        %2086 = vmatprep.subr.bf16.mxu0 0
        %2087 = vmatpush1.bf16.msra.mxu0 0
        %2088 = vmatprep.subr.bf16.mxu0 0
        %2089 = vmatpush1.bf16.msra.mxu0 0
        %2090 = vmatprep.subr.bf16.mxu0 0
        %2091 = vmatpush1.bf16.msra.mxu0 0
        %2092 = vmatprep.mubr.bf16.mxu0 0
        %2093 = vmatmul.mubr.bf16.gmra.mrb[0].mxu0 %v2055
        %v2094 = vpop.f32.mrb[0].mxu0
        %v2095 = vadd.f32 %v2040, %v2094
        %v2096 = vpop.f32.mrb[0].mxu0
        %v2097 = vpop.f32.mrb[0].mxu0
        %v2098 = vadd.f32 %v2040, %v2097
        %v2099 = vpop.f32.mrb[0].mxu0
        %2100 = vmatprep.mubr.bf16.mxu0 0
        %2101 = vmatmul.mubr.bf16.gmra.mrb[0].mxu0 %v2058
        %v2102 = vpop.f32.mrb[0].mxu0
        %v2103 = vadd.f32 %v2040, %v2102
        %v2104 = vpop.f32.mrb[0].mxu0
        %v2105 = vpop.f32.mrb[0].mxu0
        %v2106 = vadd.f32 %v2040, %v2105
        %v2107 = vpop.f32.mrb[0].mxu0
        %2108 = vdwg.mxu0
        %2109 = vst [vmem:[#allocation4] sm:$0xff] %v2095
        %2110 = vst [vmem:[#allocation4 + $0x8] sm:$0xff] %v2098
        %2111 = vst [vmem:[#allocation4 + $0x10] sm:$0xff] %v2103
        %2112 = vst [vmem:[#allocation4 + $0x18] sm:$0xff] %v2106
        %v2113 = vld [vmem:[%s10] sm:$0xf]
        %v2114 = vld [vmem:[%s10 + $0x4] sm:$0xf]
        %v2115 = vld [vmem:[%s10 + $0x8] sm:$0xf]
        %v2116 = vld [vmem:[%s10 + $0xc] sm:$0xf]
        %v2117 = vld [vmem:[#allocation4] ss:$8 sm:$0xf]
        %v2122 = vunpack.c.l.b16 %v2113
        %v2123 = vunpack.c.l.b16 %v2114
        %v2124 = vunpack.c.l.b16 %v2115
        %v2125 = vunpack.c.l.b16 %v2116
        %v2126 = vpack.c.b16 %v2123, %v2122
        %v2127 = vpack.c.b16 %v2125, %v2124
        %v2131 = vsel %vm677, 0, 0
        %2133 = vmatprep.subr.bf16.mxu0 0
        %2134 = vmatpush1.bf16.msra.mxu0 %v2126
        %2135 = vmatprep.subr.bf16.mxu0 0
        %2136 = vmatpush1.bf16.msra.mxu0 %v2127
        %2137 = vmatprep.subr.bf16.mxu0 0
        %2138 = vmatpush1.bf16.msra.mxu0 0
        %2139 = vmatprep.subr.bf16.mxu0 0
        %2140 = vmatpush1.bf16.msra.mxu0 0
        %2141 = vmatprep.subr.bf16.mxu0 0
        %2142 = vmatpush1.bf16.msra.mxu0 0
        %2143 = vmatprep.subr.bf16.mxu0 0
        %2144 = vmatpush1.bf16.msra.mxu0 0
        %2145 = vmatprep.subr.bf16.mxu0 0
        %2146 = vmatpush1.bf16.msra.mxu0 0
        %2147 = vmatprep.subr.bf16.mxu0 0
        %2148 = vmatpush1.bf16.msra.mxu0 0
        %2149 = vmatprep.subr.bf16.mxu0 0
        %2150 = vmatpush1.bf16.msra.mxu0 0
        %2151 = vmatprep.subr.bf16.mxu0 0
        %2152 = vmatpush1.bf16.msra.mxu0 0
        %2153 = vmatprep.subr.bf16.mxu0 0
        %2154 = vmatpush1.bf16.msra.mxu0 0
        %2155 = vmatprep.subr.bf16.mxu0 0
        %2156 = vmatpush1.bf16.msra.mxu0 0
        %2157 = vmatprep.subr.bf16.mxu0 0
        %2158 = vmatpush1.bf16.msra.mxu0 0
        %2159 = vmatprep.subr.bf16.mxu0 0
        %2160 = vmatpush1.bf16.msra.mxu0 0
        %2161 = vmatprep.subr.bf16.mxu0 0
        %2162 = vmatpush1.bf16.msra.mxu0 0
        %2163 = vmatprep.subr.bf16.mxu0 0
        %2164 = vmatpush1.bf16.msra.mxu0 0
        %2165 = vmatprep.mubr.bf16.mxu0 0
        %2166 = vmatmul.mubr.bf16.gmra.mrb[0].mxu0 %v2131
        %v2167 = vpop.f32.mrb[0].mxu0
        %v2168 = vadd.f32 0.0, %v2167
        %v2169 = vpop.f32.mrb[0].mxu0
        %v2170 = vpop.f32.mrb[0].mxu0
        %v2171 = vpop.f32.mrb[0].mxu0
        %2172 = vdwg.mxu0
        %v2173 = vadd.f32 %v2117, %v2168
        %v2174 = vxor.u32 %v2173, 2147483648
        %v2175 = vmul.f32 %v2174, 1.442695
        %v2176 = vpow.pop %v2175
        %v2177 = vadd.f32 %v2176, 1.0
        %v2178 = vrcp.pop %v2177
        %v2179 = vmul.f32 1.0, %v2178
        %v2180 = vtanh.pop %v2173
        %v2181 = vmul.f32 %v2179, 0.0
        %2183 = vrot.lane.b32.xlu0 %v2180, 64
        %v2184 = vpop.permute.xlu0 %2183
        %v2186 = vmul.f32 %v2179, %v2184
        %2188 = vrot.lane.b32.xlu0 %v2186, 32
        %v2189 = vpop.permute.xlu0 %2188
        %v2191 = vadd.f32 %v2181, %v2189
        %v2192 = vtanh.pop %v2191
        %2194 = vrot.lane.b32.xlu0 %v2192, 64
        %v2195 = vpop.permute.xlu0 %2194
        %v2197 = vmul.f32 %v2179, %v2195
        %v2198 = vmul.f32 %v2197, %v756
        %v2199 = vadd.f32 %v2198, 0.0
        %s2200 = scalar_lea.vmem [#allocation4], 1
        %v2201 = vld [vmem:[%s2200] ss:$8 sm:$0xf]
        %v2202 = vpack.c.bf16 %v2197, %v2197
        %2204 = vrot.lane.b32.xlu0 %v2202, 32
        %v2205 = vpop.permute.xlu0 %2204
        %v2207 = vsel %vm677, %v2205, 0
        %2209 = vmatprep.subr.bf16.mxu0 0
        %2210 = vmatpush1.bf16.msra.mxu0 %v2126
        %2211 = vmatprep.subr.bf16.mxu0 0
        %2212 = vmatpush1.bf16.msra.mxu0 %v2127
        %2213 = vmatprep.subr.bf16.mxu0 0
        %2214 = vmatpush1.bf16.msra.mxu0 0
        %2215 = vmatprep.subr.bf16.mxu0 0
        %2216 = vmatpush1.bf16.msra.mxu0 0
        %2217 = vmatprep.subr.bf16.mxu0 0
        %2218 = vmatpush1.bf16.msra.mxu0 0
        %2219 = vmatprep.subr.bf16.mxu0 0
        %2220 = vmatpush1.bf16.msra.mxu0 0
        %2221 = vmatprep.subr.bf16.mxu0 0
        %2222 = vmatpush1.bf16.msra.mxu0 0
        %2223 = vmatprep.subr.bf16.mxu0 0
        %2224 = vmatpush1.bf16.msra.mxu0 0
        %2225 = vmatprep.subr.bf16.mxu0 0
        %2226 = vmatpush1.bf16.msra.mxu0 0
        %2227 = vmatprep.subr.bf16.mxu0 0
        %2228 = vmatpush1.bf16.msra.mxu0 0
        %2229 = vmatprep.subr.bf16.mxu0 0
        %2230 = vmatpush1.bf16.msra.mxu0 0
        %2231 = vmatprep.subr.bf16.mxu0 0
        %2232 = vmatpush1.bf16.msra.mxu0 0
        %2233 = vmatprep.subr.bf16.mxu0 0
        %2234 = vmatpush1.bf16.msra.mxu0 0
        %2235 = vmatprep.subr.bf16.mxu0 0
        %2236 = vmatpush1.bf16.msra.mxu0 0
        %2237 = vmatprep.subr.bf16.mxu0 0
        %2238 = vmatpush1.bf16.msra.mxu0 0
        %2239 = vmatprep.subr.bf16.mxu0 0
        %2240 = vmatpush1.bf16.msra.mxu0 0
        %2241 = vmatprep.mubr.bf16.mxu0 0
        %2242 = vmatmul.mubr.bf16.gmra.mrb[0].mxu0 %v2207
        %v2243 = vpop.f32.mrb[0].mxu0
        %v2244 = vadd.f32 0.0, %v2243
        %v2245 = vpop.f32.mrb[0].mxu0
        %v2246 = vpop.f32.mrb[0].mxu0
        %v2247 = vpop.f32.mrb[0].mxu0
        %2248 = vdwg.mxu0
        %v2249 = vadd.f32 %v2201, %v2244
        %v2250 = vxor.u32 %v2249, 2147483648
        %v2251 = vmul.f32 %v2250, 1.442695
        %v2252 = vpow.pop %v2251
        %v2253 = vadd.f32 %v2252, 1.0
        %v2254 = vrcp.pop %v2253
        %v2255 = vmul.f32 1.0, %v2254
        %v2256 = vtanh.pop %v2249
        %v2257 = vmul.f32 %v2255, %v2191
        %2259 = vrot.lane.b32.xlu0 %v2256, 64
        %v2260 = vpop.permute.xlu0 %2259
        %v2262 = vmul.f32 %v2255, %v2260
        %2264 = vrot.lane.b32.xlu0 %v2262, 32
        %v2265 = vpop.permute.xlu0 %2264
        %v2267 = vadd.f32 %v2257, %v2265
        %v2268 = vtanh.pop %v2267
        %2270 = vrot.lane.b32.xlu0 %v2268, 64
        %v2271 = vpop.permute.xlu0 %2270
        %v2273 = vmul.f32 %v2255, %v2271
        %v2274 = vmul.f32 %v2273, %v849
        %v2275 = vadd.f32 %v2199, %v2274
        %v2276 = vmax.f32 %v2197, %v2273
        %s2277 = scalar_lea.vmem [#allocation4], 2
        %v2278 = vld [vmem:[%s2277] ss:$8 sm:$0xf]
        %v2279 = vpack.c.bf16 %v2273, %v2273
        %2281 = vrot.lane.b32.xlu0 %v2279, 32
        %v2282 = vpop.permute.xlu0 %2281
        %v2284 = vsel %vm677, %v2282, 0
        %2286 = vmatprep.subr.bf16.mxu0 0
        %2287 = vmatpush1.bf16.msra.mxu0 %v2126
        %2288 = vmatprep.subr.bf16.mxu0 0
        %2289 = vmatpush1.bf16.msra.mxu0 %v2127
        %2290 = vmatprep.subr.bf16.mxu0 0
        %2291 = vmatpush1.bf16.msra.mxu0 0
        %2292 = vmatprep.subr.bf16.mxu0 0
        %2293 = vmatpush1.bf16.msra.mxu0 0
        %2294 = vmatprep.subr.bf16.mxu0 0
        %2295 = vmatpush1.bf16.msra.mxu0 0
        %2296 = vmatprep.subr.bf16.mxu0 0
        %2297 = vmatpush1.bf16.msra.mxu0 0
        %2298 = vmatprep.subr.bf16.mxu0 0
        %2299 = vmatpush1.bf16.msra.mxu0 0
        %2300 = vmatprep.subr.bf16.mxu0 0
        %2301 = vmatpush1.bf16.msra.mxu0 0
        %2302 = vmatprep.subr.bf16.mxu0 0
        %2303 = vmatpush1.bf16.msra.mxu0 0
        %2304 = vmatprep.subr.bf16.mxu0 0
        %2305 = vmatpush1.bf16.msra.mxu0 0
        %2306 = vmatprep.subr.bf16.mxu0 0
        %2307 = vmatpush1.bf16.msra.mxu0 0
        %2308 = vmatprep.subr.bf16.mxu0 0
        %2309 = vmatpush1.bf16.msra.mxu0 0
        %2310 = vmatprep.subr.bf16.mxu0 0
        %2311 = vmatpush1.bf16.msra.mxu0 0
        %2312 = vmatprep.subr.bf16.mxu0 0
        %2313 = vmatpush1.bf16.msra.mxu0 0
        %2314 = vmatprep.subr.bf16.mxu0 0
        %2315 = vmatpush1.bf16.msra.mxu0 0
        %2316 = vmatprep.subr.bf16.mxu0 0
        %2317 = vmatpush1.bf16.msra.mxu0 0
        %2318 = vmatprep.mubr.bf16.mxu0 0
        %2319 = vmatmul.mubr.bf16.gmra.mrb[0].mxu0 %v2284
        %v2320 = vpop.f32.mrb[0].mxu0
        %v2321 = vadd.f32 0.0, %v2320
        %v2322 = vpop.f32.mrb[0].mxu0
        %v2323 = vpop.f32.mrb[0].mxu0
        %v2324 = vpop.f32.mrb[0].mxu0
        %2325 = vdwg.mxu0
        %v2326 = vadd.f32 %v2278, %v2321
        %v2327 = vxor.u32 %v2326, 2147483648
        %v2328 = vmul.f32 %v2327, 1.442695
        %v2329 = vpow.pop %v2328
        %v2330 = vadd.f32 %v2329, 1.0
        %v2331 = vrcp.pop %v2330
        %v2332 = vmul.f32 1.0, %v2331
        %v2333 = vtanh.pop %v2326
        %v2334 = vmul.f32 %v2332, %v2267
        %2336 = vrot.lane.b32.xlu0 %v2333, 64
        %v2337 = vpop.permute.xlu0 %2336
        %v2339 = vmul.f32 %v2332, %v2337
        %2341 = vrot.lane.b32.xlu0 %v2339, 32
        %v2342 = vpop.permute.xlu0 %2341
        %v2344 = vadd.f32 %v2334, %v2342
        %v2345 = vtanh.pop %v2344
        %2347 = vrot.lane.b32.xlu0 %v2345, 64
        %v2348 = vpop.permute.xlu0 %2347
        %v2350 = vmul.f32 %v2332, %v2348
        %v2351 = vmul.f32 %v2350, %v942
        %v2352 = vadd.f32 %v2275, %v2351
        %v2353 = vmax.f32 %v2276, %v2350
        %s2354 = scalar_lea.vmem [#allocation4], 3
        %v2355 = vld [vmem:[%s2354] ss:$8 sm:$0xf]
        %v2356 = vpack.c.bf16 %v2350, %v2350
        %2358 = vrot.lane.b32.xlu0 %v2356, 32
        %v2359 = vpop.permute.xlu0 %2358
        %v2361 = vsel %vm677, %v2359, 0
        %2363 = vmatprep.subr.bf16.mxu0 0
        %2364 = vmatpush1.bf16.msra.mxu0 %v2126
        %2365 = vmatprep.subr.bf16.mxu0 0
        %2366 = vmatpush1.bf16.msra.mxu0 %v2127
        %2367 = vmatprep.subr.bf16.mxu0 0
        %2368 = vmatpush1.bf16.msra.mxu0 0
        %2369 = vmatprep.subr.bf16.mxu0 0
        %2370 = vmatpush1.bf16.msra.mxu0 0
        %2371 = vmatprep.subr.bf16.mxu0 0
        %2372 = vmatpush1.bf16.msra.mxu0 0
        %2373 = vmatprep.subr.bf16.mxu0 0
        %2374 = vmatpush1.bf16.msra.mxu0 0
        %2375 = vmatprep.subr.bf16.mxu0 0
        %2376 = vmatpush1.bf16.msra.mxu0 0
        %2377 = vmatprep.subr.bf16.mxu0 0
        %2378 = vmatpush1.bf16.msra.mxu0 0
        %2379 = vmatprep.subr.bf16.mxu0 0
        %2380 = vmatpush1.bf16.msra.mxu0 0
        %2381 = vmatprep.subr.bf16.mxu0 0
        %2382 = vmatpush1.bf16.msra.mxu0 0
        %2383 = vmatprep.subr.bf16.mxu0 0
        %2384 = vmatpush1.bf16.msra.mxu0 0
        %2385 = vmatprep.subr.bf16.mxu0 0
        %2386 = vmatpush1.bf16.msra.mxu0 0
        %2387 = vmatprep.subr.bf16.mxu0 0
        %2388 = vmatpush1.bf16.msra.mxu0 0
        %2389 = vmatprep.subr.bf16.mxu0 0
        %2390 = vmatpush1.bf16.msra.mxu0 0
        %2391 = vmatprep.subr.bf16.mxu0 0
        %2392 = vmatpush1.bf16.msra.mxu0 0
        %2393 = vmatprep.subr.bf16.mxu0 0
        %2394 = vmatpush1.bf16.msra.mxu0 0
        %2395 = vmatprep.mubr.bf16.mxu0 0
        %2396 = vmatmul.mubr.bf16.gmra.mrb[0].mxu0 %v2361
        %v2397 = vpop.f32.mrb[0].mxu0
        %v2398 = vadd.f32 0.0, %v2397
        %v2399 = vpop.f32.mrb[0].mxu0
        %v2400 = vpop.f32.mrb[0].mxu0
        %v2401 = vpop.f32.mrb[0].mxu0
        %2402 = vdwg.mxu0
        %v2403 = vadd.f32 %v2355, %v2398
        %v2404 = vxor.u32 %v2403, 2147483648
        %v2405 = vmul.f32 %v2404, 1.442695
        %v2406 = vpow.pop %v2405
        %v2407 = vadd.f32 %v2406, 1.0
        %v2408 = vrcp.pop %v2407
        %v2409 = vmul.f32 1.0, %v2408
        %v2410 = vtanh.pop %v2403
        %v2411 = vmul.f32 %v2409, %v2344
        %2413 = vrot.lane.b32.xlu0 %v2410, 64
        %v2414 = vpop.permute.xlu0 %2413
        %v2416 = vmul.f32 %v2409, %v2414
        %2418 = vrot.lane.b32.xlu0 %v2416, 32
        %v2419 = vpop.permute.xlu0 %2418
        %v2421 = vadd.f32 %v2411, %v2419
        %v2422 = vtanh.pop %v2421
        %2424 = vrot.lane.b32.xlu0 %v2422, 64
        %v2425 = vpop.permute.xlu0 %2424
        %v2427 = vmul.f32 %v2409, %v2425
        %v2428 = vmul.f32 %v2427, %v1034
        %v2429 = vadd.f32 %v2352, %v2428
        %v2430 = vmax.f32 %v2353, %v2427
        %s2431 = scalar_lea.vmem [#allocation4], 4
        %v2432 = vld [vmem:[%s2431] ss:$8 sm:$0xf]
        %v2433 = vpack.c.bf16 %v2427, %v2427
        %2435 = vrot.lane.b32.xlu0 %v2433, 32
        %v2436 = vpop.permute.xlu0 %2435
        %v2438 = vsel %vm677, %v2436, 0
        %2440 = vmatprep.subr.bf16.mxu0 0
        %2441 = vmatpush1.bf16.msra.mxu0 %v2126
        %2442 = vmatprep.subr.bf16.mxu0 0
        %2443 = vmatpush1.bf16.msra.mxu0 %v2127
        %2444 = vmatprep.subr.bf16.mxu0 0
        %2445 = vmatpush1.bf16.msra.mxu0 0
        %2446 = vmatprep.subr.bf16.mxu0 0
        %2447 = vmatpush1.bf16.msra.mxu0 0
        %2448 = vmatprep.subr.bf16.mxu0 0
        %2449 = vmatpush1.bf16.msra.mxu0 0
        %2450 = vmatprep.subr.bf16.mxu0 0
        %2451 = vmatpush1.bf16.msra.mxu0 0
        %2452 = vmatprep.subr.bf16.mxu0 0
        %2453 = vmatpush1.bf16.msra.mxu0 0
        %2454 = vmatprep.subr.bf16.mxu0 0
        %2455 = vmatpush1.bf16.msra.mxu0 0
        %2456 = vmatprep.subr.bf16.mxu0 0
        %2457 = vmatpush1.bf16.msra.mxu0 0
        %2458 = vmatprep.subr.bf16.mxu0 0
        %2459 = vmatpush1.bf16.msra.mxu0 0
        %2460 = vmatprep.subr.bf16.mxu0 0
        %2461 = vmatpush1.bf16.msra.mxu0 0
        %2462 = vmatprep.subr.bf16.mxu0 0
        %2463 = vmatpush1.bf16.msra.mxu0 0
        %2464 = vmatprep.subr.bf16.mxu0 0
        %2465 = vmatpush1.bf16.msra.mxu0 0
        %2466 = vmatprep.subr.bf16.mxu0 0
        %2467 = vmatpush1.bf16.msra.mxu0 0
        %2468 = vmatprep.subr.bf16.mxu0 0
        %2469 = vmatpush1.bf16.msra.mxu0 0
        %2470 = vmatprep.subr.bf16.mxu0 0
        %2471 = vmatpush1.bf16.msra.mxu0 0
        %2472 = vmatprep.mubr.bf16.mxu0 0
        %2473 = vmatmul.mubr.bf16.gmra.mrb[0].mxu0 %v2438
        %v2474 = vpop.f32.mrb[0].mxu0
        %v2475 = vadd.f32 0.0, %v2474
        %v2476 = vpop.f32.mrb[0].mxu0
        %v2477 = vpop.f32.mrb[0].mxu0
        %v2478 = vpop.f32.mrb[0].mxu0
        %2479 = vdwg.mxu0
        %v2480 = vadd.f32 %v2432, %v2475
        %v2481 = vxor.u32 %v2480, 2147483648
        %v2482 = vmul.f32 %v2481, 1.442695
        %v2483 = vpow.pop %v2482
        %v2484 = vadd.f32 %v2483, 1.0
        %v2485 = vrcp.pop %v2484
        %v2486 = vmul.f32 1.0, %v2485
        %v2487 = vtanh.pop %v2480
        %v2488 = vmul.f32 %v2486, %v2421
        %2490 = vrot.lane.b32.xlu0 %v2487, 64
        %v2491 = vpop.permute.xlu0 %2490
        %v2493 = vmul.f32 %v2486, %v2491
        %2495 = vrot.lane.b32.xlu0 %v2493, 32
        %v2496 = vpop.permute.xlu0 %2495
        %v2498 = vadd.f32 %v2488, %v2496
        %v2499 = vtanh.pop %v2498
        %2501 = vrot.lane.b32.xlu0 %v2499, 64
        %v2502 = vpop.permute.xlu0 %2501
        %v2504 = vmul.f32 %v2486, %v2502
        %v2505 = vmul.f32 %v2504, %v1126
        %v2506 = vadd.f32 %v2429, %v2505
        %v2507 = vmax.f32 %v2430, %v2504
        %s2508 = scalar_lea.vmem [#allocation4], 5
        %v2509 = vld [vmem:[%s2508] ss:$8 sm:$0xf]
        %v2510 = vpack.c.bf16 %v2504, %v2504
        %2512 = vrot.lane.b32.xlu0 %v2510, 32
        %v2513 = vpop.permute.xlu0 %2512
        %v2515 = vsel %vm677, %v2513, 0
        %2517 = vmatprep.subr.bf16.mxu0 0
        %2518 = vmatpush1.bf16.msra.mxu0 %v2126
        %2519 = vmatprep.subr.bf16.mxu0 0
        %2520 = vmatpush1.bf16.msra.mxu0 %v2127
        %2521 = vmatprep.subr.bf16.mxu0 0
        %2522 = vmatpush1.bf16.msra.mxu0 0
        %2523 = vmatprep.subr.bf16.mxu0 0
        %2524 = vmatpush1.bf16.msra.mxu0 0
        %2525 = vmatprep.subr.bf16.mxu0 0
        %2526 = vmatpush1.bf16.msra.mxu0 0
        %2527 = vmatprep.subr.bf16.mxu0 0
        %2528 = vmatpush1.bf16.msra.mxu0 0
        %2529 = vmatprep.subr.bf16.mxu0 0
        %2530 = vmatpush1.bf16.msra.mxu0 0
        %2531 = vmatprep.subr.bf16.mxu0 0
        %2532 = vmatpush1.bf16.msra.mxu0 0
        %2533 = vmatprep.subr.bf16.mxu0 0
        %2534 = vmatpush1.bf16.msra.mxu0 0
        %2535 = vmatprep.subr.bf16.mxu0 0
        %2536 = vmatpush1.bf16.msra.mxu0 0
        %2537 = vmatprep.subr.bf16.mxu0 0
        %2538 = vmatpush1.bf16.msra.mxu0 0
        %2539 = vmatprep.subr.bf16.mxu0 0
        %2540 = vmatpush1.bf16.msra.mxu0 0
        %2541 = vmatprep.subr.bf16.mxu0 0
        %2542 = vmatpush1.bf16.msra.mxu0 0
        %2543 = vmatprep.subr.bf16.mxu0 0
        %2544 = vmatpush1.bf16.msra.mxu0 0
        %2545 = vmatprep.subr.bf16.mxu0 0
        %2546 = vmatpush1.bf16.msra.mxu0 0
        %2547 = vmatprep.subr.bf16.mxu0 0
        %2548 = vmatpush1.bf16.msra.mxu0 0
        %2549 = vmatprep.mubr.bf16.mxu0 0
        %2550 = vmatmul.mubr.bf16.gmra.mrb[0].mxu0 %v2515
        %v2551 = vpop.f32.mrb[0].mxu0
        %v2552 = vadd.f32 0.0, %v2551
        %v2553 = vpop.f32.mrb[0].mxu0
        %v2554 = vpop.f32.mrb[0].mxu0
        %v2555 = vpop.f32.mrb[0].mxu0
        %2556 = vdwg.mxu0
        %v2557 = vadd.f32 %v2509, %v2552
        %v2558 = vxor.u32 %v2557, 2147483648
        %v2559 = vmul.f32 %v2558, 1.442695
        %v2560 = vpow.pop %v2559
        %v2561 = vadd.f32 %v2560, 1.0
        %v2562 = vrcp.pop %v2561
        %v2563 = vmul.f32 1.0, %v2562
        %v2564 = vtanh.pop %v2557
        %v2565 = vmul.f32 %v2563, %v2498
        %2567 = vrot.lane.b32.xlu0 %v2564, 64
        %v2568 = vpop.permute.xlu0 %2567
        %v2570 = vmul.f32 %v2563, %v2568
        %2572 = vrot.lane.b32.xlu0 %v2570, 32
        %v2573 = vpop.permute.xlu0 %2572
        %v2575 = vadd.f32 %v2565, %v2573
        %v2576 = vtanh.pop %v2575
        %2578 = vrot.lane.b32.xlu0 %v2576, 64
        %v2579 = vpop.permute.xlu0 %2578
        %v2581 = vmul.f32 %v2563, %v2579
        %v2582 = vmul.f32 %v2581, %v1218
        %v2583 = vadd.f32 %v2506, %v2582
        %v2584 = vmax.f32 %v2507, %v2581
        %s2585 = scalar_lea.vmem [#allocation4], 6
        %v2586 = vld [vmem:[%s2585] ss:$8 sm:$0xf]
        %v2587 = vpack.c.bf16 %v2581, %v2581
        %2589 = vrot.lane.b32.xlu0 %v2587, 32
        %v2590 = vpop.permute.xlu0 %2589
        %v2592 = vsel %vm677, %v2590, 0
        %2594 = vmatprep.subr.bf16.mxu0 0
        %2595 = vmatpush1.bf16.msra.mxu0 %v2126
        %2596 = vmatprep.subr.bf16.mxu0 0
        %2597 = vmatpush1.bf16.msra.mxu0 %v2127
        %2598 = vmatprep.subr.bf16.mxu0 0
        %2599 = vmatpush1.bf16.msra.mxu0 0
        %2600 = vmatprep.subr.bf16.mxu0 0
        %2601 = vmatpush1.bf16.msra.mxu0 0
        %2602 = vmatprep.subr.bf16.mxu0 0
        %2603 = vmatpush1.bf16.msra.mxu0 0
        %2604 = vmatprep.subr.bf16.mxu0 0
        %2605 = vmatpush1.bf16.msra.mxu0 0
        %2606 = vmatprep.subr.bf16.mxu0 0
        %2607 = vmatpush1.bf16.msra.mxu0 0
        %2608 = vmatprep.subr.bf16.mxu0 0
        %2609 = vmatpush1.bf16.msra.mxu0 0
        %2610 = vmatprep.subr.bf16.mxu0 0
        %2611 = vmatpush1.bf16.msra.mxu0 0
        %2612 = vmatprep.subr.bf16.mxu0 0
        %2613 = vmatpush1.bf16.msra.mxu0 0
        %2614 = vmatprep.subr.bf16.mxu0 0
        %2615 = vmatpush1.bf16.msra.mxu0 0
        %2616 = vmatprep.subr.bf16.mxu0 0
        %2617 = vmatpush1.bf16.msra.mxu0 0
        %2618 = vmatprep.subr.bf16.mxu0 0
        %2619 = vmatpush1.bf16.msra.mxu0 0
        %2620 = vmatprep.subr.bf16.mxu0 0
        %2621 = vmatpush1.bf16.msra.mxu0 0
        %2622 = vmatprep.subr.bf16.mxu0 0
        %2623 = vmatpush1.bf16.msra.mxu0 0
        %2624 = vmatprep.subr.bf16.mxu0 0
        %2625 = vmatpush1.bf16.msra.mxu0 0
        %2626 = vmatprep.mubr.bf16.mxu0 0
        %2627 = vmatmul.mubr.bf16.gmra.mrb[0].mxu0 %v2592
        %v2628 = vpop.f32.mrb[0].mxu0
        %v2629 = vadd.f32 0.0, %v2628
        %v2630 = vpop.f32.mrb[0].mxu0
        %v2631 = vpop.f32.mrb[0].mxu0
        %v2632 = vpop.f32.mrb[0].mxu0
        %2633 = vdwg.mxu0
        %v2634 = vadd.f32 %v2586, %v2629
        %v2635 = vxor.u32 %v2634, 2147483648
        %v2636 = vmul.f32 %v2635, 1.442695
        %v2637 = vpow.pop %v2636
        %v2638 = vadd.f32 %v2637, 1.0
        %v2639 = vrcp.pop %v2638
        %v2640 = vmul.f32 1.0, %v2639
        %v2641 = vtanh.pop %v2634
        %v2642 = vmul.f32 %v2640, %v2575
        %2644 = vrot.lane.b32.xlu0 %v2641, 64
        %v2645 = vpop.permute.xlu0 %2644
        %v2647 = vmul.f32 %v2640, %v2645
        %2649 = vrot.lane.b32.xlu0 %v2647, 32
        %v2650 = vpop.permute.xlu0 %2649
        %v2652 = vadd.f32 %v2642, %v2650
        %v2653 = vtanh.pop %v2652
        %2655 = vrot.lane.b32.xlu0 %v2653, 64
        %v2656 = vpop.permute.xlu0 %2655
        %v2658 = vmul.f32 %v2640, %v2656
        %v2659 = vmul.f32 %v2658, %v1310
        %v2660 = vadd.f32 %v2583, %v2659
        %v2661 = vmax.f32 %v2584, %v2658
        %s2662 = scalar_lea.vmem [#allocation4], 7
        %v2663 = vld [vmem:[%s2662] ss:$8 sm:$0xf]
        %v2664 = vpack.c.bf16 %v2658, %v2658
        %2666 = vrot.lane.b32.xlu0 %v2664, 32
        %v2667 = vpop.permute.xlu0 %2666
        %v2669 = vsel %vm677, %v2667, 0
        %2671 = vmatprep.subr.bf16.mxu0 0
        %2672 = vmatpush1.bf16.msra.mxu0 %v2126
        %2673 = vmatprep.subr.bf16.mxu0 0
        %2674 = vmatpush1.bf16.msra.mxu0 %v2127
        %2675 = vmatprep.subr.bf16.mxu0 0
        %2676 = vmatpush1.bf16.msra.mxu0 0
        %2677 = vmatprep.subr.bf16.mxu0 0
        %2678 = vmatpush1.bf16.msra.mxu0 0
        %2679 = vmatprep.subr.bf16.mxu0 0
        %2680 = vmatpush1.bf16.msra.mxu0 0
        %2681 = vmatprep.subr.bf16.mxu0 0
        %2682 = vmatpush1.bf16.msra.mxu0 0
        %2683 = vmatprep.subr.bf16.mxu0 0
        %2684 = vmatpush1.bf16.msra.mxu0 0
        %2685 = vmatprep.subr.bf16.mxu0 0
        %2686 = vmatpush1.bf16.msra.mxu0 0
        %2687 = vmatprep.subr.bf16.mxu0 0
        %2688 = vmatpush1.bf16.msra.mxu0 0
        %2689 = vmatprep.subr.bf16.mxu0 0
        %2690 = vmatpush1.bf16.msra.mxu0 0
        %2691 = vmatprep.subr.bf16.mxu0 0
        %2692 = vmatpush1.bf16.msra.mxu0 0
        %2693 = vmatprep.subr.bf16.mxu0 0
        %2694 = vmatpush1.bf16.msra.mxu0 0
        %2695 = vmatprep.subr.bf16.mxu0 0
        %2696 = vmatpush1.bf16.msra.mxu0 0
        %2697 = vmatprep.subr.bf16.mxu0 0
        %2698 = vmatpush1.bf16.msra.mxu0 0
        %2699 = vmatprep.subr.bf16.mxu0 0
        %2700 = vmatpush1.bf16.msra.mxu0 0
        %2701 = vmatprep.subr.bf16.mxu0 0
        %2702 = vmatpush1.bf16.msra.mxu0 0
        %2703 = vmatprep.mubr.bf16.mxu0 0
        %2704 = vmatmul.mubr.bf16.gmra.mrb[0].mxu0 %v2669
        %v2705 = vpop.f32.mrb[0].mxu0
        %v2706 = vadd.f32 0.0, %v2705
        %v2707 = vpop.f32.mrb[0].mxu0
        %v2708 = vpop.f32.mrb[0].mxu0
        %v2709 = vpop.f32.mrb[0].mxu0
        %2710 = vdwg.mxu0
        %v2711 = vadd.f32 %v2663, %v2706
        %v2712 = vxor.u32 %v2711, 2147483648
        %v2713 = vmul.f32 %v2712, 1.442695
        %v2714 = vpow.pop %v2713
        %v2715 = vadd.f32 %v2714, 1.0
        %v2716 = vrcp.pop %v2715
        %v2717 = vmul.f32 1.0, %v2716
        %v2718 = vtanh.pop %v2711
        %v2719 = vmul.f32 %v2717, %v2652
        %2721 = vrot.lane.b32.xlu0 %v2718, 64
        %v2722 = vpop.permute.xlu0 %2721
        %v2724 = vmul.f32 %v2717, %v2722
        %2726 = vrot.lane.b32.xlu0 %v2724, 32
        %v2727 = vpop.permute.xlu0 %2726
        %v2729 = vadd.f32 %v2719, %v2727
        %v2730 = vtanh.pop %v2729
        %2732 = vrot.lane.b32.xlu0 %v2730, 64
        %v2733 = vpop.permute.xlu0 %2732
        %v2735 = vmul.f32 %v2717, %v2733
        %v2736 = vmul.f32 %v2735, %v1402
        %v2737 = vadd.f32 %v2660, %v2736
        %v2738 = vmax.f32 %v2661, %v2735
        %v2739 = vmax.f32 %v572, 1.0
        %2741 = vset.pattern.permute.xlu0 0
        %2742 = vperm.xlu0 %2741, %v2739
        %v2743 = vpop.permute.xlu0 %2742
        %v2745 = vrcp.pop %v2743
        %v2746 = vmul.f32 %v2737, %v2745
        %v2747 = vld [vmem:[%s12] sm:$0xf]
        %v2748 = vld [vmem:[%s12 + $0x4] sm:$0xf]
        %v2749 = vld [vmem:[%s12 + $0x8] sm:$0xf]
        %v2750 = vld [vmem:[%s12 + $0xc] sm:$0xf]
        %v2751 = vld [vmem:[%s12 + $0x10] sm:$0xf]
        %v2752 = vld [vmem:[%s12 + $0x14] sm:$0xf]
        %v2753 = vld [vmem:[%s12 + $0x18] sm:$0xf]
        %v2754 = vld [vmem:[%s12 + $0x1c] sm:$0xf]
        %v2755 = vld [vmem:[%s12 + $0x20] sm:$0xf]
        %v2756 = vld [vmem:[%s12 + $0x24] sm:$0xf]
        %v2757 = vld [vmem:[%s12 + $0x28] sm:$0xf]
        %v2758 = vld [vmem:[%s12 + $0x2c] sm:$0xf]
        %v2759 = vld [vmem:[%s12 + $0x30] sm:$0xf]
        %v2760 = vld [vmem:[%s12 + $0x34] sm:$0xf]
        %v2761 = vld [vmem:[%s12 + $0x38] sm:$0xf]
        %v2762 = vld [vmem:[%s12 + $0x3c] sm:$0xf]
        %v2763 = vpack.c.bf16 %v2746, %v2746
        %v2764 = vpack.c.bf16 %v2738, %v2738
        %2766 = vrot.lane.b32.xlu0 %v2764, 32
        %v2767 = vpop.permute.xlu0 %2766
        %v2772 = vunpack.c.l.b16 %v2751
        %v2773 = vunpack.c.l.b16 %v2752
        %v2774 = vunpack.c.l.b16 %v2753
        %v2775 = vunpack.c.l.b16 %v2754
        %v2776 = vpack.c.b16 %v2773, %v2772
        %v2777 = vpack.c.b16 %v2775, %v2774
        %v2781 = vsel %vm677, %v2767, 0
        %2783 = vmatprep.subr.bf16.mxu0 0
        %2784 = vmatpush1.bf16.msra.mxu0 %v2776
        %2785 = vmatprep.subr.bf16.mxu0 0
        %2786 = vmatpush1.bf16.msra.mxu0 %v2777
        %2787 = vmatprep.subr.bf16.mxu0 0
        %2788 = vmatpush1.bf16.msra.mxu0 0
        %2789 = vmatprep.subr.bf16.mxu0 0
        %2790 = vmatpush1.bf16.msra.mxu0 0
        %2791 = vmatprep.subr.bf16.mxu0 0
        %2792 = vmatpush1.bf16.msra.mxu0 0
        %2793 = vmatprep.subr.bf16.mxu0 0
        %2794 = vmatpush1.bf16.msra.mxu0 0
        %2795 = vmatprep.subr.bf16.mxu0 0
        %2796 = vmatpush1.bf16.msra.mxu0 0
        %2797 = vmatprep.subr.bf16.mxu0 0
        %2798 = vmatpush1.bf16.msra.mxu0 0
        %2799 = vmatprep.subr.bf16.mxu0 0
        %2800 = vmatpush1.bf16.msra.mxu0 0
        %2801 = vmatprep.subr.bf16.mxu0 0
        %2802 = vmatpush1.bf16.msra.mxu0 0
        %2803 = vmatprep.subr.bf16.mxu0 0
        %2804 = vmatpush1.bf16.msra.mxu0 0
        %2805 = vmatprep.subr.bf16.mxu0 0
        %2806 = vmatpush1.bf16.msra.mxu0 0
        %2807 = vmatprep.subr.bf16.mxu0 0
        %2808 = vmatpush1.bf16.msra.mxu0 0
        %2809 = vmatprep.subr.bf16.mxu0 0
        %2810 = vmatpush1.bf16.msra.mxu0 0
        %2811 = vmatprep.subr.bf16.mxu0 0
        %2812 = vmatpush1.bf16.msra.mxu0 0
        %2813 = vmatprep.subr.bf16.mxu0 0
        %2814 = vmatpush1.bf16.msra.mxu0 0
        %2815 = vmatprep.mubr.bf16.mxu0 0
        %2816 = vmatmul.mubr.bf16.gmra.mrb[0].mxu0 %v2781
        %v2817 = vpop.f32.mrb[0].mxu0
        %v2818 = vadd.f32 0.0, %v2817
        %v2819 = vpop.f32.mrb[0].mxu0
        %v2820 = vpop.f32.mrb[0].mxu0
        %v2821 = vpop.f32.mrb[0].mxu0
        %2822 = vdwg.mxu0
        %2824 = vrot.lane.b32.xlu0 %v2763, 32
        %v2825 = vpop.permute.xlu0 %2824
        %v2830 = vunpack.c.l.b16 %v2747
        %v2831 = vunpack.c.l.b16 %v2748
        %v2832 = vunpack.c.l.b16 %v2749
        %v2833 = vunpack.c.l.b16 %v2750
        %v2834 = vpack.c.b16 %v2831, %v2830
        %v2835 = vpack.c.b16 %v2833, %v2832
        %v2839 = vsel %vm677, %v2825, 0
        %2841 = vmatprep.subr.bf16.mxu0 0
        %2842 = vmatpush1.bf16.msra.mxu0 %v2834
        %2843 = vmatprep.subr.bf16.mxu0 0
        %2844 = vmatpush1.bf16.msra.mxu0 %v2835
        %2845 = vmatprep.subr.bf16.mxu0 0
        %2846 = vmatpush1.bf16.msra.mxu0 0
        %2847 = vmatprep.subr.bf16.mxu0 0
        %2848 = vmatpush1.bf16.msra.mxu0 0
        %2849 = vmatprep.subr.bf16.mxu0 0
        %2850 = vmatpush1.bf16.msra.mxu0 0
        %2851 = vmatprep.subr.bf16.mxu0 0
        %2852 = vmatpush1.bf16.msra.mxu0 0
        %2853 = vmatprep.subr.bf16.mxu0 0
        %2854 = vmatpush1.bf16.msra.mxu0 0
        %2855 = vmatprep.subr.bf16.mxu0 0
        %2856 = vmatpush1.bf16.msra.mxu0 0
        %2857 = vmatprep.subr.bf16.mxu0 0
        %2858 = vmatpush1.bf16.msra.mxu0 0
        %2859 = vmatprep.subr.bf16.mxu0 0
        %2860 = vmatpush1.bf16.msra.mxu0 0
        %2861 = vmatprep.subr.bf16.mxu0 0
        %2862 = vmatpush1.bf16.msra.mxu0 0
        %2863 = vmatprep.subr.bf16.mxu0 0
        %2864 = vmatpush1.bf16.msra.mxu0 0
        %2865 = vmatprep.subr.bf16.mxu0 0
        %2866 = vmatpush1.bf16.msra.mxu0 0
        %2867 = vmatprep.subr.bf16.mxu0 0
        %2868 = vmatpush1.bf16.msra.mxu0 0
        %2869 = vmatprep.subr.bf16.mxu0 0
        %2870 = vmatpush1.bf16.msra.mxu0 0
        %2871 = vmatprep.subr.bf16.mxu0 0
        %2872 = vmatpush1.bf16.msra.mxu0 0
        %2873 = vmatprep.mubr.bf16.mxu0 0
        %2874 = vmatmul.mubr.bf16.gmra.mrb[0].mxu0 %v2839
        %v2875 = vpop.f32.mrb[0].mxu0
        %v2876 = vadd.f32 %v2818, %v2875
        %v2877 = vpop.f32.mrb[0].mxu0
        %v2878 = vpop.f32.mrb[0].mxu0
        %v2879 = vpop.f32.mrb[0].mxu0
        %2880 = vdwg.mxu0
        %v2881 = vrot.slane %v2763, 1
        %2882 = vrot.lane.b32.xlu0 %v2881, 32
        %v2883 = vpop.permute.xlu0 %2882
        %v2888 = vunpack.c.l.b16 %v2755
        %v2889 = vunpack.c.l.b16 %v2756
        %v2890 = vunpack.c.l.b16 %v2757
        %v2891 = vunpack.c.l.b16 %v2758
        %v2892 = vpack.c.b16 %v2889, %v2888
        %v2893 = vpack.c.b16 %v2891, %v2890
        %v2897 = vsel %vm677, %v2883, 0
        %2899 = vmatprep.subr.bf16.mxu0 0
        %2900 = vmatpush1.bf16.msra.mxu0 %v2892
        %2901 = vmatprep.subr.bf16.mxu0 0
        %2902 = vmatpush1.bf16.msra.mxu0 %v2893
        %2903 = vmatprep.subr.bf16.mxu0 0
        %2904 = vmatpush1.bf16.msra.mxu0 0
        %2905 = vmatprep.subr.bf16.mxu0 0
        %2906 = vmatpush1.bf16.msra.mxu0 0
        %2907 = vmatprep.subr.bf16.mxu0 0
        %2908 = vmatpush1.bf16.msra.mxu0 0
        %2909 = vmatprep.subr.bf16.mxu0 0
        %2910 = vmatpush1.bf16.msra.mxu0 0
        %2911 = vmatprep.subr.bf16.mxu0 0
        %2912 = vmatpush1.bf16.msra.mxu0 0
        %2913 = vmatprep.subr.bf16.mxu0 0
        %2914 = vmatpush1.bf16.msra.mxu0 0
        %2915 = vmatprep.subr.bf16.mxu0 0
        %2916 = vmatpush1.bf16.msra.mxu0 0
        %2917 = vmatprep.subr.bf16.mxu0 0
        %2918 = vmatpush1.bf16.msra.mxu0 0
        %2919 = vmatprep.subr.bf16.mxu0 0
        %2920 = vmatpush1.bf16.msra.mxu0 0
        %2921 = vmatprep.subr.bf16.mxu0 0
        %2922 = vmatpush1.bf16.msra.mxu0 0
        %2923 = vmatprep.subr.bf16.mxu0 0
        %2924 = vmatpush1.bf16.msra.mxu0 0
        %2925 = vmatprep.subr.bf16.mxu0 0
        %2926 = vmatpush1.bf16.msra.mxu0 0
        %2927 = vmatprep.subr.bf16.mxu0 0
        %2928 = vmatpush1.bf16.msra.mxu0 0
        %2929 = vmatprep.subr.bf16.mxu0 0
        %2930 = vmatpush1.bf16.msra.mxu0 0
        %2931 = vmatprep.mubr.bf16.mxu0 0
        %2932 = vmatmul.mubr.bf16.gmra.mrb[0].mxu0 %v2897
        %v2933 = vpop.f32.mrb[0].mxu0
        %v2934 = vadd.f32 0.0, %v2933
        %v2935 = vpop.f32.mrb[0].mxu0
        %v2936 = vpop.f32.mrb[0].mxu0
        %v2937 = vpop.f32.mrb[0].mxu0
        %2938 = vdwg.mxu0
        %v2939 = vadd.f32 %v2876, %v2934
        %v2940 = vrot.slane %v2764, 1
        %2941 = vrot.lane.b32.xlu0 %v2940, 32
        %v2942 = vpop.permute.xlu0 %2941
        %v2947 = vunpack.c.l.b16 %v2759
        %v2948 = vunpack.c.l.b16 %v2760
        %v2949 = vunpack.c.l.b16 %v2761
        %v2950 = vunpack.c.l.b16 %v2762
        %v2951 = vpack.c.b16 %v2948, %v2947
        %v2952 = vpack.c.b16 %v2950, %v2949
        %v2956 = vsel %vm677, %v2942, 0
        %2958 = vmatprep.subr.bf16.mxu0 0
        %2959 = vmatpush1.bf16.msra.mxu0 %v2951
        %2960 = vmatprep.subr.bf16.mxu0 0
        %2961 = vmatpush1.bf16.msra.mxu0 %v2952
        %2962 = vmatprep.subr.bf16.mxu0 0
        %2963 = vmatpush1.bf16.msra.mxu0 0
        %2964 = vmatprep.subr.bf16.mxu0 0
        %2965 = vmatpush1.bf16.msra.mxu0 0
        %2966 = vmatprep.subr.bf16.mxu0 0
        %2967 = vmatpush1.bf16.msra.mxu0 0
        %2968 = vmatprep.subr.bf16.mxu0 0
        %2969 = vmatpush1.bf16.msra.mxu0 0
        %2970 = vmatprep.subr.bf16.mxu0 0
        %2971 = vmatpush1.bf16.msra.mxu0 0
        %2972 = vmatprep.subr.bf16.mxu0 0
        %2973 = vmatpush1.bf16.msra.mxu0 0
        %2974 = vmatprep.subr.bf16.mxu0 0
        %2975 = vmatpush1.bf16.msra.mxu0 0
        %2976 = vmatprep.subr.bf16.mxu0 0
        %2977 = vmatpush1.bf16.msra.mxu0 0
        %2978 = vmatprep.subr.bf16.mxu0 0
        %2979 = vmatpush1.bf16.msra.mxu0 0
        %2980 = vmatprep.subr.bf16.mxu0 0
        %2981 = vmatpush1.bf16.msra.mxu0 0
        %2982 = vmatprep.subr.bf16.mxu0 0
        %2983 = vmatpush1.bf16.msra.mxu0 0
        %2984 = vmatprep.subr.bf16.mxu0 0
        %2985 = vmatpush1.bf16.msra.mxu0 0
        %2986 = vmatprep.subr.bf16.mxu0 0
        %2987 = vmatpush1.bf16.msra.mxu0 0
        %2988 = vmatprep.subr.bf16.mxu0 0
        %2989 = vmatpush1.bf16.msra.mxu0 0
        %2990 = vmatprep.mubr.bf16.mxu0 0
        %2991 = vmatmul.mubr.bf16.gmra.mrb[0].mxu0 %v2956
        %v2992 = vpop.f32.mrb[0].mxu0
        %v2993 = vadd.f32 0.0, %v2992
        %v2994 = vpop.f32.mrb[0].mxu0
        %v2995 = vpop.f32.mrb[0].mxu0
        %v2996 = vpop.f32.mrb[0].mxu0
        %2997 = vdwg.mxu0
        %v2998 = vadd.f32 %v2939, %v2993
        %v2999 = vld [vmem:[%s13] sm:$0x1]
        %v3001 = vlaneseq
        %v3002 = vshrl.u32 %v3001, 7
        %v3003 = vsub.s32 0, %v3002
        %v3004 = vrot.slane %v2999, %v3003
        %v3006 = vadd.f32 %v2998, %v3004
        %v3007 = vmax.f32 %v3006, 0.0
        %v3008 = vld [vmem:[%s14] sm:$0xf]
        %v3009 = vld [vmem:[%s14 + $0x4] sm:$0xf]
        %v3010 = vld [vmem:[%s14 + $0x8] sm:$0xf]
        %v3011 = vld [vmem:[%s14 + $0xc] sm:$0xf]
        %v3012 = vpack.c.bf16 %v3007, %v3007
        %v3013 = vld [vmem:[%s15] sm:$0x1]
        %v3015 = vlaneseq
        %v3016 = vshrl.u32 %v3015, 7
        %v3017 = vsub.s32 0, %v3016
        %v3018 = vrot.slane %v3013, %v3017
        %v3024 = vunpack.c.l.b16 %v3008
        %v3025 = vunpack.c.l.b16 %v3009
        %v3026 = vunpack.c.l.b16 %v3010
        %v3027 = vunpack.c.l.b16 %v3011
        %v3028 = vpack.c.b16 %v3025, %v3024
        %v3029 = vpack.c.b16 %v3027, %v3026
        %v3033 = vsel %vm677, %v3012, 0
        %3035 = vmatprep.subr.bf16.mxu0 0
        %3036 = vmatpush1.bf16.msra.mxu0 %v3028
        %3037 = vmatprep.subr.bf16.mxu0 0
        %3038 = vmatpush1.bf16.msra.mxu0 %v3029
        %3039 = vmatprep.subr.bf16.mxu0 0
        %3040 = vmatpush1.bf16.msra.mxu0 0
        %3041 = vmatprep.subr.bf16.mxu0 0
        %3042 = vmatpush1.bf16.msra.mxu0 0
        %3043 = vmatprep.subr.bf16.mxu0 0
        %3044 = vmatpush1.bf16.msra.mxu0 0
        %3045 = vmatprep.subr.bf16.mxu0 0
        %3046 = vmatpush1.bf16.msra.mxu0 0
        %3047 = vmatprep.subr.bf16.mxu0 0
        %3048 = vmatpush1.bf16.msra.mxu0 0
        %3049 = vmatprep.subr.bf16.mxu0 0
        %3050 = vmatpush1.bf16.msra.mxu0 0
        %3051 = vmatprep.subr.bf16.mxu0 0
        %3052 = vmatpush1.bf16.msra.mxu0 0
        %3053 = vmatprep.subr.bf16.mxu0 0
        %3054 = vmatpush1.bf16.msra.mxu0 0
        %3055 = vmatprep.subr.bf16.mxu0 0
        %3056 = vmatpush1.bf16.msra.mxu0 0
        %3057 = vmatprep.subr.bf16.mxu0 0
        %3058 = vmatpush1.bf16.msra.mxu0 0
        %3059 = vmatprep.subr.bf16.mxu0 0
        %3060 = vmatpush1.bf16.msra.mxu0 0
        %3061 = vmatprep.subr.bf16.mxu0 0
        %3062 = vmatpush1.bf16.msra.mxu0 0
        %3063 = vmatprep.subr.bf16.mxu0 0
        %3064 = vmatpush1.bf16.msra.mxu0 0
        %3065 = vmatprep.subr.bf16.mxu0 0
        %3066 = vmatpush1.bf16.msra.mxu0 0
        %3067 = vmatprep.mubr.bf16.mxu0 0
        %3068 = vmatmul.mubr.bf16.gmra.mrb[0].mxu0 %v3033
        %v3069 = vpop.f32.mrb[0].mxu0
        %v3070 = vadd.f32 %v3018, %v3069
        %v3071 = vpop.f32.mrb[0].mxu0
        %v3072 = vpop.f32.mrb[0].mxu0
        %v3073 = vpop.f32.mrb[0].mxu0
        %3074 = vdwg.mxu0
        %vm3075 = vcmask 9216
        %v3076 = vsel %vm3075, %v3070, -inf
        %3077 = vmax.xlane.f32.xlu0 %v3076
        %v3078 = vpop.xlane.xlu0 %3077
        %v3079 = vsub.f32 %v3070, %v3078
        %v3080 = vmul.f32 %v3079, 1.442695
        %v3081 = vpow.pop %v3080
        %v3082 = vsel %vm3075, %v3081, 0.0
        %3083 = vadd.xlane.f32.xlu0 %v3082
        %v3084 = vpop.xlane.xlu0 %3083
        %v3085 = vrcp.pop %v3084
        %v3086 = vmul.f32 %v3081, %v3085
        %3087 = vst.msk [vmem:[%s553] sm:$0x3] %vm3075, %v3086
        %s3088 = sand.u32 %s394, 1
        %s3089 = scalar_lea.sflag [#allocation6], %s3088
        %s3090 = sand.u32 %s394, 1
        %s3091 = smul.addr %s3090, 2
        %s3092 = scalar_lea.vmem [#allocation5], %s3091
        // Predicated region
        $region85: #{tpu_custom_call.1} parent=83 // pred_check
          %p3093 = pneg %p404
        $region86: #{tpu_custom_call.1} parent=83 // pred_check_branch
          %3095 = sbr.rel (%p3093) target = $region88
        $region87: #{tpu_custom_call.1} parent=83 // pred_region
          %s3097 = ssub.s32 32, 32
          %3098 = vsyncadd %s3089, %s3097
          %s3099 = smul.addr %s30, 32
          %s3100 = scalar_lea.hbm %s16, %s3099
          %s3102 = sshll.u32 %s3092, 4
          %s3103 = int_to_ptr.vmem [resolvable:$true] %s3102
          %3105 = dma.vmem_to_hbm [thread:$0]  %s3103, 32, %s3100, %s3089
        $region88: #{tpu_custom_call.1} parent=83 // pred_fallthru
          _
      $region84: #{tpu_custom_call.1} parent=5 // pred_fallthru
        _
      %p3106 = scmp.le.s32.totalorder 2, %s25
      // Predicated region
      $region89: #{tpu_custom_call.1} parent=5 // pred_check
        %p3107 = pneg %p3106
      $region90: #{tpu_custom_call.1} parent=5 // pred_check_branch
        %3109 = sbr.rel (%p3107) target = $region92
      $region91: #{tpu_custom_call.1} parent=5 // pred_region
        %s3110 = ssub.s32 %s25, 2
        // Predicated region
        $region93: #{tpu_custom_call.1} parent=91 // pred_check
          %p3111 = pneg %p410
        $region94: #{tpu_custom_call.1} parent=91 // pred_check_branch
          %3113 = sbr.rel (%p3111) target = $region96
        $region95: #{tpu_custom_call.1} parent=91 // pred_region
          %s3114 = sand.u32 %s395, 1
          %s3115 = scalar_lea.sflag [#allocation6], %s3114
          %s3116 = sand.u32 %s395, 1
          %s3117 = smul.addr %s3116, 2
          %s3118 = scalar_lea.vmem [#allocation5], %s3117
          %3119 = dma.done %s3115, 32
        $region96: #{tpu_custom_call.1} parent=91 // pred_fallthru
          _
      $region92: #{tpu_custom_call.1} parent=5 // pred_fallthru
        _
    $region6: #{tpu_custom_call.1} parent=1 // loop_footer
      %s29 = sadd.s32 1, %s25
    $region7: #{tpu_custom_call.1} parent=1 // loop_footer_branch
      %24 = sbr.rel target = $region3
    $region8: #{tpu_custom_call.1} parent=1 // loop_exit
      _
    %3120 = vsyncpa [#allocation6], 1
    %s3121 = scalar_lea.sflag [#allocation6], 1
    %3122 = vsyncpa %s3121, 1

</llo_original>
